<compile_context>
chip_gen: v6e
topology: v6e:2x2x1
jax: 0.10.0
libtpu: 0.0.40
codegen_flags: <defaults>
</compile_context>

<pallas_src>
import numpy as np
import jax
import jax.numpy as jnp
from jax import lax
from jax.experimental import pallas as pl
from jax.experimental.pallas import tpu as pltpu


# ----------------------------- per-axis operator matrices ------------------------------

def _adaptive_pool_matrix(n_in, n_out):
    """Row-stochastic (n_out, n_in) matrix implementing adaptive_avg_pool1d."""
    P = np.zeros((n_out, n_in), np.float32)
    for i in range(n_out):
        start = (i * n_in) // n_out
        end = -(-((i + 1) * n_in) // n_out)  # ceil
        P[i, start:end] = 1.0 / (end - start)
    return P


def _bilinear_matrix_align_corners(n_out, n_in):
    """(n_out, n_in) 1-D linear interpolation matrix with align_corners=True."""
    U = np.zeros((n_out, n_in), np.float32)
    if n_out == 1 or n_in == 1:
        U[:, 0] = 1.0
        return U
    for j in range(n_out):
        src = j * (n_in - 1) / (n_out - 1)
        i0 = min(int(np.floor(src)), n_in - 1)
        i1 = min(i0 + 1, n_in - 1)
        w1 = src - i0
        U[j, i0] += 1.0 - w1
        U[j, i1] += w1
    return U


# --------------------------------- shared stage math -----------------------------------
# These run on values inside the Pallas kernels (fused path and staged fallback).

def _pool_stage(x3, pwT, ph):
    """Separable adaptive average pool: (C', H, W) f32 -> (C', Ar0, Ar1) f32."""
    Cp, H, W = x3.shape
    Ar1 = pwT.shape[1]
    Ar0 = ph.shape[0]
    xb = x3.reshape(Cp * H, W).astype(jnp.bfloat16)              # leading-dim merge (cheap)
    xw = jnp.dot(xb, pwT, preferred_element_type=jnp.float32)    # (C'*H, Ar1)   pool W
    xw3 = xw.reshape(Cp, H, Ar1).astype(jnp.bfloat16)            # leading-dim split (cheap)
    ph_b = jnp.broadcast_to(ph[None], (Cp, Ar0, H))              # tiny, hoisted once/step
    return lax.dot_general(ph_b, xw3, (((2,), (1,)), ((0,), (0,))),
                           preferred_element_type=jnp.float32)   # (C', Ar0, Ar1) pool H


def _attention_stage(xp, wst, cqp):
    """Fused QKV projection (bias folded via the ones channel) + position attention.
    xp: (C+1, N), wst: (Co, C+1) -> out_low: (C, N) f32."""
    qkv = jnp.dot(wst, xp.astype(jnp.bfloat16),
                  preferred_element_type=jnp.float32)            # (Co, N)
    qkv_b = qkv.astype(jnp.bfloat16)                             # single bf16 cast, then slice
    q = qkv_b[0:cqp]                                             # zero-padded rows -> no effect
    k = qkv_b[cqp:2 * cqp]
    v = qkv_b[2 * cqp:]
    # energy^T[m, n] = <k[:, m], q[:, n]>; softmax over axis 0 yields attn^T directly so
    # the value aggregation below is a canonical matmul (no (N, N) transpose).
    energy_t = lax.dot_general(k, q, (((0,), (0,)), ((), ())),
                               preferred_element_type=jnp.float32)          # (N, N)
    m = jnp.max(energy_t, axis=0, keepdims=True)
    e = jnp.exp(energy_t - m)
    inv = pl.reciprocal(jnp.sum(e, axis=0, keepdims=True), approx=True)     # EUP slot
    attn_t = (e * inv).astype(jnp.bfloat16)
    return jnp.dot(v, attn_t, preferred_element_type=jnp.float32)           # (C, N)


def _upsample_residual_stage(ol3, uwT, uh, gamma, x_res):
    """Separable bilinear (align_corners=True) upsample + gamma-scaled residual.
    ol3: (C, Ar0, Ar1), x_res: (C, H, W) f32 -> (C, H, W) f32."""
    C, Ar0, Ar1 = ol3.shape
    H, W = x_res.shape[1], x_res.shape[2]
    uwT_b = jnp.broadcast_to(uwT[None], (C, Ar1, W))
    t = lax.dot_general(ol3.astype(jnp.bfloat16), uwT_b,
                        (((2,), (1,)), ((0,), (0,))),
                        preferred_element_type=jnp.float32)      # (C, Ar0, W)  upsample W
    uh_b = jnp.broadcast_to(uh[None], (C, H, Ar0))
    up = lax.dot_general(uh_b, t.astype(jnp.bfloat16),
                         (((2,), (1,)), ((0,), (0,))),
                         preferred_element_type=jnp.float32)     # (C, H, W)    upsample H
    return gamma * up + x_res                                    # residual kept in f32


# ------------------------------------ spec helpers --------------------------------------

def _invariant_spec(shape):
    """Grid-invariant operand: constant index map (fetched once) and, when this JAX
    exposes pipeline_mode, single-buffered (pl.Buffered(1)) so it doesn't pay for a
    double buffer (review item)."""
    index_map = lambda b: (0,) * len(shape)
    if hasattr(pl, "Buffered"):
        try:
            return pl.BlockSpec(shape, index_map, pipeline_mode=pl.Buffered(1))
        except Exception:
            pass
    return pl.BlockSpec(shape, index_map)


def _vmem_limit_bytes():
    """Per-generation scoped-VMEM budget (review item: do not hardcode 48 MiB)."""
    cap = 64 * 1024 * 1024
    try:
        cap = int(pltpu.get_tpu_info().vmem_capacity_bytes)
    except Exception:
        pass
    return max(32 * 1024 * 1024, min(int(0.75 * cap), 96 * 1024 * 1024))


_FUSED_OK = {"ok": None}   # cache: None = untried, True/False after first attempt


# --------------------------------------- wrapper ----------------------------------------

def da_pam_forward(x_nchw, params, attention_resolution):
    B, C, H, W = x_nchw.shape
    Ar0, Ar1 = attention_resolution
    N = Ar0 * Ar1
    Cq = params['wq'].shape[0]
    CQP = max(16, ((Cq + 15) // 16) * 16)     # pad q/k channels to a bf16 sublane pair
    Co = 2 * CQP + C
    C1 = C + 1                                # + constant ones channel (bias folding)
    f32, bf16 = jnp.float32, jnp.bfloat16

    # Per-axis pool / bilinear operators: a few KB instead of the (HW, N) krons.
    pwT = jnp.asarray(_adaptive_pool_matrix(W, Ar1).T, bf16)              # (W, Ar1)
    ph = jnp.asarray(_adaptive_pool_matrix(H, Ar0), bf16)                 # (Ar0, H)
    uwT = jnp.asarray(_bilinear_matrix_align_corners(W, Ar1).T, bf16)     # (Ar1, W)
    uh = jnp.asarray(_bilinear_matrix_align_corners(H, Ar0), bf16)        # (H, Ar0)

    # Stacked QKV weight: zero-padded q/k rows (exact: zero weight + zero bias) and the
    # bias as an extra column that multiplies the pooled ones channel.
    def pad_rows(w, rows):
        w = jnp.asarray(w, f32)
        return jnp.zeros((rows, w.shape[1]), f32).at[: w.shape[0]].set(w)

    def with_bias_col(w, b):
        return jnp.concatenate([jnp.asarray(w, f32), jnp.asarray(b, f32)[:, None]], axis=1)

    wst = jnp.concatenate(
        [pad_rows(with_bias_col(params['wq'], params['bq']), CQP),
         pad_rows(with_bias_col(params['wk'], params['bk']), CQP),
         with_bias_col(params['wv'], params['bv'])], axis=0).astype(bf16)  # (Co, C1)

    # x stays f32 (exact residual); append the constant ones channel used for the bias.
    x_f32 = jnp.asarray(x_nchw, f32)
    x_aug = jnp.concatenate([x_f32, jnp.ones((B, 1, H, W), f32)], axis=1)  # (B, C1, H, W)
    gamma = jnp.asarray(params['gamma'], f32).reshape(1, 1)

    comp_params = pltpu.CompilerParams(
        dimension_semantics=("parallel",),          # batch axis across cores (v7x: 2 TCs)
        vmem_limit_bytes=_vmem_limit_bytes())

    # ------------------------------ primary: one fused kernel ------------------------------
    def fused_kernel(x_ref, wst_ref, pwT_ref, ph_ref, uwT_ref, uh_ref, g_ref, o_ref):
        x3 = x_ref[0]                                             # (C1, H, W) f32
        xp3 = _pool_stage(x3, pwT_ref[...], ph_ref[...])          # (C1, Ar0, Ar1)
        # Small lane<->sublane relayouts (copies) on the pooled tensors only; the
        # full-resolution tensors never need one.
        xp = xp3.reshape(C1, N)
        out_low = _attention_stage(xp, wst_ref[...], CQP)         # (C, N)
        ol3 = out_low.reshape(C, Ar0, Ar1)
        o_ref[0] = _upsample_residual_stage(ol3, uwT_ref[...], uh_ref[...],
                                            g_ref[0, 0], x3[:C])

    def _fused_call():
        return pl.pallas_call(
            fused_kernel,
            out_shape=jax.ShapeDtypeStruct((B, C, H, W), f32),
            grid=(B,),
            in_specs=[
                pl.BlockSpec((1, C1, H, W), lambda b: (b, 0, 0, 0)),   # x (+ ones channel)
                _invariant_spec((Co, C1)),                             # stacked QKV weight
                _invariant_spec((W, Ar1)),                             # Pw^T
                _invariant_spec((Ar0, H)),                             # Ph
                _invariant_spec((Ar1, W)),                             # Uw^T
                _invariant_spec((H, Ar0)),                             # Uh
                pl.BlockSpec((1, 1), lambda b: (0, 0)),                # gamma
            ],
            out_specs=pl.BlockSpec((1, C, H, W), lambda b: (b, 0, 0, 0)),
            compiler_params=comp_params,
        )(x_aug, wst, pwT, ph, uwT, uh, gamma)

    # ------------- fallback: same math, 3 kernels, relayout reshapes done on HBM -------------
    def pool_kernel(x_ref, pwT_ref, ph_ref, xp3_ref):
        xp3_ref[0] = _pool_stage(x_ref[0], pwT_ref[...], ph_ref[...])

    def attn_kernel(xp_ref, wst_ref, ol_ref):
        ol_ref[0] = _attention_stage(xp_ref[0], wst_ref[...], CQP)

    def up_kernel(ol3_ref, x_ref, uwT_ref, uh_ref, g_ref, o_ref):
        o_ref[0] = _upsample_residual_stage(ol3_ref[0], uwT_ref[...], uh_ref[...],
                                            g_ref[0, 0], x_ref[0])

    def _staged_call():
        xp3 = pl.pallas_call(
            pool_kernel,
            out_shape=jax.ShapeDtypeStruct((B, C1, Ar0, Ar1), f32),
            grid=(B,),
            in_specs=[pl.BlockSpec((1, C1, H, W), lambda b: (b, 0, 0, 0)),
                      _invariant_spec((W, Ar1)),
                      _invariant_spec((Ar0, H))],
            out_specs=pl.BlockSpec((1, C1, Ar0, Ar1), lambda b: (b, 0, 0, 0)),
            compiler_params=comp_params,
        )(x_aug, pwT, ph)

        out_low = pl.pallas_call(
            attn_kernel,
            out_shape=jax.ShapeDtypeStruct((B, C, N), f32),
            grid=(B,),
            in_specs=[pl.BlockSpec((1, C1, N), lambda b: (b, 0, 0)),
                      _invariant_spec((Co, C1))],
            out_specs=pl.BlockSpec((1, C, N), lambda b: (b, 0, 0)),
            compiler_params=comp_params,
        )(xp3.reshape(B, C1, N), wst)

        return pl.pallas_call(
            up_kernel,
            out_shape=jax.ShapeDtypeStruct((B, C, H, W), f32),
            grid=(B,),
            in_specs=[pl.BlockSpec((1, C, Ar0, Ar1), lambda b: (b, 0, 0, 0)),
                      pl.BlockSpec((1, C, H, W), lambda b: (b, 0, 0, 0)),
                      _invariant_spec((Ar1, W)),
                      _invariant_spec((H, Ar0)),
                      pl.BlockSpec((1, 1), lambda b: (0, 0))],
            out_specs=pl.BlockSpec((1, C, H, W), lambda b: (b, 0, 0, 0)),
            compiler_params=comp_params,
        )(out_low.reshape(B, C, Ar0, Ar1), x_f32, uwT, uh, gamma)

    if _FUSED_OK["ok"] is not False:
        try:
            out = _fused_call()
            jax.block_until_ready(out)
            _FUSED_OK["ok"] = True
            return out
        except Exception:
            _FUSED_OK["ok"] = False
    return _staged_call()


# --------------------------------- pure-JAX reference -----------------------------------
# f32 reference built from the same 1-D pooling / bilinear matrices (they match torch's
# adaptive_avg_pool2d / F.interpolate(align_corners=True) for these sizes).

def da_pam_reference(x_nchw, params, attention_resolution):
    B, C, H, W = x_nchw.shape
    Ar0, Ar1 = attention_resolution
    N = Ar0 * Ar1
    Cq = params['wq'].shape[0]
    Ph = jnp.asarray(_adaptive_pool_matrix(H, Ar0))
    Pw = jnp.asarray(_adaptive_pool_matrix(W, Ar1))
    Uh = jnp.asarray(_bilinear_matrix_align_corners(H, Ar0))
    Uw = jnp.asarray(_bilinear_matrix_align_corners(W, Ar1))

    def conv1x1(x, w, b):
        return jnp.einsum('oc,bchw->bohw', w, x) + b[None, :, None, None]

    q = conv1x1(x_nchw, params['wq'], params['bq'])
    k = conv1x1(x_nchw, params['wk'], params['bk'])
    v = conv1x1(x_nchw, params['wv'], params['bv'])

    pool = lambda f: jnp.einsum('ih,jw,bchw->bcij', Ph, Pw, f)
    qp = pool(q).reshape(B, Cq, N)
    kp = pool(k).reshape(B, Cq, N)
    vp = pool(v).reshape(B, C, N)

    energy = jnp.einsum('bcn,bcm->bnm', qp, kp)
    attn = jax.nn.softmax(energy, axis=-1)
    out_low = jnp.einsum('bcm,bnm->bcn', vp, attn).reshape(B, C, Ar0, Ar1)
    out_up = jnp.einsum('hi,wj,bcij->bchw', Uh, Uw, out_low)
    return params['gamma'].reshape(1, 1, 1, 1) * out_up + x_nchw


# ------------------------------------------ main ----------------------------------------

if __name__ == "__main__":
    B, C, H, W = 2, 16, 16, 16              # in_dim=16 so query/key channels = 16 // 8 = 2
    attention_resolution = (8, 8)
    Cq = C // 8

    key = jax.random.PRNGKey(0)
    ks = jax.random.split(key, 7)
    x = jax.random.normal(ks[0], (B, C, H, W), jnp.float32)
    params = {
        'wq': 0.1 * jax.random.normal(ks[1], (Cq, C), jnp.float32),
        'bq': 0.1 * jax.random.normal(ks[2], (Cq,), jnp.float32),
        'wk': 0.1 * jax.random.normal(ks[3], (Cq, C), jnp.float32),
        'bk': 0.1 * jax.random.normal(ks[4], (Cq,), jnp.float32),
        'wv': 0.1 * jax.random.normal(ks[5], (C, C), jnp.float32),
        'bv': 0.1 * jax.random.normal(ks[6], (C,), jnp.float32),
        'gamma': jnp.zeros((1,), jnp.float32),   # module init: gamma = 0
    }

    # Tolerance loosened vs. the f32 reference: matmuls run in bf16 with f32 accumulation.
    TOL = 5e-2

    out = da_pam_forward(x, params, attention_resolution)
    jax.block_until_ready(out)
    ref = da_pam_reference(x, params, attention_resolution)
    assert out.shape == ref.shape
    assert jnp.allclose(out, ref, atol=TOL, rtol=TOL), "mismatch (gamma=0)"

    # also exercise the full attention + upsample path with a nonzero residual scale
    p2 = dict(params)
    p2['gamma'] = jnp.full((1,), 0.7, jnp.float32)
    out2 = da_pam_forward(x, p2, attention_resolution)
    jax.block_until_ready(out2)
    ref2 = da_pam_reference(x, p2, attention_resolution)
    assert jnp.allclose(out2, ref2, atol=TOL, rtol=TOL), "mismatch (gamma=0.7)"

    print("KERNEL_OK")
</pallas_src>

<mosaic_0001>
module attributes {stable_mosaic.version = 11 : i64} {
  func.func @fused_kernel(%arg0: i32, %arg1: memref<1x17x16x16xf32, #tpu.memory_space<vmem>>, %arg2: memref<48x17xbf16, #tpu.memory_space<vmem>>, %arg3: memref<16x8xbf16, #tpu.memory_space<vmem>>, %arg4: memref<8x16xbf16, #tpu.memory_space<vmem>>, %arg5: memref<8x16xbf16, #tpu.memory_space<vmem>>, %arg6: memref<16x8xbf16, #tpu.memory_space<vmem>>, %arg7: memref<1x1xf32, #tpu.memory_space<vmem>>, %arg8: memref<1x16x16x16xf32, #tpu.memory_space<vmem>>) attributes {dimension_semantics = [#tpu.dimension_semantics<parallel>], iteration_bounds = array<i64: 2>, scalar_prefetch = 0 : i64, scratch_operands = 0 : i64, tpu.core_type = #tpu.core_type<tc>, window_params = [{transform_indices = @transform_0, window_bounds = array<i64: 1, 17, 16, 16>}, {pipeline_mode = #tpu.pipeline_mode<synchronous>, transform_indices = @transform_1, window_bounds = array<i64: 48, 17>}, {pipeline_mode = #tpu.pipeline_mode<synchronous>, transform_indices = @transform_2, window_bounds = array<i64: 16, 8>}, {pipeline_mode = #tpu.pipeline_mode<synchronous>, transform_indices = @transform_3, window_bounds = array<i64: 8, 16>}, {pipeline_mode = #tpu.pipeline_mode<synchronous>, transform_indices = @transform_4, window_bounds = array<i64: 8, 16>}, {pipeline_mode = #tpu.pipeline_mode<synchronous>, transform_indices = @transform_5, window_bounds = array<i64: 16, 8>}, {pipeline_mode = #tpu.pipeline_mode<synchronous>, transform_indices = @transform_6, window_bounds = array<i64: 1, 1>}, {transform_indices = @transform_7, window_bounds = array<i64: 1, 16, 16, 16>}]} {
    %c0 = arith.constant 0 : index
    %c0_0 = arith.constant 0 : index
    %c0_1 = arith.constant 0 : index
    %c0_2 = arith.constant 0 : index
    %0 = vector.load %arg1[%c0, %c0_0, %c0_1, %c0_2] : memref<1x17x16x16xf32, #tpu.memory_space<vmem>>, vector<1x17x16x16xf32>
    %1 = vector.shape_cast %0 : vector<1x17x16x16xf32> to vector<17x16x16xf32>
    %c0_3 = arith.constant 0 : index
    %c0_4 = arith.constant 0 : index
    %2 = vector.load %arg3[%c0_3, %c0_4] : memref<16x8xbf16, #tpu.memory_space<vmem>>, vector<16x8xbf16>
    %c0_5 = arith.constant 0 : index
    %c0_6 = arith.constant 0 : index
    %3 = vector.load %arg4[%c0_5, %c0_6] : memref<8x16xbf16, #tpu.memory_space<vmem>>, vector<8x16xbf16>
    %4 = vector.shape_cast %1 : vector<17x16x16xf32> to vector<272x16xf32>
    %5 = arith.truncf %4 : vector<272x16xf32> to vector<272x16xbf16>
    %cst = arith.constant dense<0.000000e+00> : vector<272x8xf32>
    %6 = tpu.matmul %5, %2, %cst {dimension_numbers = #tpu.dot_dimension_numbers<[1], [0], [0], [1], [0, 0, 1, 1], [], []>} : vector<272x16xbf16>, vector<16x8xbf16>, vector<272x8xf32> -> vector<272x8xf32>
    %7 = vector.shape_cast %6 : vector<272x8xf32> to vector<17x16x8xf32>
    %8 = arith.truncf %7 : vector<17x16x8xf32> to vector<17x16x8xbf16>
    %9 = vector.shape_cast %3 : vector<8x16xbf16> to vector<1x8x16xbf16>
    %10 = vector.shape_cast %9 : vector<1x8x16xbf16> to vector<1x8x16xbf16>
    %11 = vector.broadcast %10 : vector<1x8x16xbf16> to vector<17x8x16xbf16>
    %cst_7 = arith.constant dense<0.000000e+00> : vector<17x8x8xf32>
    %12 = tpu.matmul %11, %8, %cst_7 {dimension_numbers = #tpu.dot_dimension_numbers<[2], [1], [1], [2], [0, 0, 0, 1, 1, 2], [0], [0]>} : vector<17x8x16xbf16>, vector<17x16x8xbf16>, vector<17x8x8xf32> -> vector<17x8x8xf32>
    %13 = vector.shape_cast %12 : vector<17x8x8xf32> to vector<17x64xf32>
    %c0_8 = arith.constant 0 : index
    %c0_9 = arith.constant 0 : index
    %14 = vector.load %arg2[%c0_8, %c0_9] : memref<48x17xbf16, #tpu.memory_space<vmem>>, vector<48x17xbf16>
    %15 = arith.truncf %13 : vector<17x64xf32> to vector<17x64xbf16>
    %cst_10 = arith.constant dense<0.000000e+00> : vector<48x64xf32>
    %16 = tpu.matmul %14, %15, %cst_10 {dimension_numbers = #tpu.dot_dimension_numbers<[1], [0], [0], [1], [0, 0, 1, 1], [], []>} : vector<48x17xbf16>, vector<17x64xbf16>, vector<48x64xf32> -> vector<48x64xf32>
    %17 = arith.truncf %16 : vector<48x64xf32> to vector<48x64xbf16>
    %18 = vector.extract_strided_slice %17 {offsets = [0, 0], sizes = [16, 64], strides = [1, 1]} : vector<48x64xbf16> to vector<16x64xbf16>
    %19 = vector.extract_strided_slice %17 {offsets = [16, 0], sizes = [16, 64], strides = [1, 1]} : vector<48x64xbf16> to vector<16x64xbf16>
    %20 = vector.extract_strided_slice %17 {offsets = [32, 0], sizes = [16, 64], strides = [1, 1]} : vector<48x64xbf16> to vector<16x64xbf16>
    %cst_11 = arith.constant dense<0.000000e+00> : vector<64x64xf32>
    %21 = tpu.matmul %19, %18, %cst_11 {dimension_numbers = #tpu.dot_dimension_numbers<[0], [0], [1], [1], [0, 1, 1, 1], [], []>} : vector<16x64xbf16>, vector<16x64xbf16>, vector<64x64xf32> -> vector<64x64xf32>
    %cst_12 = arith.constant dense<0xFF800000> : vector<64xf32>
    %22 = vector.multi_reduction <maximumf>, %21, %cst_12 [0] : vector<64x64xf32> to vector<64xf32>
    %23 = vector.shape_cast %22 : vector<64xf32> to vector<1x64xf32>
    %24 = vector.broadcast %23 : vector<1x64xf32> to vector<64x64xf32>
    %25 = arith.subf %21, %24 : vector<64x64xf32>
    %26 = math.exp %25 : vector<64x64xf32>
    %cst_13 = arith.constant dense<0.000000e+00> : vector<64xf32>
    %27 = vector.multi_reduction <add>, %26, %cst_13 [0] : vector<64x64xf32> to vector<64xf32>
    %28 = vector.shape_cast %27 : vector<64xf32> to vector<1x64xf32>
    %29 = tpu.reciprocal %28 {approx = true} : vector<1x64xf32> -> vector<1x64xf32>
    %30 = vector.broadcast %29 : vector<1x64xf32> to vector<64x64xf32>
    %31 = arith.mulf %26, %30 : vector<64x64xf32>
    %32 = arith.truncf %31 : vector<64x64xf32> to vector<64x64xbf16>
    %cst_14 = arith.constant dense<0.000000e+00> : vector<16x64xf32>
    %33 = tpu.matmul %20, %32, %cst_14 {dimension_numbers = #tpu.dot_dimension_numbers<[1], [0], [0], [1], [0, 0, 1, 1], [], []>} : vector<16x64xbf16>, vector<64x64xbf16>, vector<16x64xf32> -> vector<16x64xf32>
    %34 = vector.shape_cast %33 : vector<16x64xf32> to vector<16x8x8xf32>
    %c0_15 = arith.constant 0 : index
    %c0_16 = arith.constant 0 : index
    %35 = vector.load %arg5[%c0_15, %c0_16] : memref<8x16xbf16, #tpu.memory_space<vmem>>, vector<8x16xbf16>
    %c0_17 = arith.constant 0 : index
    %c0_18 = arith.constant 0 : index
    %36 = vector.load %arg6[%c0_17, %c0_18] : memref<16x8xbf16, #tpu.memory_space<vmem>>, vector<16x8xbf16>
    %c0_19 = arith.constant 0 : index
    %c0_20 = arith.constant 0 : index
    %37 = vector.load %arg7[%c0_19, %c0_20] : memref<1x1xf32, #tpu.memory_space<vmem>>, vector<1x1xf32>
    %38 = vector.extract %37[0, 0] : f32 from vector<1x1xf32>
    %39 = vector.extract_strided_slice %1 {offsets = [0, 0, 0], sizes = [16, 16, 16], strides = [1, 1, 1]} : vector<17x16x16xf32> to vector<16x16x16xf32>
    %40 = vector.shape_cast %35 : vector<8x16xbf16> to vector<1x8x16xbf16>
    %41 = vector.shape_cast %40 : vector<1x8x16xbf16> to vector<1x8x16xbf16>
    %42 = vector.broadcast %41 : vector<1x8x16xbf16> to vector<16x8x16xbf16>
    %43 = arith.truncf %34 : vector<16x8x8xf32> to vector<16x8x8xbf16>
    %cst_21 = arith.constant dense<0.000000e+00> : vector<16x8x16xf32>
    %44 = tpu.matmul %43, %42, %cst_21 {dimension_numbers = #tpu.dot_dimension_numbers<[2], [1], [1], [2], [0, 0, 0, 1, 1, 2], [0], [0]>} : vector<16x8x8xbf16>, vector<16x8x16xbf16>, vector<16x8x16xf32> -> vector<16x8x16xf32>
    %45 = vector.shape_cast %36 : vector<16x8xbf16> to vector<1x16x8xbf16>
    %46 = vector.shape_cast %45 : vector<1x16x8xbf16> to vector<1x16x8xbf16>
    %47 = vector.broadcast %46 : vector<1x16x8xbf16> to vector<16x16x8xbf16>
    %48 = arith.truncf %44 : vector<16x8x16xf32> to vector<16x8x16xbf16>
    %cst_22 = arith.constant dense<0.000000e+00> : vector<16x16x16xf32>
    %49 = tpu.matmul %47, %48, %cst_22 {dimension_numbers = #tpu.dot_dimension_numbers<[2], [1], [1], [2], [0, 0, 0, 1, 1, 2], [0], [0]>} : vector<16x16x8xbf16>, vector<16x8x16xbf16>, vector<16x16x16xf32> -> vector<16x16x16xf32>
    %50 = vector.broadcast %38 : f32 to vector<16x16x16xf32>
    %51 = arith.mulf %50, %49 : vector<16x16x16xf32>
    %52 = arith.addf %51, %39 : vector<16x16x16xf32>
    %c0_23 = arith.constant 0 : index
    %c0_24 = arith.constant 0 : index
    %c0_25 = arith.constant 0 : index
    %c0_26 = arith.constant 0 : index
    %53 = vector.load %arg8[%c0_23, %c0_24, %c0_25, %c0_26] : memref<1x16x16x16xf32, #tpu.memory_space<vmem>>, vector<1x16x16x16xf32>
    %54 = vector.shape_cast %53 : vector<1x16x16x16xf32> to vector<16x16x16xf32>
    %55 = vector.shape_cast %52 : vector<16x16x16xf32> to vector<1x16x16x16xf32>
    tpu.vector_store %arg8[%c0_23, %c0_24, %c0_25, %c0_26], %55 {strides = array<i32>} : memref<1x16x16x16xf32, #tpu.memory_space<vmem>>, vector<1x16x16x16xf32>,
    return
  }
  func.func @transform_0(%arg0: i32) -> (i32, i32, i32, i32) {
    %c0_i32 = arith.constant 0 : i32
    %c0_i32_0 = arith.constant 0 : i32
    %c0_i32_1 = arith.constant 0 : i32
    %c0_i32_2 = arith.constant 0 : i32
    return %arg0, %c0_i32, %c0_i32_0, %c0_i32_1 : i32, i32, i32, i32
  }
  func.func @transform_1(%arg0: i32) -> (i32, i32) {
    %c0_i32 = arith.constant 0 : i32
    %c0_i32_0 = arith.constant 0 : i32
    %c0_i32_1 = arith.constant 0 : i32
    return %c0_i32, %c0_i32_0 : i32, i32
  }
  func.func @transform_2(%arg0: i32) -> (i32, i32) {
    %c0_i32 = arith.constant 0 : i32
    %c0_i32_0 = arith.constant 0 : i32
    %c0_i32_1 = arith.constant 0 : i32
    return %c0_i32, %c0_i32_0 : i32, i32
  }
  func.func @transform_3(%arg0: i32) -> (i32, i32) {
    %c0_i32 = arith.constant 0 : i32
    %c0_i32_0 = arith.constant 0 : i32
    %c0_i32_1 = arith.constant 0 : i32
    return %c0_i32, %c0_i32_0 : i32, i32
  }
  func.func @transform_4(%arg0: i32) -> (i32, i32) {
    %c0_i32 = arith.constant 0 : i32
    %c0_i32_0 = arith.constant 0 : i32
    %c0_i32_1 = arith.constant 0 : i32
    return %c0_i32, %c0_i32_0 : i32, i32
  }
  func.func @transform_5(%arg0: i32) -> (i32, i32) {
    %c0_i32 = arith.constant 0 : i32
    %c0_i32_0 = arith.constant 0 : i32
    %c0_i32_1 = arith.constant 0 : i32
    return %c0_i32, %c0_i32_0 : i32, i32
  }
  func.func @transform_6(%arg0: i32) -> (i32, i32) {
    %c0_i32 = arith.constant 0 : i32
    %c0_i32_0 = arith.constant 0 : i32
    %c0_i32_1 = arith.constant 0 : i32
    return %c0_i32, %c0_i32_0 : i32, i32
  }
  func.func @transform_7(%arg0: i32) -> (i32, i32, i32, i32) {
    %c0_i32 = arith.constant 0 : i32
    %c0_i32_0 = arith.constant 0 : i32
    %c0_i32_1 = arith.constant 0 : i32
    %c0_i32_2 = arith.constant 0 : i32
    return %arg0, %c0_i32, %c0_i32_0, %c0_i32_1 : i32, i32, i32, i32
  }
}

module attributes {stable_mosaic.version = 11 : i64} {
  func.func @pool_kernel(%arg0: i32, %arg1: memref<1x17x16x16xf32, #tpu.memory_space<vmem>>, %arg2: memref<16x8xbf16, #tpu.memory_space<vmem>>, %arg3: memref<8x16xbf16, #tpu.memory_space<vmem>>, %arg4: memref<1x17x8x8xf32, #tpu.memory_space<vmem>>) attributes {dimension_semantics = [#tpu.dimension_semantics<parallel>], iteration_bounds = array<i64: 2>, scalar_prefetch = 0 : i64, scratch_operands = 0 : i64, tpu.core_type = #tpu.core_type<tc>, window_params = [{transform_indices = @transform_0, window_bounds = array<i64: 1, 17, 16, 16>}, {pipeline_mode = #tpu.pipeline_mode<synchronous>, transform_indices = @transform_1, window_bounds = array<i64: 16, 8>}, {pipeline_mode = #tpu.pipeline_mode<synchronous>, transform_indices = @transform_2, window_bounds = array<i64: 8, 16>}, {transform_indices = @transform_3, window_bounds = array<i64: 1, 17, 8, 8>}]} {
    %c0 = arith.constant 0 : index
    %c0_0 = arith.constant 0 : index
    %c0_1 = arith.constant 0 : index
    %c0_2 = arith.constant 0 : index
    %0 = vector.load %arg1[%c0, %c0_0, %c0_1, %c0_2] : memref<1x17x16x16xf32, #tpu.memory_space<vmem>>, vector<1x17x16x16xf32>
    %1 = vector.shape_cast %0 : vector<1x17x16x16xf32> to vector<17x16x16xf32>
    %c0_3 = arith.constant 0 : index
    %c0_4 = arith.constant 0 : index
    %2 = vector.load %arg2[%c0_3, %c0_4] : memref<16x8xbf16, #tpu.memory_space<vmem>>, vector<16x8xbf16>
    %c0_5 = arith.constant 0 : index
    %c0_6 = arith.constant 0 : index
    %3 = vector.load %arg3[%c0_5, %c0_6] : memref<8x16xbf16, #tpu.memory_space<vmem>>, vector<8x16xbf16>
    %4 = vector.shape_cast %1 : vector<17x16x16xf32> to vector<272x16xf32>
    %5 = arith.truncf %4 : vector<272x16xf32> to vector<272x16xbf16>
    %cst = arith.constant dense<0.000000e+00> : vector<272x8xf32>
    %6 = tpu.matmul %5, %2, %cst {dimension_numbers = #tpu.dot_dimension_numbers<[1], [0], [0], [1], [0, 0, 1, 1], [], []>} : vector<272x16xbf16>, vector<16x8xbf16>, vector<272x8xf32> -> vector<272x8xf32>
    %7 = vector.shape_cast %6 : vector<272x8xf32> to vector<17x16x8xf32>
    %8 = arith.truncf %7 : vector<17x16x8xf32> to vector<17x16x8xbf16>
    %9 = vector.shape_cast %3 : vector<8x16xbf16> to vector<1x8x16xbf16>
    %10 = vector.shape_cast %9 : vector<1x8x16xbf16> to vector<1x8x16xbf16>
    %11 = vector.broadcast %10 : vector<1x8x16xbf16> to vector<17x8x16xbf16>
    %cst_7 = arith.constant dense<0.000000e+00> : vector<17x8x8xf32>
    %12 = tpu.matmul %11, %8, %cst_7 {dimension_numbers = #tpu.dot_dimension_numbers<[2], [1], [1], [2], [0, 0, 0, 1, 1, 2], [0], [0]>} : vector<17x8x16xbf16>, vector<17x16x8xbf16>, vector<17x8x8xf32> -> vector<17x8x8xf32>
    %c0_8 = arith.constant 0 : index
    %c0_9 = arith.constant 0 : index
    %c0_10 = arith.constant 0 : index
    %c0_11 = arith.constant 0 : index
    %13 = vector.load %arg4[%c0_8, %c0_9, %c0_10, %c0_11] : memref<1x17x8x8xf32, #tpu.memory_space<vmem>>, vector<1x17x8x8xf32>
    %14 = vector.shape_cast %13 : vector<1x17x8x8xf32> to vector<17x8x8xf32>
    %15 = vector.shape_cast %12 : vector<17x8x8xf32> to vector<1x17x8x8xf32>
    tpu.vector_store %arg4[%c0_8, %c0_9, %c0_10, %c0_11], %15 {strides = array<i32>} : memref<1x17x8x8xf32, #tpu.memory_space<vmem>>, vector<1x17x8x8xf32>,
    return
  }
  func.func @transform_0(%arg0: i32) -> (i32, i32, i32, i32) {
    %c0_i32 = arith.constant 0 : i32
    %c0_i32_0 = arith.constant 0 : i32
    %c0_i32_1 = arith.constant 0 : i32
    %c0_i32_2 = arith.constant 0 : i32
    return %arg0, %c0_i32, %c0_i32_0, %c0_i32_1 : i32, i32, i32, i32
  }
  func.func @transform_1(%arg0: i32) -> (i32, i32) {
    %c0_i32 = arith.constant 0 : i32
    %c0_i32_0 = arith.constant 0 : i32
    %c0_i32_1 = arith.constant 0 : i32
    return %c0_i32, %c0_i32_0 : i32, i32
  }
  func.func @transform_2(%arg0: i32) -> (i32, i32) {
    %c0_i32 = arith.constant 0 : i32
    %c0_i32_0 = arith.constant 0 : i32
    %c0_i32_1 = arith.constant 0 : i32
    return %c0_i32, %c0_i32_0 : i32, i32
  }
  func.func @transform_3(%arg0: i32) -> (i32, i32, i32, i32) {
    %c0_i32 = arith.constant 0 : i32
    %c0_i32_0 = arith.constant 0 : i32
    %c0_i32_1 = arith.constant 0 : i32
    %c0_i32_2 = arith.constant 0 : i32
    return %arg0, %c0_i32, %c0_i32_0, %c0_i32_1 : i32, i32, i32, i32
  }
}

</mosaic_0001>

<llo_original>
// kernel: tpu_custom_call.1
$region0: #{tpu_custom_call.1}
  #allocation0 [shape = 'u32[]', space=smem, size = 0x4, offset = 0x4, fixed_abs, tag = 'smem constant byte address 0x4 - core index']
  #allocation1 [shape = 'u32[144,128]{1,0:T(1,128)}', space=vmem, size = 0x12000, scoped, tag = 'internal scratch']
  #allocation2 [shape = 'f32[1,1]{1,0:T(1,128)S(1)}', space=vmem, size = 0x200, scoped, tag = 'scoped memory for tpu_custom_call.1']
  %s0 = inlined_call_operand.vmem [shape: f32[2,17,16,16], index: 0, kind: input, shape index: {}]
  %s1 = inlined_call_operand.vmem [shape: bf16[48,17], index: 1, kind: input, shape index: {}]
  %s2 = inlined_call_operand.vmem [shape: bf16[16,8], index: 2, kind: input, shape index: {}]
  %s3 = inlined_call_operand.vmem [shape: bf16[8,16], index: 3, kind: input, shape index: {}]
  %s4 = inlined_call_operand.vmem [shape: bf16[8,16], index: 4, kind: input, shape index: {}]
  %s5 = inlined_call_operand.vmem [shape: bf16[16,8], index: 5, kind: input, shape index: {}]
  %s6 = inlined_call_operand.<no memory space> [shape: f32[1,1], index: 6, kind: input, shape index: {}]
  %s7 = inlined_call_operand.hbm [shape: f32[2,16,16,16], index: 7, kind: output, shape index: {}]
  %s8 = sld [smem:[#allocation0]]
  $region61: #{tpu_custom_call.1} parent=0
    _
  %s10 = ssub.s32 1, %s8
  %s11 = scalar_select 0, %s10, %s8
  %v12 = vstv %s6
  %13 = vst [vmem:[#allocation2] sm:$0x1] %v12
  $region1: #{tpu_custom_call.1} parent=0
    #allocation3 [shape = 'u8[262144]{0}', space=vmem, size = 0x40000, scoped, tag = 'output window, operand 0']
    #allocation4 [shape = 's32[2]{0}', space=sflag, size = 0x8, scoped, tag = 'scoped memory for tpu_custom_call.1']
    %14 = vsyncpa [#allocation4], 0
    %s15 = scalar_lea.sflag [#allocation4], 1
    %16 = vsyncpa %s15, 0
    loop: start=0, step=1, limit=4
    $region2: #{tpu_custom_call.1} parent=1 // loop_pre_header
      _
    $region3: #{tpu_custom_call.1} parent=1 // loop_header
      %s18 = sphi 0, %s22
      %p19 = scmp.ge.s32.totalorder %s18, 4
      %s28 = sphi 0, %s30
      %s31 = sphi 0, %s28
      %s32 = sphi 0, %s31
      %s48 = sphi 0, %s32
      %s52 = sphi 0, %s52
      %s54 = sphi 0, %s52
      %s55 = sphi 0, %s54
      %s69 = sphi 0, %s55
      %s73 = sphi 0, %s73
      %s75 = sphi 0, %s73
      %s76 = sphi 0, %s75
      %s90 = sphi 0, %s76
      %s94 = sphi 0, %s94
      %s96 = sphi 0, %s94
      %s97 = sphi 0, %s96
      %s111 = sphi 0, %s97
      %s115 = sphi 0, %s115
      %s117 = sphi 0, %s115
      %s118 = sphi 0, %s117
      %s132 = sphi 0, %s118
      %s136 = sphi 0, %s136
      %s138 = sphi 0, %s136
      %s139 = sphi 0, %s138
      %s153 = sphi 0, %s139
      %s157 = sphi 0, %s157
      %s159 = sphi 0, %s157
      %s160 = sphi 0, %s159
      %s174 = sphi 0, %s160
      %s180 = sphi 0, %s182
      %s183 = sphi 0, %s180
      %s184 = sphi 0, %s183
      %s200 = sphi 0, %s184
    $region4: #{tpu_custom_call.1} parent=1 // loop_header_branch
      %21 = sbr.rel (%p19) target = $region8
    $region5: #{tpu_custom_call.1} parent=1 // loop_body
      %s23 = ssub.s32 %s18, 1
      %s24 = ssub.s32 %s18, 2
      %s25 = sadd.s32 %s18, 1
      %s26 = ssub.s32 %s18, %s25
      %p27 = scmp.eq.s32.totalorder %s26, 0
      %s29 = sadd.s32 %s28, 1
      %s30 = scalar_select %p27, %s28, %s29
      %p33 = pneg %p27
      %p34 = scmp.eq.s32.totalorder %s18, 1
      %p35 = por %p33, %p34
      %p36 = scmp.ne.s32.totalorder %s28, %s31
      %p37 = scmp.eq.s32.totalorder %s18, 0
      %p38 = por %p36, %p37
      %p39 = scmp.ne.s32.totalorder %s28, %s31
      %p40 = scmp.eq.s32.totalorder %s23, 1
      %p41 = por %p39, %p40
      %p42 = scmp.ne.s32.totalorder %s31, %s32
      %p43 = scmp.eq.s32.totalorder %s23, 0
      %p44 = por %p42, %p43
      %p45 = scmp.ne.s32.totalorder %s31, %s32
      %p46 = scmp.eq.s32.totalorder %s24, 1
      %p47 = por %p45, %p46
      %p49 = scmp.ne.s32.totalorder %s32, %s48
      %p50 = scmp.eq.s32.totalorder %s24, 0
      %p51 = por %p49, %p50
      %s53 = sadd.s32 %s52, 1
      %p56 = scmp.eq.s32.totalorder %s18, 1
      %p57 = scmp.ne.s32.totalorder %s52, %s54
      %p58 = scmp.eq.s32.totalorder %s18, 0
      %p59 = por %p57, %p58
      %p60 = scmp.ne.s32.totalorder %s52, %s54
      %p61 = scmp.eq.s32.totalorder %s23, 1
      %p62 = por %p60, %p61
      %p63 = scmp.ne.s32.totalorder %s54, %s55
      %p64 = scmp.eq.s32.totalorder %s23, 0
      %p65 = por %p63, %p64
      %p66 = scmp.ne.s32.totalorder %s54, %s55
      %p67 = scmp.eq.s32.totalorder %s24, 1
      %p68 = por %p66, %p67
      %p70 = scmp.ne.s32.totalorder %s55, %s69
      %p71 = scmp.eq.s32.totalorder %s24, 0
      %p72 = por %p70, %p71
      %s74 = sadd.s32 %s73, 1
      %p77 = scmp.eq.s32.totalorder %s18, 1
      %p78 = scmp.ne.s32.totalorder %s73, %s75
      %p79 = scmp.eq.s32.totalorder %s18, 0
      %p80 = por %p78, %p79
      %p81 = scmp.ne.s32.totalorder %s73, %s75
      %p82 = scmp.eq.s32.totalorder %s23, 1
      %p83 = por %p81, %p82
      %p84 = scmp.ne.s32.totalorder %s75, %s76
      %p85 = scmp.eq.s32.totalorder %s23, 0
      %p86 = por %p84, %p85
      %p87 = scmp.ne.s32.totalorder %s75, %s76
      %p88 = scmp.eq.s32.totalorder %s24, 1
      %p89 = por %p87, %p88
      %p91 = scmp.ne.s32.totalorder %s76, %s90
      %p92 = scmp.eq.s32.totalorder %s24, 0
      %p93 = por %p91, %p92
      %s95 = sadd.s32 %s94, 1
      %p98 = scmp.eq.s32.totalorder %s18, 1
      %p99 = scmp.ne.s32.totalorder %s94, %s96
      %p100 = scmp.eq.s32.totalorder %s18, 0
      %p101 = por %p99, %p100
      %p102 = scmp.ne.s32.totalorder %s94, %s96
      %p103 = scmp.eq.s32.totalorder %s23, 1
      %p104 = por %p102, %p103
      %p105 = scmp.ne.s32.totalorder %s96, %s97
      %p106 = scmp.eq.s32.totalorder %s23, 0
      %p107 = por %p105, %p106
      %p108 = scmp.ne.s32.totalorder %s96, %s97
      %p109 = scmp.eq.s32.totalorder %s24, 1
      %p110 = por %p108, %p109
      %p112 = scmp.ne.s32.totalorder %s97, %s111
      %p113 = scmp.eq.s32.totalorder %s24, 0
      %p114 = por %p112, %p113
      %s116 = sadd.s32 %s115, 1
      %p119 = scmp.eq.s32.totalorder %s18, 1
      %p120 = scmp.ne.s32.totalorder %s115, %s117
      %p121 = scmp.eq.s32.totalorder %s18, 0
      %p122 = por %p120, %p121
      %p123 = scmp.ne.s32.totalorder %s115, %s117
      %p124 = scmp.eq.s32.totalorder %s23, 1
      %p125 = por %p123, %p124
      %p126 = scmp.ne.s32.totalorder %s117, %s118
      %p127 = scmp.eq.s32.totalorder %s23, 0
      %p128 = por %p126, %p127
      %p129 = scmp.ne.s32.totalorder %s117, %s118
      %p130 = scmp.eq.s32.totalorder %s24, 1
      %p131 = por %p129, %p130
      %p133 = scmp.ne.s32.totalorder %s118, %s132
      %p134 = scmp.eq.s32.totalorder %s24, 0
      %p135 = por %p133, %p134
      %s137 = sadd.s32 %s136, 1
      %p140 = scmp.eq.s32.totalorder %s18, 1
      %p141 = scmp.ne.s32.totalorder %s136, %s138
      %p142 = scmp.eq.s32.totalorder %s18, 0
      %p143 = por %p141, %p142
      %p144 = scmp.ne.s32.totalorder %s136, %s138
      %p145 = scmp.eq.s32.totalorder %s23, 1
      %p146 = por %p144, %p145
      %p147 = scmp.ne.s32.totalorder %s138, %s139
      %p148 = scmp.eq.s32.totalorder %s23, 0
      %p149 = por %p147, %p148
      %p150 = scmp.ne.s32.totalorder %s138, %s139
      %p151 = scmp.eq.s32.totalorder %s24, 1
      %p152 = por %p150, %p151
      %p154 = scmp.ne.s32.totalorder %s139, %s153
      %p155 = scmp.eq.s32.totalorder %s24, 0
      %p156 = por %p154, %p155
      %s158 = sadd.s32 %s157, 1
      %p161 = scmp.eq.s32.totalorder %s18, 1
      %p162 = scmp.ne.s32.totalorder %s157, %s159
      %p163 = scmp.eq.s32.totalorder %s18, 0
      %p164 = por %p162, %p163
      %p165 = scmp.ne.s32.totalorder %s157, %s159
      %p166 = scmp.eq.s32.totalorder %s23, 1
      %p167 = por %p165, %p166
      %p168 = scmp.ne.s32.totalorder %s159, %s160
      %p169 = scmp.eq.s32.totalorder %s23, 0
      %p170 = por %p168, %p169
      %p171 = scmp.ne.s32.totalorder %s159, %s160
      %p172 = scmp.eq.s32.totalorder %s24, 1
      %p173 = por %p171, %p172
      %p175 = scmp.ne.s32.totalorder %s160, %s174
      %p176 = scmp.eq.s32.totalorder %s24, 0
      %p177 = por %p175, %p176
      %s178 = ssub.s32 %s18, %s25
      %p179 = scmp.eq.s32.totalorder %s178, 0
      %s181 = sadd.s32 %s180, 1
      %s182 = scalar_select %p179, %s180, %s181
      %p185 = pneg %p179
      %p186 = scmp.eq.s32.totalorder %s18, 1
      %p187 = por %p185, %p186
      %p188 = scmp.ne.s32.totalorder %s180, %s183
      %p189 = scmp.eq.s32.totalorder %s18, 0
      %p190 = por %p188, %p189
      %p191 = scmp.ne.s32.totalorder %s180, %s183
      %p192 = scmp.eq.s32.totalorder %s23, 1
      %p193 = por %p191, %p192
      %p194 = scmp.ne.s32.totalorder %s183, %s184
      %p195 = scmp.eq.s32.totalorder %s23, 0
      %p196 = por %p194, %p195
      %p197 = scmp.ne.s32.totalorder %s183, %s184
      %p198 = scmp.eq.s32.totalorder %s24, 1
      %p199 = por %p197, %p198
      %p201 = scmp.ne.s32.totalorder %s184, %s200
      %p202 = scmp.eq.s32.totalorder %s24, 0
      %p203 = por %p201, %p202
      %p204 = scmp.le.s32.totalorder 1, %s18
      %p205 = scmp.lt.s32.totalorder %s18, 3
      %p206 = pnand %p204, %p205
      %p207 = pneg %p206
      // Predicated region
      $region9: #{tpu_custom_call.1} parent=5 // pred_check
        _
      $region10: #{tpu_custom_call.1} parent=5 // pred_check_branch
        %209 = sbr.rel (%p206) target = $region12
      $region11: #{tpu_custom_call.1} parent=5 // pred_region
        %s210 = ssub.s32 %s18, 1
        // Predicated region
        $region13: #{tpu_custom_call.1} parent=11 // pred_check
          %p211 = pneg %p65
        $region14: #{tpu_custom_call.1} parent=11 // pred_check_branch
          %213 = sbr.rel (%p211) target = $region16
        $region15: #{tpu_custom_call.1} parent=11 // pred_region
          _
        $region16: #{tpu_custom_call.1} parent=11 // pred_fallthru
          _
        // Predicated region
        $region17: #{tpu_custom_call.1} parent=11 // pred_check
          %p214 = pneg %p86
        $region18: #{tpu_custom_call.1} parent=11 // pred_check_branch
          %216 = sbr.rel (%p214) target = $region20
        $region19: #{tpu_custom_call.1} parent=11 // pred_region
          _
        $region20: #{tpu_custom_call.1} parent=11 // pred_fallthru
          _
        // Predicated region
        $region21: #{tpu_custom_call.1} parent=11 // pred_check
          %p217 = pneg %p107
        $region22: #{tpu_custom_call.1} parent=11 // pred_check_branch
          %219 = sbr.rel (%p217) target = $region24
        $region23: #{tpu_custom_call.1} parent=11 // pred_region
          _
        $region24: #{tpu_custom_call.1} parent=11 // pred_fallthru
          _
        // Predicated region
        $region25: #{tpu_custom_call.1} parent=11 // pred_check
          %p220 = pneg %p128
        $region26: #{tpu_custom_call.1} parent=11 // pred_check_branch
          %222 = sbr.rel (%p220) target = $region28
        $region27: #{tpu_custom_call.1} parent=11 // pred_region
          _
        $region28: #{tpu_custom_call.1} parent=11 // pred_fallthru
          _
        // Predicated region
        $region29: #{tpu_custom_call.1} parent=11 // pred_check
          %p223 = pneg %p149
        $region30: #{tpu_custom_call.1} parent=11 // pred_check_branch
          %225 = sbr.rel (%p223) target = $region32
        $region31: #{tpu_custom_call.1} parent=11 // pred_region
          _
        $region32: #{tpu_custom_call.1} parent=11 // pred_fallthru
          _
        // Predicated region
        $region33: #{tpu_custom_call.1} parent=11 // pred_check
          %p226 = pneg %p170
        $region34: #{tpu_custom_call.1} parent=11 // pred_check_branch
          %228 = sbr.rel (%p226) target = $region36
        $region35: #{tpu_custom_call.1} parent=11 // pred_region
          _
        $region36: #{tpu_custom_call.1} parent=11 // pred_fallthru
          _
      $region12: #{tpu_custom_call.1} parent=5 // pred_fallthru
        _
      %p229 = scmp.lt.s32.totalorder %s18, 2
      // Predicated region
      $region37: #{tpu_custom_call.1} parent=5 // pred_check
        %p230 = pneg %p229
      $region38: #{tpu_custom_call.1} parent=5 // pred_check_branch
        %232 = sbr.rel (%p230) target = $region40
      $region39: #{tpu_custom_call.1} parent=5 // pred_region
        // Predicated region
        $region41: #{tpu_custom_call.1} parent=39 // pred_check
          %p233 = pneg %p38
        $region42: #{tpu_custom_call.1} parent=39 // pred_check_branch
          %235 = sbr.rel (%p233) target = $region44
        $region43: #{tpu_custom_call.1} parent=39 // pred_region
          %p236 = scmp.lt.s32.totalorder %s18, 1
          %s237 = scalar_select %p236, %s18, 1
          %s238 = smul.addr %s237, 34
          %s239 = smul.addr %s238, 8
          %s240 = scalar_lea.vmem %s0, %s239
        $region44: #{tpu_custom_call.1} parent=39 // pred_fallthru
          _
      $region40: #{tpu_custom_call.1} parent=5 // pred_fallthru
        _
      %p241 = scmp.le.s32.totalorder 1, %s18
      %p242 = scmp.lt.s32.totalorder %s18, 3
      %p243 = pnand %p241, %p242
      %p244 = pneg %p243
      // Predicated region
      $region45: #{tpu_custom_call.1} parent=5 // pred_check
        _
      $region46: #{tpu_custom_call.1} parent=5 // pred_check_branch
        %246 = sbr.rel (%p243) target = $region48
      $region47: #{tpu_custom_call.1} parent=5 // pred_region
        %s247 = ssub.s32 %s18, 1
        %p248 = scmp.lt.s32.totalorder %s23, 1
        %s249 = scalar_select %p248, %s23, 1
        %s250 = smul.addr %s249, 34
        %s251 = smul.addr %s250, 8
        %s252 = scalar_lea.vmem %s0, %s251
        %p253 = pneg %p44
        %p254 = pneg %p41
        %p255 = pneg %p65
        %p256 = pneg %p62
        %p257 = pneg %p86
        %p258 = pneg %p83
        %p259 = pneg %p107
        %p260 = pneg %p104
        %p261 = pneg %p128
        %p262 = pneg %p125
        %p263 = pneg %p149
        %p264 = pneg %p146
        %p265 = pneg %p170
        %p266 = pneg %p167
        %p267 = pneg %p196
        %p268 = pneg %p193
        %s269 = sand.u32 %s183, 1
        %s270 = scalar_lea.sflag [#allocation4], %s269
        %s271 = sand.u32 %s183, 1
        %s272 = smul.addr %s271, 256
        %s273 = scalar_lea.vmem [#allocation3], %s272
        %p274 = scmp.lt.s32.totalorder %s23, 1
        %s275 = scalar_select %p274, %s23, 1
        %s276 = smul.addr %s275, 34
        %s277 = smul.addr %s276, 8
        %s278 = scalar_lea.vmem %s0, %s277
        %v280 = vld [vmem:[%s278] sm:$0xff]
        %v281 = vld [vmem:[%s278 + $0x8] sm:$0xff]
        %v282 = vld [vmem:[%s278 + $0x10] sm:$0xff]
        %v283 = vld [vmem:[%s278 + $0x18] sm:$0xff]
        %v284 = vld [vmem:[%s278 + $0x20] sm:$0xff]
        %v285 = vld [vmem:[%s278 + $0x28] sm:$0xff]
        %v286 = vld [vmem:[%s278 + $0x30] sm:$0xff]
        %v287 = vld [vmem:[%s278 + $0x38] sm:$0xff]
        %v288 = vld [vmem:[%s278 + $0x40] sm:$0xff]
        %v289 = vld [vmem:[%s278 + $0x48] sm:$0xff]
        %v290 = vld [vmem:[%s278 + $0x50] sm:$0xff]
        %v291 = vld [vmem:[%s278 + $0x58] sm:$0xff]
        %v292 = vld [vmem:[%s278 + $0x60] sm:$0xff]
        %v293 = vld [vmem:[%s278 + $0x68] sm:$0xff]
        %v294 = vld [vmem:[%s278 + $0x70] sm:$0xff]
        %v295 = vld [vmem:[%s278 + $0x78] sm:$0xff]
        %v296 = vld [vmem:[%s278 + $0x80] sm:$0xff]
        %v297 = vld [vmem:[%s278 + $0x88] sm:$0xff]
        %v298 = vld [vmem:[%s278 + $0x90] sm:$0xff]
        %v299 = vld [vmem:[%s278 + $0x98] sm:$0xff]
        %v300 = vld [vmem:[%s278 + $0xa0] sm:$0xff]
        %v301 = vld [vmem:[%s278 + $0xa8] sm:$0xff]
        %v302 = vld [vmem:[%s278 + $0xb0] sm:$0xff]
        %v303 = vld [vmem:[%s278 + $0xb8] sm:$0xff]
        %v304 = vld [vmem:[%s278 + $0xc0] sm:$0xff]
        %v305 = vld [vmem:[%s278 + $0xc8] sm:$0xff]
        %v306 = vld [vmem:[%s278 + $0xd0] sm:$0xff]
        %v307 = vld [vmem:[%s278 + $0xd8] sm:$0xff]
        %v308 = vld [vmem:[%s278 + $0xe0] sm:$0xff]
        %v309 = vld [vmem:[%s278 + $0xe8] sm:$0xff]
        %v310 = vld [vmem:[%s278 + $0xf0] sm:$0xff]
        %v311 = vld [vmem:[%s278 + $0xf8] sm:$0xff]
        %v312 = vld [vmem:[%s278 + $0x100] sm:$0xff]
        %v313 = vld [vmem:[%s278 + $0x108] sm:$0xff]
        %v314 = vld [vmem:[%s2] sm:$0xf]
        %v315 = vld [vmem:[%s2 + $0x4] sm:$0xf]
        %v316 = vld [vmem:[%s3] sm:$0xf]
        %v317 = vpack.c.bf16 %v281, %v280
        %v318 = vpack.c.bf16 %v283, %v282
        %v319 = vpack.c.bf16 %v285, %v284
        %v320 = vpack.c.bf16 %v287, %v286
        %v321 = vpack.c.bf16 %v289, %v288
        %v322 = vpack.c.bf16 %v291, %v290
        %v323 = vpack.c.bf16 %v293, %v292
        %v324 = vpack.c.bf16 %v295, %v294
        %v325 = vpack.c.bf16 %v297, %v296
        %v326 = vpack.c.bf16 %v299, %v298
        %v327 = vpack.c.bf16 %v301, %v300
        %v328 = vpack.c.bf16 %v303, %v302
        %v329 = vpack.c.bf16 %v305, %v304
        %v330 = vpack.c.bf16 %v307, %v306
        %v331 = vpack.c.bf16 %v309, %v308
        %v332 = vpack.c.bf16 %v311, %v310
        %v333 = vpack.c.bf16 %v313, %v312
        %v336 = vunpack.c.l.b16 %v314
        %v337 = vunpack.c.l.b16 %v315
        %v338 = vpack.c.b16 %v337, %v336
        %vm340 = vcmask 130048
        %v342 = vsel %vm340, %v317, 0
        %v345 = vsel %vm340, %v318, 0
        %v348 = vsel %vm340, %v319, 0
        %v351 = vsel %vm340, %v320, 0
        %v354 = vsel %vm340, %v321, 0
        %v357 = vsel %vm340, %v322, 0
        %v360 = vsel %vm340, %v323, 0
        %v363 = vsel %vm340, %v324, 0
        %v366 = vsel %vm340, %v325, 0
        %v369 = vsel %vm340, %v326, 0
        %v372 = vsel %vm340, %v327, 0
        %v375 = vsel %vm340, %v328, 0
        %v378 = vsel %vm340, %v329, 0
        %v381 = vsel %vm340, %v330, 0
        %v384 = vsel %vm340, %v331, 0
        %v387 = vsel %vm340, %v332, 0
        %v390 = vsel %vm340, %v333, 0
        %392 = vmatprep.subr.bf16.mxu0 0
        %393 = vmatpush1.bf16.msra.mxu0 0
        %394 = vmatprep.subr.bf16.mxu0 0
        %395 = vmatpush1.bf16.msra.mxu0 0
        %396 = vmatprep.subr.bf16.mxu0 0
        %397 = vmatpush1.bf16.msra.mxu0 0
        %398 = vmatprep.subr.bf16.mxu0 0
        %399 = vmatpush1.bf16.msra.mxu0 0
        %400 = vmatprep.subr.bf16.mxu0 0
        %401 = vmatpush1.bf16.msra.mxu0 0
        %402 = vmatprep.subr.bf16.mxu0 0
        %403 = vmatpush1.bf16.msra.mxu0 0
        %404 = vmatprep.subr.bf16.mxu0 0
        %405 = vmatpush1.bf16.msra.mxu0 0
        %406 = vmatprep.subr.bf16.mxu0 0
        %407 = vmatpush1.bf16.msra.mxu0 %v338
        %408 = vmatprep.subr.bf16.mxu0 0
        %409 = vmatpush2.bf16.msra.mxu0 0
        %410 = vmatprep.subr.bf16.mxu0 0
        %411 = vmatpush2.bf16.msra.mxu0 0
        %412 = vmatprep.subr.bf16.mxu0 0
        %413 = vmatpush2.bf16.msra.mxu0 0
        %414 = vmatprep.subr.bf16.mxu0 0
        %415 = vmatpush2.bf16.msra.mxu0 0
        %416 = vmatprep.subr.bf16.mxu0 0
        %417 = vmatpush2.bf16.msra.mxu0 0
        %418 = vmatprep.subr.bf16.mxu0 0
        %419 = vmatpush2.bf16.msra.mxu0 0
        %420 = vmatprep.subr.bf16.mxu0 0
        %421 = vmatpush2.bf16.msra.mxu0 0
        %422 = vmatprep.subr.bf16.mxu0 0
        %423 = vmatpush2.bf16.msra.mxu0 0
        %424 = vmatprep.mubr.bf16.mxu0 0
        %425 = vmatmul.mubr.bf16.gmra.mxu0 %v342
        %v426 = vpop.f32.mrf.mxu0
        %v427 = vadd.f32 0.0, %v426
        %v428 = vpop.f32.mrf.mxu0
        %v429 = vpop.f32.mrf.mxu0
        %v430 = vadd.f32 0.0, %v429
        %v431 = vpop.f32.mrf.mxu0
        %432 = vmatprep.mubr.bf16.mxu0 0
        %433 = vmatmul.mubr.bf16.gmra.mxu0 %v345
        %v434 = vpop.f32.mrf.mxu0
        %v435 = vadd.f32 0.0, %v434
        %v436 = vpop.f32.mrf.mxu0
        %v437 = vpop.f32.mrf.mxu0
        %v438 = vadd.f32 0.0, %v437
        %v439 = vpop.f32.mrf.mxu0
        %440 = vmatprep.mubr.bf16.mxu0 0
        %441 = vmatmul.mubr.bf16.gmra.mxu0 %v348
        %v442 = vpop.f32.mrf.mxu0
        %v443 = vadd.f32 0.0, %v442
        %v444 = vpop.f32.mrf.mxu0
        %v445 = vpop.f32.mrf.mxu0
        %v446 = vadd.f32 0.0, %v445
        %v447 = vpop.f32.mrf.mxu0
        %448 = vmatprep.mubr.bf16.mxu0 0
        %449 = vmatmul.mubr.bf16.gmra.mxu0 %v351
        %v450 = vpop.f32.mrf.mxu0
        %v451 = vadd.f32 0.0, %v450
        %v452 = vpop.f32.mrf.mxu0
        %v453 = vpop.f32.mrf.mxu0
        %v454 = vadd.f32 0.0, %v453
        %v455 = vpop.f32.mrf.mxu0
        %456 = vmatprep.mubr.bf16.mxu0 0
        %457 = vmatmul.mubr.bf16.gmra.mxu0 %v354
        %v458 = vpop.f32.mrf.mxu0
        %v459 = vadd.f32 0.0, %v458
        %v460 = vpop.f32.mrf.mxu0
        %v461 = vpop.f32.mrf.mxu0
        %v462 = vadd.f32 0.0, %v461
        %v463 = vpop.f32.mrf.mxu0
        %464 = vmatprep.mubr.bf16.mxu0 0
        %465 = vmatmul.mubr.bf16.gmra.mxu0 %v357
        %v466 = vpop.f32.mrf.mxu0
        %v467 = vadd.f32 0.0, %v466
        %v468 = vpop.f32.mrf.mxu0
        %v469 = vpop.f32.mrf.mxu0
        %v470 = vadd.f32 0.0, %v469
        %v471 = vpop.f32.mrf.mxu0
        %472 = vmatprep.mubr.bf16.mxu0 0
        %473 = vmatmul.mubr.bf16.gmra.mxu0 %v360
        %v474 = vpop.f32.mrf.mxu0
        %v475 = vadd.f32 0.0, %v474
        %v476 = vpop.f32.mrf.mxu0
        %v477 = vpop.f32.mrf.mxu0
        %v478 = vadd.f32 0.0, %v477
        %v479 = vpop.f32.mrf.mxu0
        %480 = vmatprep.mubr.bf16.mxu0 0
        %481 = vmatmul.mubr.bf16.gmra.mxu0 %v363
        %v482 = vpop.f32.mrf.mxu0
        %v483 = vadd.f32 0.0, %v482
        %v484 = vpop.f32.mrf.mxu0
        %v485 = vpop.f32.mrf.mxu0
        %v486 = vadd.f32 0.0, %v485
        %v487 = vpop.f32.mrf.mxu0
        %488 = vmatprep.mubr.bf16.mxu0 0
        %489 = vmatmul.mubr.bf16.gmra.mxu0 %v366
        %v490 = vpop.f32.mrf.mxu0
        %v491 = vadd.f32 0.0, %v490
        %v492 = vpop.f32.mrf.mxu0
        %v493 = vpop.f32.mrf.mxu0
        %v494 = vadd.f32 0.0, %v493
        %v495 = vpop.f32.mrf.mxu0
        %496 = vmatprep.mubr.bf16.mxu0 0
        %497 = vmatmul.mubr.bf16.gmra.mxu0 %v369
        %v498 = vpop.f32.mrf.mxu0
        %v499 = vadd.f32 0.0, %v498
        %v500 = vpop.f32.mrf.mxu0
        %v501 = vpop.f32.mrf.mxu0
        %v502 = vadd.f32 0.0, %v501
        %v503 = vpop.f32.mrf.mxu0
        %504 = vmatprep.mubr.bf16.mxu0 0
        %505 = vmatmul.mubr.bf16.gmra.mxu0 %v372
        %v506 = vpop.f32.mrf.mxu0
        %v507 = vadd.f32 0.0, %v506
        %v508 = vpop.f32.mrf.mxu0
        %v509 = vpop.f32.mrf.mxu0
        %v510 = vadd.f32 0.0, %v509
        %v511 = vpop.f32.mrf.mxu0
        %512 = vmatprep.mubr.bf16.mxu0 0
        %513 = vmatmul.mubr.bf16.gmra.mxu0 %v375
        %v514 = vpop.f32.mrf.mxu0
        %v515 = vadd.f32 0.0, %v514
        %v516 = vpop.f32.mrf.mxu0
        %v517 = vpop.f32.mrf.mxu0
        %v518 = vadd.f32 0.0, %v517
        %v519 = vpop.f32.mrf.mxu0
        %520 = vmatprep.mubr.bf16.mxu0 0
        %521 = vmatmul.mubr.bf16.gmra.mxu0 %v378
        %v522 = vpop.f32.mrf.mxu0
        %v523 = vadd.f32 0.0, %v522
        %v524 = vpop.f32.mrf.mxu0
        %v525 = vpop.f32.mrf.mxu0
        %v526 = vadd.f32 0.0, %v525
        %v527 = vpop.f32.mrf.mxu0
        %528 = vmatprep.mubr.bf16.mxu0 0
        %529 = vmatmul.mubr.bf16.gmra.mxu0 %v381
        %v530 = vpop.f32.mrf.mxu0
        %v531 = vadd.f32 0.0, %v530
        %v532 = vpop.f32.mrf.mxu0
        %v533 = vpop.f32.mrf.mxu0
        %v534 = vadd.f32 0.0, %v533
        %v535 = vpop.f32.mrf.mxu0
        %536 = vmatprep.mubr.bf16.mxu0 0
        %537 = vmatmul.mubr.bf16.gmra.mxu0 %v384
        %v538 = vpop.f32.mrf.mxu0
        %v539 = vadd.f32 0.0, %v538
        %v540 = vpop.f32.mrf.mxu0
        %v541 = vpop.f32.mrf.mxu0
        %v542 = vadd.f32 0.0, %v541
        %v543 = vpop.f32.mrf.mxu0
        %544 = vmatprep.mubr.bf16.mxu0 0
        %545 = vmatmul.mubr.bf16.gmra.mxu0 %v387
        %v546 = vpop.f32.mrf.mxu0
        %v547 = vadd.f32 0.0, %v546
        %v548 = vpop.f32.mrf.mxu0
        %v549 = vpop.f32.mrf.mxu0
        %v550 = vadd.f32 0.0, %v549
        %v551 = vpop.f32.mrf.mxu0
        %552 = vmatprep.mubr.bf16.mxu0 0
        %553 = vmatmul.mubr.bf16.gmra.mxu0 %v390
        %v554 = vpop.f32.mrf.mxu0
        %v555 = vadd.f32 0.0, %v554
        %v556 = vpop.f32.mrf.mxu0
        %v557 = vpop.f32.mrf.mxu0
        %v558 = vadd.f32 0.0, %v557
        %v559 = vpop.f32.mrf.mxu0
        %560 = vdwg.mxu0
        %v561 = vpack.c.bf16 %v430, %v427
        %v562 = vpack.c.bf16 %v438, %v435
        %v563 = vpack.c.bf16 %v446, %v443
        %v564 = vpack.c.bf16 %v454, %v451
        %v565 = vpack.c.bf16 %v462, %v459
        %v566 = vpack.c.bf16 %v470, %v467
        %v567 = vpack.c.bf16 %v478, %v475
        %v568 = vpack.c.bf16 %v486, %v483
        %v569 = vpack.c.bf16 %v494, %v491
        %v570 = vpack.c.bf16 %v502, %v499
        %v571 = vpack.c.bf16 %v510, %v507
        %v572 = vpack.c.bf16 %v518, %v515
        %v573 = vpack.c.bf16 %v526, %v523
        %v574 = vpack.c.bf16 %v534, %v531
        %v575 = vpack.c.bf16 %v542, %v539
        %v576 = vpack.c.bf16 %v550, %v547
        %v577 = vpack.c.bf16 %v558, %v555
        %v579 = vsel %vm340, %v316, 0
        %581 = vmatprep.subr.bf16.mxu0 0
        %582 = vmatpush1.bf16.msra.mxu0 0
        %583 = vmatprep.subr.bf16.mxu0 0
        %584 = vmatpush1.bf16.msra.mxu0 0
        %585 = vmatprep.subr.bf16.mxu0 0
        %586 = vmatpush1.bf16.msra.mxu0 0
        %587 = vmatprep.subr.bf16.mxu0 0
        %588 = vmatpush1.bf16.msra.mxu0 0
        %589 = vmatprep.subr.bf16.mxu0 0
        %590 = vmatpush1.bf16.msra.mxu0 0
        %591 = vmatprep.subr.bf16.mxu0 0
        %592 = vmatpush1.bf16.msra.mxu0 0
        %593 = vmatprep.subr.bf16.mxu0 0
        %594 = vmatpush1.bf16.msra.mxu0 0
        %595 = vmatprep.subr.bf16.mxu0 0
        %596 = vmatpush1.bf16.msra.mxu0 %v561
        %597 = vmatprep.subr.bf16.mxu0 0
        %598 = vmatpush2.bf16.msra.mxu0 0
        %599 = vmatprep.subr.bf16.mxu0 0
        %600 = vmatpush2.bf16.msra.mxu0 0
        %601 = vmatprep.subr.bf16.mxu0 0
        %602 = vmatpush2.bf16.msra.mxu0 0
        %603 = vmatprep.subr.bf16.mxu0 0
        %604 = vmatpush2.bf16.msra.mxu0 0
        %605 = vmatprep.subr.bf16.mxu0 0
        %606 = vmatpush2.bf16.msra.mxu0 0
        %607 = vmatprep.subr.bf16.mxu0 0
        %608 = vmatpush2.bf16.msra.mxu0 0
        %609 = vmatprep.subr.bf16.mxu0 0
        %610 = vmatpush2.bf16.msra.mxu0 0
        %611 = vmatprep.subr.bf16.mxu0 0
        %612 = vmatpush2.bf16.msra.mxu0 0
        %613 = vmatprep.mubr.bf16.mxu0 0
        %614 = vmatmul.mubr.bf16.gmra.mxu0 %v579
        %v615 = vpop.f32.mrf.mxu0
        %v616 = vadd.f32 0.0, %v615
        %v617 = vpop.f32.mrf.mxu0
        %v618 = vpop.f32.mrf.mxu0
        %v619 = vpop.f32.mrf.mxu0
        %620 = vdwg.mxu0
        %621 = vmatprep.subr.bf16.mxu0 0
        %622 = vmatpush1.bf16.msra.mxu0 0
        %623 = vmatprep.subr.bf16.mxu0 0
        %624 = vmatpush1.bf16.msra.mxu0 0
        %625 = vmatprep.subr.bf16.mxu0 0
        %626 = vmatpush1.bf16.msra.mxu0 0
        %627 = vmatprep.subr.bf16.mxu0 0
        %628 = vmatpush1.bf16.msra.mxu0 0
        %629 = vmatprep.subr.bf16.mxu0 0
        %630 = vmatpush1.bf16.msra.mxu0 0
        %631 = vmatprep.subr.bf16.mxu0 0
        %632 = vmatpush1.bf16.msra.mxu0 0
        %633 = vmatprep.subr.bf16.mxu0 0
        %634 = vmatpush1.bf16.msra.mxu0 0
        %635 = vmatprep.subr.bf16.mxu0 0
        %636 = vmatpush1.bf16.msra.mxu0 %v562
        %637 = vmatprep.subr.bf16.mxu0 0
        %638 = vmatpush2.bf16.msra.mxu0 0
        %639 = vmatprep.subr.bf16.mxu0 0
        %640 = vmatpush2.bf16.msra.mxu0 0
        %641 = vmatprep.subr.bf16.mxu0 0
        %642 = vmatpush2.bf16.msra.mxu0 0
        %643 = vmatprep.subr.bf16.mxu0 0
        %644 = vmatpush2.bf16.msra.mxu0 0
        %645 = vmatprep.subr.bf16.mxu0 0
        %646 = vmatpush2.bf16.msra.mxu0 0
        %647 = vmatprep.subr.bf16.mxu0 0
        %648 = vmatpush2.bf16.msra.mxu0 0
        %649 = vmatprep.subr.bf16.mxu0 0
        %650 = vmatpush2.bf16.msra.mxu0 0
        %651 = vmatprep.subr.bf16.mxu0 0
        %652 = vmatpush2.bf16.msra.mxu0 0
        %653 = vmatprep.mubr.bf16.mxu0 0
        %654 = vmatmul.mubr.bf16.gmra.mxu0 %v579
        %v655 = vpop.f32.mrf.mxu0
        %v656 = vadd.f32 0.0, %v655
        %v657 = vpop.f32.mrf.mxu0
        %v658 = vpop.f32.mrf.mxu0
        %v659 = vpop.f32.mrf.mxu0
        %660 = vdwg.mxu0
        %661 = vmatprep.subr.bf16.mxu0 0
        %662 = vmatpush1.bf16.msra.mxu0 0
        %663 = vmatprep.subr.bf16.mxu0 0
        %664 = vmatpush1.bf16.msra.mxu0 0
        %665 = vmatprep.subr.bf16.mxu0 0
        %666 = vmatpush1.bf16.msra.mxu0 0
        %667 = vmatprep.subr.bf16.mxu0 0
        %668 = vmatpush1.bf16.msra.mxu0 0
        %669 = vmatprep.subr.bf16.mxu0 0
        %670 = vmatpush1.bf16.msra.mxu0 0
        %671 = vmatprep.subr.bf16.mxu0 0
        %672 = vmatpush1.bf16.msra.mxu0 0
        %673 = vmatprep.subr.bf16.mxu0 0
        %674 = vmatpush1.bf16.msra.mxu0 0
        %675 = vmatprep.subr.bf16.mxu0 0
        %676 = vmatpush1.bf16.msra.mxu0 %v563
        %677 = vmatprep.subr.bf16.mxu0 0
        %678 = vmatpush2.bf16.msra.mxu0 0
        %679 = vmatprep.subr.bf16.mxu0 0
        %680 = vmatpush2.bf16.msra.mxu0 0
        %681 = vmatprep.subr.bf16.mxu0 0
        %682 = vmatpush2.bf16.msra.mxu0 0
        %683 = vmatprep.subr.bf16.mxu0 0
        %684 = vmatpush2.bf16.msra.mxu0 0
        %685 = vmatprep.subr.bf16.mxu0 0
        %686 = vmatpush2.bf16.msra.mxu0 0
        %687 = vmatprep.subr.bf16.mxu0 0
        %688 = vmatpush2.bf16.msra.mxu0 0
        %689 = vmatprep.subr.bf16.mxu0 0
        %690 = vmatpush2.bf16.msra.mxu0 0
        %691 = vmatprep.subr.bf16.mxu0 0
        %692 = vmatpush2.bf16.msra.mxu0 0
        %693 = vmatprep.mubr.bf16.mxu0 0
        %694 = vmatmul.mubr.bf16.gmra.mxu0 %v579
        %v695 = vpop.f32.mrf.mxu0
        %v696 = vadd.f32 0.0, %v695
        %v697 = vpop.f32.mrf.mxu0
        %v698 = vpop.f32.mrf.mxu0
        %v699 = vpop.f32.mrf.mxu0
        %700 = vdwg.mxu0
        %701 = vmatprep.subr.bf16.mxu0 0
        %702 = vmatpush1.bf16.msra.mxu0 0
        %703 = vmatprep.subr.bf16.mxu0 0
        %704 = vmatpush1.bf16.msra.mxu0 0
        %705 = vmatprep.subr.bf16.mxu0 0
        %706 = vmatpush1.bf16.msra.mxu0 0
        %707 = vmatprep.subr.bf16.mxu0 0
        %708 = vmatpush1.bf16.msra.mxu0 0
        %709 = vmatprep.subr.bf16.mxu0 0
        %710 = vmatpush1.bf16.msra.mxu0 0
        %711 = vmatprep.subr.bf16.mxu0 0
        %712 = vmatpush1.bf16.msra.mxu0 0
        %713 = vmatprep.subr.bf16.mxu0 0
        %714 = vmatpush1.bf16.msra.mxu0 0
        %715 = vmatprep.subr.bf16.mxu0 0
        %716 = vmatpush1.bf16.msra.mxu0 %v564
        %717 = vmatprep.subr.bf16.mxu0 0
        %718 = vmatpush2.bf16.msra.mxu0 0
        %719 = vmatprep.subr.bf16.mxu0 0
        %720 = vmatpush2.bf16.msra.mxu0 0
        %721 = vmatprep.subr.bf16.mxu0 0
        %722 = vmatpush2.bf16.msra.mxu0 0
        %723 = vmatprep.subr.bf16.mxu0 0
        %724 = vmatpush2.bf16.msra.mxu0 0
        %725 = vmatprep.subr.bf16.mxu0 0
        %726 = vmatpush2.bf16.msra.mxu0 0
        %727 = vmatprep.subr.bf16.mxu0 0
        %728 = vmatpush2.bf16.msra.mxu0 0
        %729 = vmatprep.subr.bf16.mxu0 0
        %730 = vmatpush2.bf16.msra.mxu0 0
        %731 = vmatprep.subr.bf16.mxu0 0
        %732 = vmatpush2.bf16.msra.mxu0 0
        %733 = vmatprep.mubr.bf16.mxu0 0
        %734 = vmatmul.mubr.bf16.gmra.mxu0 %v579
        %v735 = vpop.f32.mrf.mxu0
        %v736 = vadd.f32 0.0, %v735
        %v737 = vpop.f32.mrf.mxu0
        %v738 = vpop.f32.mrf.mxu0
        %v739 = vpop.f32.mrf.mxu0
        %740 = vdwg.mxu0
        %741 = vmatprep.subr.bf16.mxu0 0
        %742 = vmatpush1.bf16.msra.mxu0 0
        %743 = vmatprep.subr.bf16.mxu0 0
        %744 = vmatpush1.bf16.msra.mxu0 0
        %745 = vmatprep.subr.bf16.mxu0 0
        %746 = vmatpush1.bf16.msra.mxu0 0
        %747 = vmatprep.subr.bf16.mxu0 0
        %748 = vmatpush1.bf16.msra.mxu0 0
        %749 = vmatprep.subr.bf16.mxu0 0
        %750 = vmatpush1.bf16.msra.mxu0 0
        %751 = vmatprep.subr.bf16.mxu0 0
        %752 = vmatpush1.bf16.msra.mxu0 0
        %753 = vmatprep.subr.bf16.mxu0 0
        %754 = vmatpush1.bf16.msra.mxu0 0
        %755 = vmatprep.subr.bf16.mxu0 0
        %756 = vmatpush1.bf16.msra.mxu0 %v565
        %757 = vmatprep.subr.bf16.mxu0 0
        %758 = vmatpush2.bf16.msra.mxu0 0
        %759 = vmatprep.subr.bf16.mxu0 0
        %760 = vmatpush2.bf16.msra.mxu0 0
        %761 = vmatprep.subr.bf16.mxu0 0
        %762 = vmatpush2.bf16.msra.mxu0 0
        %763 = vmatprep.subr.bf16.mxu0 0
        %764 = vmatpush2.bf16.msra.mxu0 0
        %765 = vmatprep.subr.bf16.mxu0 0
        %766 = vmatpush2.bf16.msra.mxu0 0
        %767 = vmatprep.subr.bf16.mxu0 0
        %768 = vmatpush2.bf16.msra.mxu0 0
        %769 = vmatprep.subr.bf16.mxu0 0
        %770 = vmatpush2.bf16.msra.mxu0 0
        %771 = vmatprep.subr.bf16.mxu0 0
        %772 = vmatpush2.bf16.msra.mxu0 0
        %773 = vmatprep.mubr.bf16.mxu0 0
        %774 = vmatmul.mubr.bf16.gmra.mxu0 %v579
        %v775 = vpop.f32.mrf.mxu0
        %v776 = vadd.f32 0.0, %v775
        %v777 = vpop.f32.mrf.mxu0
        %v778 = vpop.f32.mrf.mxu0
        %v779 = vpop.f32.mrf.mxu0
        %780 = vdwg.mxu0
        %781 = vmatprep.subr.bf16.mxu0 0
        %782 = vmatpush1.bf16.msra.mxu0 0
        %783 = vmatprep.subr.bf16.mxu0 0
        %784 = vmatpush1.bf16.msra.mxu0 0
        %785 = vmatprep.subr.bf16.mxu0 0
        %786 = vmatpush1.bf16.msra.mxu0 0
        %787 = vmatprep.subr.bf16.mxu0 0
        %788 = vmatpush1.bf16.msra.mxu0 0
        %789 = vmatprep.subr.bf16.mxu0 0
        %790 = vmatpush1.bf16.msra.mxu0 0
        %791 = vmatprep.subr.bf16.mxu0 0
        %792 = vmatpush1.bf16.msra.mxu0 0
        %793 = vmatprep.subr.bf16.mxu0 0
        %794 = vmatpush1.bf16.msra.mxu0 0
        %795 = vmatprep.subr.bf16.mxu0 0
        %796 = vmatpush1.bf16.msra.mxu0 %v566
        %797 = vmatprep.subr.bf16.mxu0 0
        %798 = vmatpush2.bf16.msra.mxu0 0
        %799 = vmatprep.subr.bf16.mxu0 0
        %800 = vmatpush2.bf16.msra.mxu0 0
        %801 = vmatprep.subr.bf16.mxu0 0
        %802 = vmatpush2.bf16.msra.mxu0 0
        %803 = vmatprep.subr.bf16.mxu0 0
        %804 = vmatpush2.bf16.msra.mxu0 0
        %805 = vmatprep.subr.bf16.mxu0 0
        %806 = vmatpush2.bf16.msra.mxu0 0
        %807 = vmatprep.subr.bf16.mxu0 0
        %808 = vmatpush2.bf16.msra.mxu0 0
        %809 = vmatprep.subr.bf16.mxu0 0
        %810 = vmatpush2.bf16.msra.mxu0 0
        %811 = vmatprep.subr.bf16.mxu0 0
        %812 = vmatpush2.bf16.msra.mxu0 0
        %813 = vmatprep.mubr.bf16.mxu0 0
        %814 = vmatmul.mubr.bf16.gmra.mxu0 %v579
        %v815 = vpop.f32.mrf.mxu0
        %v816 = vadd.f32 0.0, %v815
        %v817 = vpop.f32.mrf.mxu0
        %v818 = vpop.f32.mrf.mxu0
        %v819 = vpop.f32.mrf.mxu0
        %820 = vdwg.mxu0
        %821 = vmatprep.subr.bf16.mxu0 0
        %822 = vmatpush1.bf16.msra.mxu0 0
        %823 = vmatprep.subr.bf16.mxu0 0
        %824 = vmatpush1.bf16.msra.mxu0 0
        %825 = vmatprep.subr.bf16.mxu0 0
        %826 = vmatpush1.bf16.msra.mxu0 0
        %827 = vmatprep.subr.bf16.mxu0 0
        %828 = vmatpush1.bf16.msra.mxu0 0
        %829 = vmatprep.subr.bf16.mxu0 0
        %830 = vmatpush1.bf16.msra.mxu0 0
        %831 = vmatprep.subr.bf16.mxu0 0
        %832 = vmatpush1.bf16.msra.mxu0 0
        %833 = vmatprep.subr.bf16.mxu0 0
        %834 = vmatpush1.bf16.msra.mxu0 0
        %835 = vmatprep.subr.bf16.mxu0 0
        %836 = vmatpush1.bf16.msra.mxu0 %v567
        %837 = vmatprep.subr.bf16.mxu0 0
        %838 = vmatpush2.bf16.msra.mxu0 0
        %839 = vmatprep.subr.bf16.mxu0 0
        %840 = vmatpush2.bf16.msra.mxu0 0
        %841 = vmatprep.subr.bf16.mxu0 0
        %842 = vmatpush2.bf16.msra.mxu0 0
        %843 = vmatprep.subr.bf16.mxu0 0
        %844 = vmatpush2.bf16.msra.mxu0 0
        %845 = vmatprep.subr.bf16.mxu0 0
        %846 = vmatpush2.bf16.msra.mxu0 0
        %847 = vmatprep.subr.bf16.mxu0 0
        %848 = vmatpush2.bf16.msra.mxu0 0
        %849 = vmatprep.subr.bf16.mxu0 0
        %850 = vmatpush2.bf16.msra.mxu0 0
        %851 = vmatprep.subr.bf16.mxu0 0
        %852 = vmatpush2.bf16.msra.mxu0 0
        %853 = vmatprep.mubr.bf16.mxu0 0
        %854 = vmatmul.mubr.bf16.gmra.mxu0 %v579
        %v855 = vpop.f32.mrf.mxu0
        %v856 = vadd.f32 0.0, %v855
        %v857 = vpop.f32.mrf.mxu0
        %v858 = vpop.f32.mrf.mxu0
        %v859 = vpop.f32.mrf.mxu0
        %860 = vdwg.mxu0
        %861 = vmatprep.subr.bf16.mxu0 0
        %862 = vmatpush1.bf16.msra.mxu0 0
        %863 = vmatprep.subr.bf16.mxu0 0
        %864 = vmatpush1.bf16.msra.mxu0 0
        %865 = vmatprep.subr.bf16.mxu0 0
        %866 = vmatpush1.bf16.msra.mxu0 0
        %867 = vmatprep.subr.bf16.mxu0 0
        %868 = vmatpush1.bf16.msra.mxu0 0
        %869 = vmatprep.subr.bf16.mxu0 0
        %870 = vmatpush1.bf16.msra.mxu0 0
        %871 = vmatprep.subr.bf16.mxu0 0
        %872 = vmatpush1.bf16.msra.mxu0 0
        %873 = vmatprep.subr.bf16.mxu0 0
        %874 = vmatpush1.bf16.msra.mxu0 0
        %875 = vmatprep.subr.bf16.mxu0 0
        %876 = vmatpush1.bf16.msra.mxu0 %v568
        %877 = vmatprep.subr.bf16.mxu0 0
        %878 = vmatpush2.bf16.msra.mxu0 0
        %879 = vmatprep.subr.bf16.mxu0 0
        %880 = vmatpush2.bf16.msra.mxu0 0
        %881 = vmatprep.subr.bf16.mxu0 0
        %882 = vmatpush2.bf16.msra.mxu0 0
        %883 = vmatprep.subr.bf16.mxu0 0
        %884 = vmatpush2.bf16.msra.mxu0 0
        %885 = vmatprep.subr.bf16.mxu0 0
        %886 = vmatpush2.bf16.msra.mxu0 0
        %887 = vmatprep.subr.bf16.mxu0 0
        %888 = vmatpush2.bf16.msra.mxu0 0
        %889 = vmatprep.subr.bf16.mxu0 0
        %890 = vmatpush2.bf16.msra.mxu0 0
        %891 = vmatprep.subr.bf16.mxu0 0
        %892 = vmatpush2.bf16.msra.mxu0 0
        %893 = vmatprep.mubr.bf16.mxu0 0
        %894 = vmatmul.mubr.bf16.gmra.mxu0 %v579
        %v895 = vpop.f32.mrf.mxu0
        %v896 = vadd.f32 0.0, %v895
        %v897 = vpop.f32.mrf.mxu0
        %v898 = vpop.f32.mrf.mxu0
        %v899 = vpop.f32.mrf.mxu0
        %900 = vdwg.mxu0
        %901 = vmatprep.subr.bf16.mxu0 0
        %902 = vmatpush1.bf16.msra.mxu0 0
        %903 = vmatprep.subr.bf16.mxu0 0
        %904 = vmatpush1.bf16.msra.mxu0 0
        %905 = vmatprep.subr.bf16.mxu0 0
        %906 = vmatpush1.bf16.msra.mxu0 0
        %907 = vmatprep.subr.bf16.mxu0 0
        %908 = vmatpush1.bf16.msra.mxu0 0
        %909 = vmatprep.subr.bf16.mxu0 0
        %910 = vmatpush1.bf16.msra.mxu0 0
        %911 = vmatprep.subr.bf16.mxu0 0
        %912 = vmatpush1.bf16.msra.mxu0 0
        %913 = vmatprep.subr.bf16.mxu0 0
        %914 = vmatpush1.bf16.msra.mxu0 0
        %915 = vmatprep.subr.bf16.mxu0 0
        %916 = vmatpush1.bf16.msra.mxu0 %v569
        %917 = vmatprep.subr.bf16.mxu0 0
        %918 = vmatpush2.bf16.msra.mxu0 0
        %919 = vmatprep.subr.bf16.mxu0 0
        %920 = vmatpush2.bf16.msra.mxu0 0
        %921 = vmatprep.subr.bf16.mxu0 0
        %922 = vmatpush2.bf16.msra.mxu0 0
        %923 = vmatprep.subr.bf16.mxu0 0
        %924 = vmatpush2.bf16.msra.mxu0 0
        %925 = vmatprep.subr.bf16.mxu0 0
        %926 = vmatpush2.bf16.msra.mxu0 0
        %927 = vmatprep.subr.bf16.mxu0 0
        %928 = vmatpush2.bf16.msra.mxu0 0
        %929 = vmatprep.subr.bf16.mxu0 0
        %930 = vmatpush2.bf16.msra.mxu0 0
        %931 = vmatprep.subr.bf16.mxu0 0
        %932 = vmatpush2.bf16.msra.mxu0 0
        %933 = vmatprep.mubr.bf16.mxu0 0
        %934 = vmatmul.mubr.bf16.gmra.mxu0 %v579
        %v935 = vpop.f32.mrf.mxu0
        %v936 = vadd.f32 0.0, %v935
        %v937 = vpop.f32.mrf.mxu0
        %v938 = vpop.f32.mrf.mxu0
        %v939 = vpop.f32.mrf.mxu0
        %940 = vdwg.mxu0
        %941 = vmatprep.subr.bf16.mxu0 0
        %942 = vmatpush1.bf16.msra.mxu0 0
        %943 = vmatprep.subr.bf16.mxu0 0
        %944 = vmatpush1.bf16.msra.mxu0 0
        %945 = vmatprep.subr.bf16.mxu0 0
        %946 = vmatpush1.bf16.msra.mxu0 0
        %947 = vmatprep.subr.bf16.mxu0 0
        %948 = vmatpush1.bf16.msra.mxu0 0
        %949 = vmatprep.subr.bf16.mxu0 0
        %950 = vmatpush1.bf16.msra.mxu0 0
        %951 = vmatprep.subr.bf16.mxu0 0
        %952 = vmatpush1.bf16.msra.mxu0 0
        %953 = vmatprep.subr.bf16.mxu0 0
        %954 = vmatpush1.bf16.msra.mxu0 0
        %955 = vmatprep.subr.bf16.mxu0 0
        %956 = vmatpush1.bf16.msra.mxu0 %v570
        %957 = vmatprep.subr.bf16.mxu0 0
        %958 = vmatpush2.bf16.msra.mxu0 0
        %959 = vmatprep.subr.bf16.mxu0 0
        %960 = vmatpush2.bf16.msra.mxu0 0
        %961 = vmatprep.subr.bf16.mxu0 0
        %962 = vmatpush2.bf16.msra.mxu0 0
        %963 = vmatprep.subr.bf16.mxu0 0
        %964 = vmatpush2.bf16.msra.mxu0 0
        %965 = vmatprep.subr.bf16.mxu0 0
        %966 = vmatpush2.bf16.msra.mxu0 0
        %967 = vmatprep.subr.bf16.mxu0 0
        %968 = vmatpush2.bf16.msra.mxu0 0
        %969 = vmatprep.subr.bf16.mxu0 0
        %970 = vmatpush2.bf16.msra.mxu0 0
        %971 = vmatprep.subr.bf16.mxu0 0
        %972 = vmatpush2.bf16.msra.mxu0 0
        %973 = vmatprep.mubr.bf16.mxu0 0
        %974 = vmatmul.mubr.bf16.gmra.mxu0 %v579
        %v975 = vpop.f32.mrf.mxu0
        %v976 = vadd.f32 0.0, %v975
        %v977 = vpop.f32.mrf.mxu0
        %v978 = vpop.f32.mrf.mxu0
        %v979 = vpop.f32.mrf.mxu0
        %980 = vdwg.mxu0
        %981 = vmatprep.subr.bf16.mxu0 0
        %982 = vmatpush1.bf16.msra.mxu0 0
        %983 = vmatprep.subr.bf16.mxu0 0
        %984 = vmatpush1.bf16.msra.mxu0 0
        %985 = vmatprep.subr.bf16.mxu0 0
        %986 = vmatpush1.bf16.msra.mxu0 0
        %987 = vmatprep.subr.bf16.mxu0 0
        %988 = vmatpush1.bf16.msra.mxu0 0
        %989 = vmatprep.subr.bf16.mxu0 0
        %990 = vmatpush1.bf16.msra.mxu0 0
        %991 = vmatprep.subr.bf16.mxu0 0
        %992 = vmatpush1.bf16.msra.mxu0 0
        %993 = vmatprep.subr.bf16.mxu0 0
        %994 = vmatpush1.bf16.msra.mxu0 0
        %995 = vmatprep.subr.bf16.mxu0 0
        %996 = vmatpush1.bf16.msra.mxu0 %v571
        %997 = vmatprep.subr.bf16.mxu0 0
        %998 = vmatpush2.bf16.msra.mxu0 0
        %999 = vmatprep.subr.bf16.mxu0 0
        %1000 = vmatpush2.bf16.msra.mxu0 0
        %1001 = vmatprep.subr.bf16.mxu0 0
        %1002 = vmatpush2.bf16.msra.mxu0 0
        %1003 = vmatprep.subr.bf16.mxu0 0
        %1004 = vmatpush2.bf16.msra.mxu0 0
        %1005 = vmatprep.subr.bf16.mxu0 0
        %1006 = vmatpush2.bf16.msra.mxu0 0
        %1007 = vmatprep.subr.bf16.mxu0 0
        %1008 = vmatpush2.bf16.msra.mxu0 0
        %1009 = vmatprep.subr.bf16.mxu0 0
        %1010 = vmatpush2.bf16.msra.mxu0 0
        %1011 = vmatprep.subr.bf16.mxu0 0
        %1012 = vmatpush2.bf16.msra.mxu0 0
        %1013 = vmatprep.mubr.bf16.mxu0 0
        %1014 = vmatmul.mubr.bf16.gmra.mxu0 %v579
        %v1015 = vpop.f32.mrf.mxu0
        %v1016 = vadd.f32 0.0, %v1015
        %v1017 = vpop.f32.mrf.mxu0
        %v1018 = vpop.f32.mrf.mxu0
        %v1019 = vpop.f32.mrf.mxu0
        %1020 = vdwg.mxu0
        %1021 = vmatprep.subr.bf16.mxu0 0
        %1022 = vmatpush1.bf16.msra.mxu0 0
        %1023 = vmatprep.subr.bf16.mxu0 0
        %1024 = vmatpush1.bf16.msra.mxu0 0
        %1025 = vmatprep.subr.bf16.mxu0 0
        %1026 = vmatpush1.bf16.msra.mxu0 0
        %1027 = vmatprep.subr.bf16.mxu0 0
        %1028 = vmatpush1.bf16.msra.mxu0 0
        %1029 = vmatprep.subr.bf16.mxu0 0
        %1030 = vmatpush1.bf16.msra.mxu0 0
        %1031 = vmatprep.subr.bf16.mxu0 0
        %1032 = vmatpush1.bf16.msra.mxu0 0
        %1033 = vmatprep.subr.bf16.mxu0 0
        %1034 = vmatpush1.bf16.msra.mxu0 0
        %1035 = vmatprep.subr.bf16.mxu0 0
        %1036 = vmatpush1.bf16.msra.mxu0 %v572
        %1037 = vmatprep.subr.bf16.mxu0 0
        %1038 = vmatpush2.bf16.msra.mxu0 0
        %1039 = vmatprep.subr.bf16.mxu0 0
        %1040 = vmatpush2.bf16.msra.mxu0 0
        %1041 = vmatprep.subr.bf16.mxu0 0
        %1042 = vmatpush2.bf16.msra.mxu0 0
        %1043 = vmatprep.subr.bf16.mxu0 0
        %1044 = vmatpush2.bf16.msra.mxu0 0
        %1045 = vmatprep.subr.bf16.mxu0 0
        %1046 = vmatpush2.bf16.msra.mxu0 0
        %1047 = vmatprep.subr.bf16.mxu0 0
        %1048 = vmatpush2.bf16.msra.mxu0 0
        %1049 = vmatprep.subr.bf16.mxu0 0
        %1050 = vmatpush2.bf16.msra.mxu0 0
        %1051 = vmatprep.subr.bf16.mxu0 0
        %1052 = vmatpush2.bf16.msra.mxu0 0
        %1053 = vmatprep.mubr.bf16.mxu0 0
        %1054 = vmatmul.mubr.bf16.gmra.mxu0 %v579
        %v1055 = vpop.f32.mrf.mxu0
        %v1056 = vadd.f32 0.0, %v1055
        %v1057 = vpop.f32.mrf.mxu0
        %v1058 = vpop.f32.mrf.mxu0
        %v1059 = vpop.f32.mrf.mxu0
        %1060 = vdwg.mxu0
        %1061 = vmatprep.subr.bf16.mxu0 0
        %1062 = vmatpush1.bf16.msra.mxu0 0
        %1063 = vmatprep.subr.bf16.mxu0 0
        %1064 = vmatpush1.bf16.msra.mxu0 0
        %1065 = vmatprep.subr.bf16.mxu0 0
        %1066 = vmatpush1.bf16.msra.mxu0 0
        %1067 = vmatprep.subr.bf16.mxu0 0
        %1068 = vmatpush1.bf16.msra.mxu0 0
        %1069 = vmatprep.subr.bf16.mxu0 0
        %1070 = vmatpush1.bf16.msra.mxu0 0
        %1071 = vmatprep.subr.bf16.mxu0 0
        %1072 = vmatpush1.bf16.msra.mxu0 0
        %1073 = vmatprep.subr.bf16.mxu0 0
        %1074 = vmatpush1.bf16.msra.mxu0 0
        %1075 = vmatprep.subr.bf16.mxu0 0
        %1076 = vmatpush1.bf16.msra.mxu0 %v573
        %1077 = vmatprep.subr.bf16.mxu0 0
        %1078 = vmatpush2.bf16.msra.mxu0 0
        %1079 = vmatprep.subr.bf16.mxu0 0
        %1080 = vmatpush2.bf16.msra.mxu0 0
        %1081 = vmatprep.subr.bf16.mxu0 0
        %1082 = vmatpush2.bf16.msra.mxu0 0
        %1083 = vmatprep.subr.bf16.mxu0 0
        %1084 = vmatpush2.bf16.msra.mxu0 0
        %1085 = vmatprep.subr.bf16.mxu0 0
        %1086 = vmatpush2.bf16.msra.mxu0 0
        %1087 = vmatprep.subr.bf16.mxu0 0
        %1088 = vmatpush2.bf16.msra.mxu0 0
        %1089 = vmatprep.subr.bf16.mxu0 0
        %1090 = vmatpush2.bf16.msra.mxu0 0
        %1091 = vmatprep.subr.bf16.mxu0 0
        %1092 = vmatpush2.bf16.msra.mxu0 0
        %1093 = vmatprep.mubr.bf16.mxu0 0
        %1094 = vmatmul.mubr.bf16.gmra.mxu0 %v579
        %v1095 = vpop.f32.mrf.mxu0
        %v1096 = vadd.f32 0.0, %v1095
        %v1097 = vpop.f32.mrf.mxu0
        %v1098 = vpop.f32.mrf.mxu0
        %v1099 = vpop.f32.mrf.mxu0
        %1100 = vdwg.mxu0
        %1101 = vmatprep.subr.bf16.mxu0 0
        %1102 = vmatpush1.bf16.msra.mxu0 0
        %1103 = vmatprep.subr.bf16.mxu0 0
        %1104 = vmatpush1.bf16.msra.mxu0 0
        %1105 = vmatprep.subr.bf16.mxu0 0
        %1106 = vmatpush1.bf16.msra.mxu0 0
        %1107 = vmatprep.subr.bf16.mxu0 0
        %1108 = vmatpush1.bf16.msra.mxu0 0
        %1109 = vmatprep.subr.bf16.mxu0 0
        %1110 = vmatpush1.bf16.msra.mxu0 0
        %1111 = vmatprep.subr.bf16.mxu0 0
        %1112 = vmatpush1.bf16.msra.mxu0 0
        %1113 = vmatprep.subr.bf16.mxu0 0
        %1114 = vmatpush1.bf16.msra.mxu0 0
        %1115 = vmatprep.subr.bf16.mxu0 0
        %1116 = vmatpush1.bf16.msra.mxu0 %v574
        %1117 = vmatprep.subr.bf16.mxu0 0
        %1118 = vmatpush2.bf16.msra.mxu0 0
        %1119 = vmatprep.subr.bf16.mxu0 0
        %1120 = vmatpush2.bf16.msra.mxu0 0
        %1121 = vmatprep.subr.bf16.mxu0 0
        %1122 = vmatpush2.bf16.msra.mxu0 0
        %1123 = vmatprep.subr.bf16.mxu0 0
        %1124 = vmatpush2.bf16.msra.mxu0 0
        %1125 = vmatprep.subr.bf16.mxu0 0
        %1126 = vmatpush2.bf16.msra.mxu0 0
        %1127 = vmatprep.subr.bf16.mxu0 0
        %1128 = vmatpush2.bf16.msra.mxu0 0
        %1129 = vmatprep.subr.bf16.mxu0 0
        %1130 = vmatpush2.bf16.msra.mxu0 0
        %1131 = vmatprep.subr.bf16.mxu0 0
        %1132 = vmatpush2.bf16.msra.mxu0 0
        %1133 = vmatprep.mubr.bf16.mxu0 0
        %1134 = vmatmul.mubr.bf16.gmra.mxu0 %v579
        %v1135 = vpop.f32.mrf.mxu0
        %v1136 = vadd.f32 0.0, %v1135
        %v1137 = vpop.f32.mrf.mxu0
        %v1138 = vpop.f32.mrf.mxu0
        %v1139 = vpop.f32.mrf.mxu0
        %1140 = vdwg.mxu0
        %1141 = vmatprep.subr.bf16.mxu0 0
        %1142 = vmatpush1.bf16.msra.mxu0 0
        %1143 = vmatprep.subr.bf16.mxu0 0
        %1144 = vmatpush1.bf16.msra.mxu0 0
        %1145 = vmatprep.subr.bf16.mxu0 0
        %1146 = vmatpush1.bf16.msra.mxu0 0
        %1147 = vmatprep.subr.bf16.mxu0 0
        %1148 = vmatpush1.bf16.msra.mxu0 0
        %1149 = vmatprep.subr.bf16.mxu0 0
        %1150 = vmatpush1.bf16.msra.mxu0 0
        %1151 = vmatprep.subr.bf16.mxu0 0
        %1152 = vmatpush1.bf16.msra.mxu0 0
        %1153 = vmatprep.subr.bf16.mxu0 0
        %1154 = vmatpush1.bf16.msra.mxu0 0
        %1155 = vmatprep.subr.bf16.mxu0 0
        %1156 = vmatpush1.bf16.msra.mxu0 %v575
        %1157 = vmatprep.subr.bf16.mxu0 0
        %1158 = vmatpush2.bf16.msra.mxu0 0
        %1159 = vmatprep.subr.bf16.mxu0 0
        %1160 = vmatpush2.bf16.msra.mxu0 0
        %1161 = vmatprep.subr.bf16.mxu0 0
        %1162 = vmatpush2.bf16.msra.mxu0 0
        %1163 = vmatprep.subr.bf16.mxu0 0
        %1164 = vmatpush2.bf16.msra.mxu0 0
        %1165 = vmatprep.subr.bf16.mxu0 0
        %1166 = vmatpush2.bf16.msra.mxu0 0
        %1167 = vmatprep.subr.bf16.mxu0 0
        %1168 = vmatpush2.bf16.msra.mxu0 0
        %1169 = vmatprep.subr.bf16.mxu0 0
        %1170 = vmatpush2.bf16.msra.mxu0 0
        %1171 = vmatprep.subr.bf16.mxu0 0
        %1172 = vmatpush2.bf16.msra.mxu0 0
        %1173 = vmatprep.mubr.bf16.mxu0 0
        %1174 = vmatmul.mubr.bf16.gmra.mxu0 %v579
        %v1175 = vpop.f32.mrf.mxu0
        %v1176 = vadd.f32 0.0, %v1175
        %v1177 = vpop.f32.mrf.mxu0
        %v1178 = vpop.f32.mrf.mxu0
        %v1179 = vpop.f32.mrf.mxu0
        %1180 = vdwg.mxu0
        %1181 = vmatprep.subr.bf16.mxu0 0
        %1182 = vmatpush1.bf16.msra.mxu0 0
        %1183 = vmatprep.subr.bf16.mxu0 0
        %1184 = vmatpush1.bf16.msra.mxu0 0
        %1185 = vmatprep.subr.bf16.mxu0 0
        %1186 = vmatpush1.bf16.msra.mxu0 0
        %1187 = vmatprep.subr.bf16.mxu0 0
        %1188 = vmatpush1.bf16.msra.mxu0 0
        %1189 = vmatprep.subr.bf16.mxu0 0
        %1190 = vmatpush1.bf16.msra.mxu0 0
        %1191 = vmatprep.subr.bf16.mxu0 0
        %1192 = vmatpush1.bf16.msra.mxu0 0
        %1193 = vmatprep.subr.bf16.mxu0 0
        %1194 = vmatpush1.bf16.msra.mxu0 0
        %1195 = vmatprep.subr.bf16.mxu0 0
        %1196 = vmatpush1.bf16.msra.mxu0 %v576
        %1197 = vmatprep.subr.bf16.mxu0 0
        %1198 = vmatpush2.bf16.msra.mxu0 0
        %1199 = vmatprep.subr.bf16.mxu0 0
        %1200 = vmatpush2.bf16.msra.mxu0 0
        %1201 = vmatprep.subr.bf16.mxu0 0
        %1202 = vmatpush2.bf16.msra.mxu0 0
        %1203 = vmatprep.subr.bf16.mxu0 0
        %1204 = vmatpush2.bf16.msra.mxu0 0
        %1205 = vmatprep.subr.bf16.mxu0 0
        %1206 = vmatpush2.bf16.msra.mxu0 0
        %1207 = vmatprep.subr.bf16.mxu0 0
        %1208 = vmatpush2.bf16.msra.mxu0 0
        %1209 = vmatprep.subr.bf16.mxu0 0
        %1210 = vmatpush2.bf16.msra.mxu0 0
        %1211 = vmatprep.subr.bf16.mxu0 0
        %1212 = vmatpush2.bf16.msra.mxu0 0
        %1213 = vmatprep.mubr.bf16.mxu0 0
        %1214 = vmatmul.mubr.bf16.gmra.mxu0 %v579
        %v1215 = vpop.f32.mrf.mxu0
        %v1216 = vadd.f32 0.0, %v1215
        %v1217 = vpop.f32.mrf.mxu0
        %v1218 = vpop.f32.mrf.mxu0
        %v1219 = vpop.f32.mrf.mxu0
        %1220 = vdwg.mxu0
        %1221 = vmatprep.subr.bf16.mxu0 0
        %1222 = vmatpush1.bf16.msra.mxu0 0
        %1223 = vmatprep.subr.bf16.mxu0 0
        %1224 = vmatpush1.bf16.msra.mxu0 0
        %1225 = vmatprep.subr.bf16.mxu0 0
        %1226 = vmatpush1.bf16.msra.mxu0 0
        %1227 = vmatprep.subr.bf16.mxu0 0
        %1228 = vmatpush1.bf16.msra.mxu0 0
        %1229 = vmatprep.subr.bf16.mxu0 0
        %1230 = vmatpush1.bf16.msra.mxu0 0
        %1231 = vmatprep.subr.bf16.mxu0 0
        %1232 = vmatpush1.bf16.msra.mxu0 0
        %1233 = vmatprep.subr.bf16.mxu0 0
        %1234 = vmatpush1.bf16.msra.mxu0 0
        %1235 = vmatprep.subr.bf16.mxu0 0
        %1236 = vmatpush1.bf16.msra.mxu0 %v577
        %1237 = vmatprep.subr.bf16.mxu0 0
        %1238 = vmatpush2.bf16.msra.mxu0 0
        %1239 = vmatprep.subr.bf16.mxu0 0
        %1240 = vmatpush2.bf16.msra.mxu0 0
        %1241 = vmatprep.subr.bf16.mxu0 0
        %1242 = vmatpush2.bf16.msra.mxu0 0
        %1243 = vmatprep.subr.bf16.mxu0 0
        %1244 = vmatpush2.bf16.msra.mxu0 0
        %1245 = vmatprep.subr.bf16.mxu0 0
        %1246 = vmatpush2.bf16.msra.mxu0 0
        %1247 = vmatprep.subr.bf16.mxu0 0
        %1248 = vmatpush2.bf16.msra.mxu0 0
        %1249 = vmatprep.subr.bf16.mxu0 0
        %1250 = vmatpush2.bf16.msra.mxu0 0
        %1251 = vmatprep.subr.bf16.mxu0 0
        %1252 = vmatpush2.bf16.msra.mxu0 0
        %1253 = vmatprep.mubr.bf16.mxu0 0
        %1254 = vmatmul.mubr.bf16.gmra.mxu0 %v579
        %v1255 = vpop.f32.mrf.mxu0
        %v1256 = vadd.f32 0.0, %v1255
        %v1257 = vpop.f32.mrf.mxu0
        %v1258 = vpop.f32.mrf.mxu0
        %v1259 = vpop.f32.mrf.mxu0
        %1260 = vdwg.mxu0
        %v1261 = vcombine.low %v616, %v696
        %v1262 = vcombine.high %v616, %v696
        %v1264 = vunpack.c.l.s4 1983009808
        %v1265 = vunpack.c.0.s8 %v1264
        %v1266 = vlaneseq
        %v1267 = vshrl.u32 %v1266, 7
        %v1268 = vsub.s32 %v1265, %v1267
        %v1269 = vrot.slane %v1261, %v1268
        %v1271 = vunpack.c.l.s4 1983009808
        %v1272 = vunpack.c.0.s8 %v1271
        %v1273 = vlaneseq
        %v1274 = vshrl.u32 %v1273, 7
        %v1275 = vsub.s32 %v1272, %v1274
        %v1276 = vrot.slane %v1262, %v1275
        %v1277 = vcombine.low %v656, %v736
        %v1278 = vcombine.high %v656, %v736
        %v1280 = vunpack.c.l.s4 1983009808
        %v1281 = vunpack.c.0.s8 %v1280
        %v1282 = vlaneseq
        %v1283 = vshrl.u32 %v1282, 7
        %v1284 = vsub.s32 %v1281, %v1283
        %v1285 = vrot.slane %v1277, %v1284
        %v1287 = vunpack.c.l.s4 1983009808
        %v1288 = vunpack.c.0.s8 %v1287
        %v1289 = vlaneseq
        %v1290 = vshrl.u32 %v1289, 7
        %v1291 = vsub.s32 %v1288, %v1290
        %v1292 = vrot.slane %v1278, %v1291
        %v1293 = vcombine.low %v776, %v856
        %v1294 = vcombine.high %v776, %v856
        %v1296 = vunpack.c.l.s4 1983009808
        %v1297 = vunpack.c.0.s8 %v1296
        %v1298 = vlaneseq
        %v1299 = vshrl.u32 %v1298, 7
        %v1300 = vsub.s32 %v1297, %v1299
        %v1301 = vrot.slane %v1293, %v1300
        %v1303 = vunpack.c.l.s4 1983009808
        %v1304 = vunpack.c.0.s8 %v1303
        %v1305 = vlaneseq
        %v1306 = vshrl.u32 %v1305, 7
        %v1307 = vsub.s32 %v1304, %v1306
        %v1308 = vrot.slane %v1294, %v1307
        %v1309 = vcombine.low %v816, %v896
        %v1310 = vcombine.high %v816, %v896
        %v1312 = vunpack.c.l.s4 1983009808
        %v1313 = vunpack.c.0.s8 %v1312
        %v1314 = vlaneseq
        %v1315 = vshrl.u32 %v1314, 7
        %v1316 = vsub.s32 %v1313, %v1315
        %v1317 = vrot.slane %v1309, %v1316
        %v1319 = vunpack.c.l.s4 1983009808
        %v1320 = vunpack.c.0.s8 %v1319
        %v1321 = vlaneseq
        %v1322 = vshrl.u32 %v1321, 7
        %v1323 = vsub.s32 %v1320, %v1322
        %v1324 = vrot.slane %v1310, %v1323
        %v1325 = vcombine.low %v1269, %v1285
        %v1326 = vcombine.high %v1269, %v1285
        %v1328 = vunpack.c.l.s4 1934713408
        %v1329 = vunpack.c.0.s8 %v1328
        %v1330 = vlaneseq
        %v1331 = vshrl.u32 %v1330, 7
        %v1332 = vsub.s32 %v1329, %v1331
        %v1333 = vrot.slane %v1325, %v1332
        %v1335 = vunpack.c.l.s4 1934713408
        %v1336 = vunpack.c.0.s8 %v1335
        %v1337 = vlaneseq
        %v1338 = vshrl.u32 %v1337, 7
        %v1339 = vsub.s32 %v1336, %v1338
        %v1340 = vrot.slane %v1326, %v1339
        %v1341 = vcombine.low %v1276, %v1292
        %v1342 = vcombine.high %v1276, %v1292
        %v1344 = vunpack.c.l.s4 1934713408
        %v1345 = vunpack.c.0.s8 %v1344
        %v1346 = vlaneseq
        %v1347 = vshrl.u32 %v1346, 7
        %v1348 = vsub.s32 %v1345, %v1347
        %v1349 = vrot.slane %v1341, %v1348
        %v1351 = vunpack.c.l.s4 1934713408
        %v1352 = vunpack.c.0.s8 %v1351
        %v1353 = vlaneseq
        %v1354 = vshrl.u32 %v1353, 7
        %v1355 = vsub.s32 %v1352, %v1354
        %v1356 = vrot.slane %v1342, %v1355
        %v1357 = vcombine.low %v1301, %v1317
        %v1358 = vcombine.high %v1301, %v1317
        %v1360 = vunpack.c.l.s4 1934713408
        %v1361 = vunpack.c.0.s8 %v1360
        %v1362 = vlaneseq
        %v1363 = vshrl.u32 %v1362, 7
        %v1364 = vsub.s32 %v1361, %v1363
        %v1365 = vrot.slane %v1357, %v1364
        %v1367 = vunpack.c.l.s4 1934713408
        %v1368 = vunpack.c.0.s8 %v1367
        %v1369 = vlaneseq
        %v1370 = vshrl.u32 %v1369, 7
        %v1371 = vsub.s32 %v1368, %v1370
        %v1372 = vrot.slane %v1358, %v1371
        %v1373 = vcombine.low %v1308, %v1324
        %v1374 = vcombine.high %v1308, %v1324
        %v1376 = vunpack.c.l.s4 1934713408
        %v1377 = vunpack.c.0.s8 %v1376
        %v1378 = vlaneseq
        %v1379 = vshrl.u32 %v1378, 7
        %v1380 = vsub.s32 %v1377, %v1379
        %v1381 = vrot.slane %v1373, %v1380
        %v1383 = vunpack.c.l.s4 1934713408
        %v1384 = vunpack.c.0.s8 %v1383
        %v1385 = vlaneseq
        %v1386 = vshrl.u32 %v1385, 7
        %v1387 = vsub.s32 %v1384, %v1386
        %v1388 = vrot.slane %v1374, %v1387
        %v1389 = vcombine.low %v1333, %v1365
        %v1390 = vcombine.high %v1333, %v1365
        %v1391 = vcombine.low %v1340, %v1372
        %v1392 = vcombine.high %v1340, %v1372
        %v1393 = vcombine.low %v1349, %v1381
        %v1394 = vcombine.high %v1349, %v1381
        %v1395 = vcombine.low %v1356, %v1388
        %v1396 = vcombine.high %v1356, %v1388
        %v1397 = vcombine.low %v936, %v1016
        %v1398 = vcombine.high %v936, %v1016
        %v1400 = vunpack.c.l.s4 1983009808
        %v1401 = vunpack.c.0.s8 %v1400
        %v1402 = vlaneseq
        %v1403 = vshrl.u32 %v1402, 7
        %v1404 = vsub.s32 %v1401, %v1403
        %v1405 = vrot.slane %v1397, %v1404
        %v1407 = vunpack.c.l.s4 1983009808
        %v1408 = vunpack.c.0.s8 %v1407
        %v1409 = vlaneseq
        %v1410 = vshrl.u32 %v1409, 7
        %v1411 = vsub.s32 %v1408, %v1410
        %v1412 = vrot.slane %v1398, %v1411
        %v1413 = vcombine.low %v976, %v1056
        %v1414 = vcombine.high %v976, %v1056
        %v1416 = vunpack.c.l.s4 1983009808
        %v1417 = vunpack.c.0.s8 %v1416
        %v1418 = vlaneseq
        %v1419 = vshrl.u32 %v1418, 7
        %v1420 = vsub.s32 %v1417, %v1419
        %v1421 = vrot.slane %v1413, %v1420
        %v1423 = vunpack.c.l.s4 1983009808
        %v1424 = vunpack.c.0.s8 %v1423
        %v1425 = vlaneseq
        %v1426 = vshrl.u32 %v1425, 7
        %v1427 = vsub.s32 %v1424, %v1426
        %v1428 = vrot.slane %v1414, %v1427
        %v1429 = vcombine.low %v1096, %v1176
        %v1430 = vcombine.high %v1096, %v1176
        %v1432 = vunpack.c.l.s4 1983009808
        %v1433 = vunpack.c.0.s8 %v1432
        %v1434 = vlaneseq
        %v1435 = vshrl.u32 %v1434, 7
        %v1436 = vsub.s32 %v1433, %v1435
        %v1437 = vrot.slane %v1429, %v1436
        %v1439 = vunpack.c.l.s4 1983009808
        %v1440 = vunpack.c.0.s8 %v1439
        %v1441 = vlaneseq
        %v1442 = vshrl.u32 %v1441, 7
        %v1443 = vsub.s32 %v1440, %v1442
        %v1444 = vrot.slane %v1430, %v1443
        %v1445 = vcombine.low %v1136, %v1216
        %v1446 = vcombine.high %v1136, %v1216
        %v1448 = vunpack.c.l.s4 1983009808
        %v1449 = vunpack.c.0.s8 %v1448
        %v1450 = vlaneseq
        %v1451 = vshrl.u32 %v1450, 7
        %v1452 = vsub.s32 %v1449, %v1451
        %v1453 = vrot.slane %v1445, %v1452
        %v1455 = vunpack.c.l.s4 1983009808
        %v1456 = vunpack.c.0.s8 %v1455
        %v1457 = vlaneseq
        %v1458 = vshrl.u32 %v1457, 7
        %v1459 = vsub.s32 %v1456, %v1458
        %v1460 = vrot.slane %v1446, %v1459
        %v1461 = vcombine.low %v1405, %v1421
        %v1462 = vcombine.high %v1405, %v1421
        %v1464 = vunpack.c.l.s4 1934713408
        %v1465 = vunpack.c.0.s8 %v1464
        %v1466 = vlaneseq
        %v1467 = vshrl.u32 %v1466, 7
        %v1468 = vsub.s32 %v1465, %v1467
        %v1469 = vrot.slane %v1461, %v1468
        %v1471 = vunpack.c.l.s4 1934713408
        %v1472 = vunpack.c.0.s8 %v1471
        %v1473 = vlaneseq
        %v1474 = vshrl.u32 %v1473, 7
        %v1475 = vsub.s32 %v1472, %v1474
        %v1476 = vrot.slane %v1462, %v1475
        %v1477 = vcombine.low %v1412, %v1428
        %v1478 = vcombine.high %v1412, %v1428
        %v1480 = vunpack.c.l.s4 1934713408
        %v1481 = vunpack.c.0.s8 %v1480
        %v1482 = vlaneseq
        %v1483 = vshrl.u32 %v1482, 7
        %v1484 = vsub.s32 %v1481, %v1483
        %v1485 = vrot.slane %v1477, %v1484
        %v1487 = vunpack.c.l.s4 1934713408
        %v1488 = vunpack.c.0.s8 %v1487
        %v1489 = vlaneseq
        %v1490 = vshrl.u32 %v1489, 7
        %v1491 = vsub.s32 %v1488, %v1490
        %v1492 = vrot.slane %v1478, %v1491
        %v1493 = vcombine.low %v1437, %v1453
        %v1494 = vcombine.high %v1437, %v1453
        %v1496 = vunpack.c.l.s4 1934713408
        %v1497 = vunpack.c.0.s8 %v1496
        %v1498 = vlaneseq
        %v1499 = vshrl.u32 %v1498, 7
        %v1500 = vsub.s32 %v1497, %v1499
        %v1501 = vrot.slane %v1493, %v1500
        %v1503 = vunpack.c.l.s4 1934713408
        %v1504 = vunpack.c.0.s8 %v1503
        %v1505 = vlaneseq
        %v1506 = vshrl.u32 %v1505, 7
        %v1507 = vsub.s32 %v1504, %v1506
        %v1508 = vrot.slane %v1494, %v1507
        %v1509 = vcombine.low %v1444, %v1460
        %v1510 = vcombine.high %v1444, %v1460
        %v1512 = vunpack.c.l.s4 1934713408
        %v1513 = vunpack.c.0.s8 %v1512
        %v1514 = vlaneseq
        %v1515 = vshrl.u32 %v1514, 7
        %v1516 = vsub.s32 %v1513, %v1515
        %v1517 = vrot.slane %v1509, %v1516
        %v1519 = vunpack.c.l.s4 1934713408
        %v1520 = vunpack.c.0.s8 %v1519
        %v1521 = vlaneseq
        %v1522 = vshrl.u32 %v1521, 7
        %v1523 = vsub.s32 %v1520, %v1522
        %v1524 = vrot.slane %v1510, %v1523
        %v1525 = vcombine.low %v1469, %v1501
        %v1526 = vcombine.high %v1469, %v1501
        %v1527 = vcombine.low %v1476, %v1508
        %v1528 = vcombine.high %v1476, %v1508
        %v1529 = vcombine.low %v1485, %v1517
        %v1530 = vcombine.high %v1485, %v1517
        %v1531 = vcombine.low %v1492, %v1524
        %v1532 = vcombine.high %v1492, %v1524
        %v1533 = vcombine.high %v1256, 0.0
        %v1535 = vunpack.c.l.s4 1983009808
        %v1536 = vunpack.c.0.s8 %v1535
        %v1537 = vlaneseq
        %v1538 = vshrl.u32 %v1537, 7
        %v1539 = vsub.s32 %v1536, %v1538
        %v1540 = vrot.slane %v1256, %v1539
        %v1542 = vunpack.c.l.s4 1983009808
        %v1543 = vunpack.c.0.s8 %v1542
        %v1544 = vlaneseq
        %v1545 = vshrl.u32 %v1544, 7
        %v1546 = vsub.s32 %v1543, %v1545
        %v1547 = vrot.slane %v1533, %v1546
        %v1548 = vcombine.high %v1540, 0.0
        %v1550 = vunpack.c.l.s4 1934713408
        %v1551 = vunpack.c.0.s8 %v1550
        %v1552 = vlaneseq
        %v1553 = vshrl.u32 %v1552, 7
        %v1554 = vsub.s32 %v1551, %v1553
        %v1555 = vrot.slane %v1540, %v1554
        %v1557 = vunpack.c.l.s4 1934713408
        %v1558 = vunpack.c.0.s8 %v1557
        %v1559 = vlaneseq
        %v1560 = vshrl.u32 %v1559, 7
        %v1561 = vsub.s32 %v1558, %v1560
        %v1562 = vrot.slane %v1548, %v1561
        %v1563 = vcombine.high %v1547, 0.0
        %v1565 = vunpack.c.l.s4 1934713408
        %v1566 = vunpack.c.0.s8 %v1565
        %v1567 = vlaneseq
        %v1568 = vshrl.u32 %v1567, 7
        %v1569 = vsub.s32 %v1566, %v1568
        %v1570 = vrot.slane %v1547, %v1569
        %v1572 = vunpack.c.l.s4 1934713408
        %v1573 = vunpack.c.0.s8 %v1572
        %v1574 = vlaneseq
        %v1575 = vshrl.u32 %v1574, 7
        %v1576 = vsub.s32 %v1573, %v1575
        %v1577 = vrot.slane %v1563, %v1576
        %v1578 = vcombine.high %v1555, 0.0
        %v1579 = vcombine.high %v1562, 0.0
        %v1580 = vcombine.high %v1570, 0.0
        %v1581 = vcombine.high %v1577, 0.0
        %1585 = vrot.lane.b32.xlu0 %v1390, 8
        %v1586 = vpop.permute.xlu0 %1585
        %1587 = vrot.lane.b32.xlu0 %v1526, 8
        %v1588 = vpop.permute.xlu0 %1587
        %1589 = vrot.lane.b32.xlu0 %v1578, 8
        %v1590 = vpop.permute.xlu0 %1589
        %1597 = vrot.lane.b32.xlu0 %v1391, 16
        %v1598 = vpop.permute.xlu0 %1597
        %1599 = vrot.lane.b32.xlu0 %v1527, 16
        %v1600 = vpop.permute.xlu0 %1599
        %1601 = vrot.lane.b32.xlu0 %v1562, 16
        %v1602 = vpop.permute.xlu0 %1601
        %1609 = vrot.lane.b32.xlu0 %v1392, 24
        %v1610 = vpop.permute.xlu0 %1609
        %1611 = vrot.lane.b32.xlu0 %v1528, 24
        %v1612 = vpop.permute.xlu0 %1611
        %1613 = vrot.lane.b32.xlu0 %v1579, 24
        %v1614 = vpop.permute.xlu0 %1613
        %1621 = vrot.lane.b32.xlu0 %v1393, 32
        %v1622 = vpop.permute.xlu0 %1621
        %1623 = vrot.lane.b32.xlu0 %v1529, 32
        %v1624 = vpop.permute.xlu0 %1623
        %1625 = vrot.lane.b32.xlu0 %v1570, 32
        %v1626 = vpop.permute.xlu0 %1625
        %1633 = vrot.lane.b32.xlu0 %v1394, 40
        %v1634 = vpop.permute.xlu0 %1633
        %1635 = vrot.lane.b32.xlu0 %v1530, 40
        %v1636 = vpop.permute.xlu0 %1635
        %1637 = vrot.lane.b32.xlu0 %v1580, 40
        %v1638 = vpop.permute.xlu0 %1637
        %1645 = vrot.lane.b32.xlu0 %v1395, 48
        %v1646 = vpop.permute.xlu0 %1645
        %1647 = vrot.lane.b32.xlu0 %v1531, 48
        %v1648 = vpop.permute.xlu0 %1647
        %1649 = vrot.lane.b32.xlu0 %v1577, 48
        %v1650 = vpop.permute.xlu0 %1649
        %1657 = vrot.lane.b32.xlu0 %v1396, 56
        %v1658 = vpop.permute.xlu0 %1657
        %1659 = vrot.lane.b32.xlu0 %v1532, 56
        %v1660 = vpop.permute.xlu0 %1659
        %1661 = vrot.lane.b32.xlu0 %v1581, 56
        %v1662 = vpop.permute.xlu0 %1661
        %vm1666 = vcmask 64512
        %v1667 = vsel %vm1666, %v1389, %v1586
        %v1668 = vsel %vm1666, %v1525, %v1588
        %v1669 = vsel %vm1666, %v1555, %v1590
        %v1670 = vsel %vm340, %v1667, %v1598
        %v1671 = vsel %vm340, %v1668, %v1600
        %v1672 = vsel %vm340, %v1669, %v1602
        %vm1673 = vcmask 195584
        %v1674 = vsel %vm1673, %v1670, %v1610
        %v1675 = vsel %vm1673, %v1671, %v1612
        %v1676 = vsel %vm1673, %v1672, %v1614
        %vm1677 = vcmask 261120
        %v1678 = vsel %vm1677, %v1674, %v1622
        %v1679 = vsel %vm1677, %v1675, %v1624
        %v1680 = vsel %vm1677, %v1676, %v1626
        %vm1681 = vcmask 326656
        %v1682 = vsel %vm1681, %v1678, %v1634
        %v1683 = vsel %vm1681, %v1679, %v1636
        %v1684 = vsel %vm1681, %v1680, %v1638
        %vm1685 = vcmask 392192
        %v1686 = vsel %vm1685, %v1682, %v1646
        %v1687 = vsel %vm1685, %v1683, %v1648
        %v1688 = vsel %vm1685, %v1684, %v1650
        %vm1689 = vcmask 457728
        %v1690 = vsel %vm1689, %v1686, %v1658
        %v1691 = vsel %vm1689, %v1687, %v1660
        %v1692 = vsel %vm1689, %v1688, %v1662
        %v1693 = vld [vmem:[%s1] sm:$0xf]
        %v1694 = vld [vmem:[%s1 + $0x4] sm:$0xf]
        %v1695 = vld [vmem:[%s1 + $0x8] sm:$0xf]
        %v1696 = vld [vmem:[%s1 + $0xc] sm:$0xf]
        %v1697 = vld [vmem:[%s1 + $0x10] sm:$0xf]
        %v1698 = vld [vmem:[%s1 + $0x14] sm:$0xf]
        %v1699 = vpack.c.bf16 %v1691, %v1690
        %v1700 = vpack.c.bf16 %v1692, %v1692
        %v1707 = vunpack.c.l.b16 %v1693
        %v1708 = vunpack.c.l.b16 %v1694
        %v1709 = vunpack.c.l.b16 %v1695
        %v1710 = vunpack.c.l.b16 %v1696
        %v1711 = vunpack.c.l.b16 %v1697
        %v1712 = vunpack.c.l.b16 %v1698
        %v1713 = vpack.c.b16 %v1708, %v1707
        %v1714 = vpack.c.b16 %v1710, %v1709
        %v1715 = vpack.c.b16 %v1712, %v1711
        %vm1716 = vcmask 138240
        %v1718 = vsel %vm1716, %v1713, 0
        %v1721 = vsel %vm1716, %v1714, 0
        %v1724 = vsel %vm1716, %v1715, 0
        %vm1726 = vcmask 1040384
        %v1727 = vsel 0, 4294967295, 65535
        %v1728 = vsel %vm1726, %v1727, 0
        %v1730 = vand.u32 %v1700, %v1728
        %1732 = vmatprep.subr.bf16.mxu0 0
        %1733 = vmatpush1.bf16.msra.mxu0 0
        %1734 = vmatprep.subr.bf16.mxu0 0
        %1735 = vmatpush1.bf16.msra.mxu0 0
        %1736 = vmatprep.subr.bf16.mxu0 0
        %1737 = vmatpush1.bf16.msra.mxu0 0
        %1738 = vmatprep.subr.bf16.mxu0 0
        %1739 = vmatpush1.bf16.msra.mxu0 0
        %1740 = vmatprep.subr.bf16.mxu0 0
        %1741 = vmatpush1.bf16.msra.mxu0 0
        %1742 = vmatprep.subr.bf16.mxu0 0
        %1743 = vmatpush1.bf16.msra.mxu0 0
        %1744 = vmatprep.subr.bf16.mxu0 0
        %1745 = vmatpush1.bf16.msra.mxu0 %v1730
        %1746 = vmatprep.subr.bf16.mxu0 0
        %1747 = vmatpush1.bf16.msra.mxu0 %v1699
        %1748 = vmatprep.subr.bf16.mxu0 0
        %1749 = vmatpush2.bf16.msra.mxu0 0
        %1750 = vmatprep.subr.bf16.mxu0 0
        %1751 = vmatpush2.bf16.msra.mxu0 0
        %1752 = vmatprep.subr.bf16.mxu0 0
        %1753 = vmatpush2.bf16.msra.mxu0 0
        %1754 = vmatprep.subr.bf16.mxu0 0
        %1755 = vmatpush2.bf16.msra.mxu0 0
        %1756 = vmatprep.subr.bf16.mxu0 0
        %1757 = vmatpush2.bf16.msra.mxu0 0
        %1758 = vmatprep.subr.bf16.mxu0 0
        %1759 = vmatpush2.bf16.msra.mxu0 0
        %1760 = vmatprep.subr.bf16.mxu0 0
        %1761 = vmatpush2.bf16.msra.mxu0 0
        %1762 = vmatprep.subr.bf16.mxu0 0
        %1763 = vmatpush2.bf16.msra.mxu0 0
        %1764 = vmatprep.mubr.bf16.mxu0 0
        %1765 = vmatmul.mubr.bf16.gmra.mxu0 %v1718
        %v1766 = vpop.f32.mrf.mxu0
        %v1767 = vadd.f32 0.0, %v1766
        %v1768 = vpop.f32.mrf.mxu0
        %v1769 = vpop.f32.mrf.mxu0
        %v1770 = vadd.f32 0.0, %v1769
        %v1771 = vpop.f32.mrf.mxu0
        %1772 = vmatprep.mubr.bf16.mxu0 0
        %1773 = vmatmul.mubr.bf16.gmra.mxu0 %v1721
        %v1774 = vpop.f32.mrf.mxu0
        %v1775 = vadd.f32 0.0, %v1774
        %v1776 = vpop.f32.mrf.mxu0
        %v1777 = vpop.f32.mrf.mxu0
        %v1778 = vadd.f32 0.0, %v1777
        %v1779 = vpop.f32.mrf.mxu0
        %1780 = vmatprep.mubr.bf16.mxu0 0
        %1781 = vmatmul.mubr.bf16.gmra.mxu0 %v1724
        %v1782 = vpop.f32.mrf.mxu0
        %v1783 = vadd.f32 0.0, %v1782
        %v1784 = vpop.f32.mrf.mxu0
        %v1785 = vpop.f32.mrf.mxu0
        %v1786 = vadd.f32 0.0, %v1785
        %v1787 = vpop.f32.mrf.mxu0
        %1788 = vdwg.mxu0
        %v1789 = vpack.c.bf16 %v1770, %v1767
        %v1790 = vpack.c.bf16 %v1778, %v1775
        %v1791 = vpack.c.bf16 %v1786, %v1783
        %1792 = vxpose.xlu0.c.b16.start [1/8] %v1790, 128
        %1793 = vxpose.xlu0.c.b16.cont [2/8] 0, 128
        %1794 = vxpose.xlu0.c.b16.cont [3/8] 0, 128
        %1795 = vxpose.xlu0.c.b16.cont [4/8] 0, 128
        %1796 = vxpose.xlu0.c.b16.cont [5/8] 0, 128
        %1797 = vxpose.xlu0.c.b16.cont [6/8] 0, 128
        %1798 = vxpose.xlu0.c.b16.cont [7/8] 0, 128
        %1799 = vxpose.xlu0.c.b16.end [8/8] 0, 128
        %v1800 = vpop.trf.xlu0
        %v1801 = vpop.trf.xlu0
        %v1802 = vpop.trf.xlu0
        %v1803 = vpop.trf.xlu0
        %v1804 = vpop.trf.xlu0
        %v1805 = vpop.trf.xlu0
        %v1806 = vpop.trf.xlu0
        %v1807 = vpop.trf.xlu0
        %v1809 = vsel %vm340, %v1800, 0
        %v1812 = vsel %vm340, %v1801, 0
        %v1815 = vsel %vm340, %v1802, 0
        %v1818 = vsel %vm340, %v1803, 0
        %1820 = vmatprep.subr.bf16.mxu0 0
        %1821 = vmatpush1.bf16.msra.mxu0 0
        %1822 = vmatprep.subr.bf16.mxu0 0
        %1823 = vmatpush1.bf16.msra.mxu0 0
        %1824 = vmatprep.subr.bf16.mxu0 0
        %1825 = vmatpush1.bf16.msra.mxu0 0
        %1826 = vmatprep.subr.bf16.mxu0 0
        %1827 = vmatpush1.bf16.msra.mxu0 0
        %1828 = vmatprep.subr.bf16.mxu0 0
        %1829 = vmatpush1.bf16.msra.mxu0 0
        %1830 = vmatprep.subr.bf16.mxu0 0
        %1831 = vmatpush1.bf16.msra.mxu0 0
        %1832 = vmatprep.subr.bf16.mxu0 0
        %1833 = vmatpush1.bf16.msra.mxu0 0
        %1834 = vmatprep.subr.bf16.mxu0 0
        %1835 = vmatpush1.bf16.msra.mxu0 %v1789
        %1836 = vmatprep.subr.bf16.mxu0 0
        %1837 = vmatpush2.bf16.msra.mxu0 0
        %1838 = vmatprep.subr.bf16.mxu0 0
        %1839 = vmatpush2.bf16.msra.mxu0 0
        %1840 = vmatprep.subr.bf16.mxu0 0
        %1841 = vmatpush2.bf16.msra.mxu0 0
        %1842 = vmatprep.subr.bf16.mxu0 0
        %1843 = vmatpush2.bf16.msra.mxu0 0
        %1844 = vmatprep.subr.bf16.mxu0 0
        %1845 = vmatpush2.bf16.msra.mxu0 0
        %1846 = vmatprep.subr.bf16.mxu0 0
        %1847 = vmatpush2.bf16.msra.mxu0 0
        %1848 = vmatprep.subr.bf16.mxu0 0
        %1849 = vmatpush2.bf16.msra.mxu0 0
        %1850 = vmatprep.subr.bf16.mxu0 0
        %1851 = vmatpush2.bf16.msra.mxu0 0
        %1852 = vmatprep.mubr.bf16.mxu0 0
        %1853 = vmatmul.mubr.bf16.gmra.mxu0 %v1809
        %v1854 = vpop.f32.mrf.mxu0
        %v1855 = vadd.f32 0.0, %v1854
        %v1856 = vpop.f32.mrf.mxu0
        %v1857 = vpop.f32.mrf.mxu0
        %v1858 = vadd.f32 0.0, %v1857
        %v1859 = vpop.f32.mrf.mxu0
        %1860 = vmatprep.mubr.bf16.mxu0 0
        %1861 = vmatmul.mubr.bf16.gmra.mxu0 %v1812
        %v1862 = vpop.f32.mrf.mxu0
        %v1863 = vadd.f32 0.0, %v1862
        %v1864 = vpop.f32.mrf.mxu0
        %v1865 = vpop.f32.mrf.mxu0
        %v1866 = vadd.f32 0.0, %v1865
        %v1867 = vpop.f32.mrf.mxu0
        %1868 = vmatprep.mubr.bf16.mxu0 0
        %1869 = vmatmul.mubr.bf16.gmra.mxu0 %v1815
        %v1870 = vpop.f32.mrf.mxu0
        %v1871 = vadd.f32 0.0, %v1870
        %v1872 = vpop.f32.mrf.mxu0
        %v1873 = vpop.f32.mrf.mxu0
        %v1874 = vadd.f32 0.0, %v1873
        %v1875 = vpop.f32.mrf.mxu0
        %1876 = vmatprep.mubr.bf16.mxu0 0
        %1877 = vmatmul.mubr.bf16.gmra.mxu0 %v1818
        %v1878 = vpop.f32.mrf.mxu0
        %v1879 = vadd.f32 0.0, %v1878
        %v1880 = vpop.f32.mrf.mxu0
        %v1881 = vpop.f32.mrf.mxu0
        %v1882 = vadd.f32 0.0, %v1881
        %v1883 = vpop.f32.mrf.mxu0
        %1884 = vdwg.mxu0
        %vm1885 = vcmask 523264
        %v1886 = vsel %vm1885, %v1855, -inf
        %v1887 = vsel %vm1885, %v1858, -inf
        %v1888 = vsel %vm1885, %v1863, -inf
        %v1889 = vsel %vm1885, %v1866, -inf
        %v1890 = vsel %vm1885, %v1871, -inf
        %v1891 = vmax.f32 %v1886, %v1890
        %v1892 = vsel %vm1885, %v1874, -inf
        %v1893 = vmax.f32 %v1887, %v1892
        %v1894 = vsel %vm1885, %v1879, -inf
        %v1895 = vmax.f32 %v1888, %v1894
        %v1896 = vsel %vm1885, %v1882, -inf
        %v1897 = vmax.f32 %v1889, %v1896
        %v1898 = vmax.f32 %v1891, %v1893
        %v1899 = vmax.f32 %v1895, %v1897
        %v1900 = vmax.f32 %v1898, %v1899
        %v1901 = vrot.slane %v1900, 4
        %v1902 = vmax.f32 %v1900, %v1901
        %v1903 = vrot.slane %v1902, 2
        %v1904 = vmax.f32 %v1902, %v1903
        %v1905 = vrot.slane %v1904, 1
        %v1906 = vmax.f32 %v1904, %v1905
        %v1907 = vsub.f32 %v1855, %v1906
        %v1908 = vsub.f32 %v1858, %v1906
        %v1909 = vsub.f32 %v1863, %v1906
        %v1910 = vsub.f32 %v1866, %v1906
        %v1911 = vsub.f32 %v1871, %v1906
        %v1912 = vsub.f32 %v1874, %v1906
        %v1913 = vsub.f32 %v1879, %v1906
        %v1914 = vsub.f32 %v1882, %v1906
        %v1915 = vmul.f32 %v1907, 1.442695
        %v1916 = vpow.pop %v1915
        %v1917 = vmul.f32 %v1908, 1.442695
        %v1918 = vpow.pop %v1917
        %v1919 = vmul.f32 %v1909, 1.442695
        %v1920 = vpow.pop %v1919
        %v1921 = vmul.f32 %v1910, 1.442695
        %v1922 = vpow.pop %v1921
        %v1923 = vmul.f32 %v1911, 1.442695
        %v1924 = vpow.pop %v1923
        %v1925 = vmul.f32 %v1912, 1.442695
        %v1926 = vpow.pop %v1925
        %v1927 = vmul.f32 %v1913, 1.442695
        %v1928 = vpow.pop %v1927
        %v1929 = vmul.f32 %v1914, 1.442695
        %v1930 = vpow.pop %v1929
        %v1931 = vsel %vm1885, %v1916, 0.0
        %v1932 = vsel %vm1885, %v1918, 0.0
        %v1933 = vadd.f32 %v1931, %v1932
        %v1934 = vsel %vm1885, %v1920, 0.0
        %v1935 = vadd.f32 %v1933, %v1934
        %v1936 = vsel %vm1885, %v1922, 0.0
        %v1937 = vadd.f32 %v1935, %v1936
        %v1938 = vsel %vm1885, %v1924, 0.0
        %v1939 = vadd.f32 %v1937, %v1938
        %v1940 = vsel %vm1885, %v1926, 0.0
        %v1941 = vadd.f32 %v1939, %v1940
        %v1942 = vsel %vm1885, %v1928, 0.0
        %v1943 = vadd.f32 %v1941, %v1942
        %v1944 = vsel %vm1885, %v1930, 0.0
        %v1945 = vadd.f32 %v1943, %v1944
        %v1946 = vrot.slane %v1945, 4
        %v1947 = vadd.f32 %v1945, %v1946
        %v1948 = vrot.slane %v1947, 2
        %v1949 = vadd.f32 %v1947, %v1948
        %v1950 = vrot.slane %v1949, 1
        %v1951 = vadd.f32 %v1949, %v1950
        %v1952 = vrcp.pop %v1951
        %v1953 = vmul.f32 %v1916, %v1952
        %v1954 = vmul.f32 %v1918, %v1952
        %v1955 = vmul.f32 %v1920, %v1952
        %v1956 = vmul.f32 %v1922, %v1952
        %v1957 = vmul.f32 %v1924, %v1952
        %v1958 = vmul.f32 %v1926, %v1952
        %v1959 = vmul.f32 %v1928, %v1952
        %v1960 = vmul.f32 %v1930, %v1952
        %v1961 = vpack.c.bf16 %v1954, %v1953
        %v1962 = vpack.c.bf16 %v1956, %v1955
        %v1963 = vpack.c.bf16 %v1958, %v1957
        %v1964 = vpack.c.bf16 %v1960, %v1959
        %v1966 = vsel %vm1885, %v1791, 0
        %1968 = vmatprep.subr.bf16.mxu0 0
        %1969 = vmatpush1.bf16.msra.mxu0 0
        %1970 = vmatprep.subr.bf16.mxu0 0
        %1971 = vmatpush1.bf16.msra.mxu0 0
        %1972 = vmatprep.subr.bf16.mxu0 0
        %1973 = vmatpush1.bf16.msra.mxu0 0
        %1974 = vmatprep.subr.bf16.mxu0 0
        %1975 = vmatpush1.bf16.msra.mxu0 0
        %1976 = vmatprep.subr.bf16.mxu0 0
        %1977 = vmatpush1.bf16.msra.mxu0 %v1964
        %1978 = vmatprep.subr.bf16.mxu0 0
        %1979 = vmatpush1.bf16.msra.mxu0 %v1963
        %1980 = vmatprep.subr.bf16.mxu0 0
        %1981 = vmatpush1.bf16.msra.mxu0 %v1962
        %1982 = vmatprep.subr.bf16.mxu0 0
        %1983 = vmatpush1.bf16.msra.mxu0 %v1961
        %1984 = vmatprep.subr.bf16.mxu0 0
        %1985 = vmatpush2.bf16.msra.mxu0 0
        %1986 = vmatprep.subr.bf16.mxu0 0
        %1987 = vmatpush2.bf16.msra.mxu0 0
        %1988 = vmatprep.subr.bf16.mxu0 0
        %1989 = vmatpush2.bf16.msra.mxu0 0
        %1990 = vmatprep.subr.bf16.mxu0 0
        %1991 = vmatpush2.bf16.msra.mxu0 0
        %1992 = vmatprep.subr.bf16.mxu0 0
        %1993 = vmatpush2.bf16.msra.mxu0 0
        %1994 = vmatprep.subr.bf16.mxu0 0
        %1995 = vmatpush2.bf16.msra.mxu0 0
        %1996 = vmatprep.subr.bf16.mxu0 0
        %1997 = vmatpush2.bf16.msra.mxu0 0
        %1998 = vmatprep.subr.bf16.mxu0 0
        %1999 = vmatpush2.bf16.msra.mxu0 0
        %2000 = vmatprep.mubr.bf16.mxu0 0
        %2001 = vmatmul.mubr.bf16.gmra.mxu0 %v1966
        %v2002 = vpop.f32.mrf.mxu0
        %v2003 = vadd.f32 0.0, %v2002
        %v2004 = vpop.f32.mrf.mxu0
        %v2005 = vpop.f32.mrf.mxu0
        %v2006 = vadd.f32 0.0, %v2005
        %v2007 = vpop.f32.mrf.mxu0
        %2008 = vdwg.mxu0
        %2011 = vrot.lane.b32.xlu0 %v2003, 120
        %v2012 = vpop.permute.xlu0 %2011
        %2013 = vrot.lane.b32.xlu0 %v2006, 120
        %v2014 = vpop.permute.xlu0 %2013
        %2017 = vrot.lane.b32.xlu0 %v2003, 112
        %v2018 = vpop.permute.xlu0 %2017
        %2019 = vrot.lane.b32.xlu0 %v2006, 112
        %v2020 = vpop.permute.xlu0 %2019
        %2023 = vrot.lane.b32.xlu0 %v2003, 104
        %v2024 = vpop.permute.xlu0 %2023
        %2025 = vrot.lane.b32.xlu0 %v2006, 104
        %v2026 = vpop.permute.xlu0 %2025
        %2029 = vrot.lane.b32.xlu0 %v2003, 96
        %v2030 = vpop.permute.xlu0 %2029
        %2031 = vrot.lane.b32.xlu0 %v2006, 96
        %v2032 = vpop.permute.xlu0 %2031
        %2035 = vrot.lane.b32.xlu0 %v2003, 88
        %v2036 = vpop.permute.xlu0 %2035
        %2037 = vrot.lane.b32.xlu0 %v2006, 88
        %v2038 = vpop.permute.xlu0 %2037
        %2041 = vrot.lane.b32.xlu0 %v2003, 80
        %v2042 = vpop.permute.xlu0 %2041
        %2043 = vrot.lane.b32.xlu0 %v2006, 80
        %v2044 = vpop.permute.xlu0 %2043
        %2047 = vrot.lane.b32.xlu0 %v2003, 72
        %v2048 = vpop.permute.xlu0 %2047
        %2049 = vrot.lane.b32.xlu0 %v2006, 72
        %v2050 = vpop.permute.xlu0 %2049
        %v2053 = vcombine.low %v2003, %v2018
        %v2054 = vcombine.high %v2003, %v2018
        %v2056 = vunpack.c.l.s4 1983009808
        %v2057 = vunpack.c.0.s8 %v2056
        %v2058 = vlaneseq
        %v2059 = vshrl.u32 %v2058, 7
        %v2060 = vsub.s32 %v2057, %v2059
        %v2061 = vrot.slane %v2053, %v2060
        %v2063 = vunpack.c.l.s4 1983009808
        %v2064 = vunpack.c.0.s8 %v2063
        %v2065 = vlaneseq
        %v2066 = vshrl.u32 %v2065, 7
        %v2067 = vsub.s32 %v2064, %v2066
        %v2068 = vrot.slane %v2054, %v2067
        %v2069 = vcombine.low %v2012, %v2024
        %v2070 = vcombine.high %v2012, %v2024
        %v2072 = vunpack.c.l.s4 1983009808
        %v2073 = vunpack.c.0.s8 %v2072
        %v2074 = vlaneseq
        %v2075 = vshrl.u32 %v2074, 7
        %v2076 = vsub.s32 %v2073, %v2075
        %v2077 = vrot.slane %v2069, %v2076
        %v2079 = vunpack.c.l.s4 1983009808
        %v2080 = vunpack.c.0.s8 %v2079
        %v2081 = vlaneseq
        %v2082 = vshrl.u32 %v2081, 7
        %v2083 = vsub.s32 %v2080, %v2082
        %v2084 = vrot.slane %v2070, %v2083
        %v2085 = vcombine.low %v2030, %v2042
        %v2086 = vcombine.high %v2030, %v2042
        %v2088 = vunpack.c.l.s4 1983009808
        %v2089 = vunpack.c.0.s8 %v2088
        %v2090 = vlaneseq
        %v2091 = vshrl.u32 %v2090, 7
        %v2092 = vsub.s32 %v2089, %v2091
        %v2093 = vrot.slane %v2085, %v2092
        %v2095 = vunpack.c.l.s4 1983009808
        %v2096 = vunpack.c.0.s8 %v2095
        %v2097 = vlaneseq
        %v2098 = vshrl.u32 %v2097, 7
        %v2099 = vsub.s32 %v2096, %v2098
        %v2100 = vrot.slane %v2086, %v2099
        %v2101 = vcombine.low %v2036, %v2048
        %v2102 = vcombine.high %v2036, %v2048
        %v2104 = vunpack.c.l.s4 1983009808
        %v2105 = vunpack.c.0.s8 %v2104
        %v2106 = vlaneseq
        %v2107 = vshrl.u32 %v2106, 7
        %v2108 = vsub.s32 %v2105, %v2107
        %v2109 = vrot.slane %v2101, %v2108
        %v2111 = vunpack.c.l.s4 1983009808
        %v2112 = vunpack.c.0.s8 %v2111
        %v2113 = vlaneseq
        %v2114 = vshrl.u32 %v2113, 7
        %v2115 = vsub.s32 %v2112, %v2114
        %v2116 = vrot.slane %v2102, %v2115
        %v2117 = vcombine.low %v2061, %v2077
        %v2118 = vcombine.high %v2061, %v2077
        %v2120 = vunpack.c.l.s4 1934713408
        %v2121 = vunpack.c.0.s8 %v2120
        %v2122 = vlaneseq
        %v2123 = vshrl.u32 %v2122, 7
        %v2124 = vsub.s32 %v2121, %v2123
        %v2125 = vrot.slane %v2117, %v2124
        %v2127 = vunpack.c.l.s4 1934713408
        %v2128 = vunpack.c.0.s8 %v2127
        %v2129 = vlaneseq
        %v2130 = vshrl.u32 %v2129, 7
        %v2131 = vsub.s32 %v2128, %v2130
        %v2132 = vrot.slane %v2118, %v2131
        %v2133 = vcombine.low %v2068, %v2084
        %v2134 = vcombine.high %v2068, %v2084
        %v2136 = vunpack.c.l.s4 1934713408
        %v2137 = vunpack.c.0.s8 %v2136
        %v2138 = vlaneseq
        %v2139 = vshrl.u32 %v2138, 7
        %v2140 = vsub.s32 %v2137, %v2139
        %v2141 = vrot.slane %v2133, %v2140
        %v2143 = vunpack.c.l.s4 1934713408
        %v2144 = vunpack.c.0.s8 %v2143
        %v2145 = vlaneseq
        %v2146 = vshrl.u32 %v2145, 7
        %v2147 = vsub.s32 %v2144, %v2146
        %v2148 = vrot.slane %v2134, %v2147
        %v2149 = vcombine.low %v2093, %v2109
        %v2150 = vcombine.high %v2093, %v2109
        %v2152 = vunpack.c.l.s4 1934713408
        %v2153 = vunpack.c.0.s8 %v2152
        %v2154 = vlaneseq
        %v2155 = vshrl.u32 %v2154, 7
        %v2156 = vsub.s32 %v2153, %v2155
        %v2157 = vrot.slane %v2149, %v2156
        %v2159 = vunpack.c.l.s4 1934713408
        %v2160 = vunpack.c.0.s8 %v2159
        %v2161 = vlaneseq
        %v2162 = vshrl.u32 %v2161, 7
        %v2163 = vsub.s32 %v2160, %v2162
        %v2164 = vrot.slane %v2150, %v2163
        %v2165 = vcombine.low %v2100, %v2116
        %v2166 = vcombine.high %v2100, %v2116
        %v2168 = vunpack.c.l.s4 1934713408
        %v2169 = vunpack.c.0.s8 %v2168
        %v2170 = vlaneseq
        %v2171 = vshrl.u32 %v2170, 7
        %v2172 = vsub.s32 %v2169, %v2171
        %v2173 = vrot.slane %v2165, %v2172
        %v2175 = vunpack.c.l.s4 1934713408
        %v2176 = vunpack.c.0.s8 %v2175
        %v2177 = vlaneseq
        %v2178 = vshrl.u32 %v2177, 7
        %v2179 = vsub.s32 %v2176, %v2178
        %v2180 = vrot.slane %v2166, %v2179
        %v2181 = vcombine.low %v2125, %v2157
        %v2182 = vcombine.high %v2125, %v2157
        %v2183 = vcombine.low %v2132, %v2164
        %v2184 = vcombine.high %v2132, %v2164
        %v2185 = vcombine.low %v2141, %v2173
        %v2186 = vcombine.high %v2141, %v2173
        %v2187 = vcombine.low %v2148, %v2180
        %v2188 = vcombine.high %v2148, %v2180
        %v2189 = vcombine.low %v2006, %v2020
        %v2190 = vcombine.high %v2006, %v2020
        %v2192 = vunpack.c.l.s4 1983009808
        %v2193 = vunpack.c.0.s8 %v2192
        %v2194 = vlaneseq
        %v2195 = vshrl.u32 %v2194, 7
        %v2196 = vsub.s32 %v2193, %v2195
        %v2197 = vrot.slane %v2189, %v2196
        %v2199 = vunpack.c.l.s4 1983009808
        %v2200 = vunpack.c.0.s8 %v2199
        %v2201 = vlaneseq
        %v2202 = vshrl.u32 %v2201, 7
        %v2203 = vsub.s32 %v2200, %v2202
        %v2204 = vrot.slane %v2190, %v2203
        %v2205 = vcombine.low %v2014, %v2026
        %v2206 = vcombine.high %v2014, %v2026
        %v2208 = vunpack.c.l.s4 1983009808
        %v2209 = vunpack.c.0.s8 %v2208
        %v2210 = vlaneseq
        %v2211 = vshrl.u32 %v2210, 7
        %v2212 = vsub.s32 %v2209, %v2211
        %v2213 = vrot.slane %v2205, %v2212
        %v2215 = vunpack.c.l.s4 1983009808
        %v2216 = vunpack.c.0.s8 %v2215
        %v2217 = vlaneseq
        %v2218 = vshrl.u32 %v2217, 7
        %v2219 = vsub.s32 %v2216, %v2218
        %v2220 = vrot.slane %v2206, %v2219
        %v2221 = vcombine.low %v2032, %v2044
        %v2222 = vcombine.high %v2032, %v2044
        %v2224 = vunpack.c.l.s4 1983009808
        %v2225 = vunpack.c.0.s8 %v2224
        %v2226 = vlaneseq
        %v2227 = vshrl.u32 %v2226, 7
        %v2228 = vsub.s32 %v2225, %v2227
        %v2229 = vrot.slane %v2221, %v2228
        %v2231 = vunpack.c.l.s4 1983009808
        %v2232 = vunpack.c.0.s8 %v2231
        %v2233 = vlaneseq
        %v2234 = vshrl.u32 %v2233, 7
        %v2235 = vsub.s32 %v2232, %v2234
        %v2236 = vrot.slane %v2222, %v2235
        %v2237 = vcombine.low %v2038, %v2050
        %v2238 = vcombine.high %v2038, %v2050
        %v2240 = vunpack.c.l.s4 1983009808
        %v2241 = vunpack.c.0.s8 %v2240
        %v2242 = vlaneseq
        %v2243 = vshrl.u32 %v2242, 7
        %v2244 = vsub.s32 %v2241, %v2243
        %v2245 = vrot.slane %v2237, %v2244
        %v2247 = vunpack.c.l.s4 1983009808
        %v2248 = vunpack.c.0.s8 %v2247
        %v2249 = vlaneseq
        %v2250 = vshrl.u32 %v2249, 7
        %v2251 = vsub.s32 %v2248, %v2250
        %v2252 = vrot.slane %v2238, %v2251
        %v2253 = vcombine.low %v2197, %v2213
        %v2254 = vcombine.high %v2197, %v2213
        %v2256 = vunpack.c.l.s4 1934713408
        %v2257 = vunpack.c.0.s8 %v2256
        %v2258 = vlaneseq
        %v2259 = vshrl.u32 %v2258, 7
        %v2260 = vsub.s32 %v2257, %v2259
        %v2261 = vrot.slane %v2253, %v2260
        %v2263 = vunpack.c.l.s4 1934713408
        %v2264 = vunpack.c.0.s8 %v2263
        %v2265 = vlaneseq
        %v2266 = vshrl.u32 %v2265, 7
        %v2267 = vsub.s32 %v2264, %v2266
        %v2268 = vrot.slane %v2254, %v2267
        %v2269 = vcombine.low %v2204, %v2220
        %v2270 = vcombine.high %v2204, %v2220
        %v2272 = vunpack.c.l.s4 1934713408
        %v2273 = vunpack.c.0.s8 %v2272
        %v2274 = vlaneseq
        %v2275 = vshrl.u32 %v2274, 7
        %v2276 = vsub.s32 %v2273, %v2275
        %v2277 = vrot.slane %v2269, %v2276
        %v2279 = vunpack.c.l.s4 1934713408
        %v2280 = vunpack.c.0.s8 %v2279
        %v2281 = vlaneseq
        %v2282 = vshrl.u32 %v2281, 7
        %v2283 = vsub.s32 %v2280, %v2282
        %v2284 = vrot.slane %v2270, %v2283
        %v2285 = vcombine.low %v2229, %v2245
        %v2286 = vcombine.high %v2229, %v2245
        %v2288 = vunpack.c.l.s4 1934713408
        %v2289 = vunpack.c.0.s8 %v2288
        %v2290 = vlaneseq
        %v2291 = vshrl.u32 %v2290, 7
        %v2292 = vsub.s32 %v2289, %v2291
        %v2293 = vrot.slane %v2285, %v2292
        %v2295 = vunpack.c.l.s4 1934713408
        %v2296 = vunpack.c.0.s8 %v2295
        %v2297 = vlaneseq
        %v2298 = vshrl.u32 %v2297, 7
        %v2299 = vsub.s32 %v2296, %v2298
        %v2300 = vrot.slane %v2286, %v2299
        %v2301 = vcombine.low %v2236, %v2252
        %v2302 = vcombine.high %v2236, %v2252
        %v2304 = vunpack.c.l.s4 1934713408
        %v2305 = vunpack.c.0.s8 %v2304
        %v2306 = vlaneseq
        %v2307 = vshrl.u32 %v2306, 7
        %v2308 = vsub.s32 %v2305, %v2307
        %v2309 = vrot.slane %v2301, %v2308
        %v2311 = vunpack.c.l.s4 1934713408
        %v2312 = vunpack.c.0.s8 %v2311
        %v2313 = vlaneseq
        %v2314 = vshrl.u32 %v2313, 7
        %v2315 = vsub.s32 %v2312, %v2314
        %v2316 = vrot.slane %v2302, %v2315
        %v2317 = vcombine.low %v2261, %v2293
        %v2318 = vcombine.high %v2261, %v2293
        %v2319 = vcombine.low %v2268, %v2300
        %v2320 = vcombine.high %v2268, %v2300
        %v2321 = vcombine.low %v2277, %v2309
        %v2322 = vcombine.high %v2277, %v2309
        %v2323 = vcombine.low %v2284, %v2316
        %v2324 = vcombine.high %v2284, %v2316
        %v2325 = vld [vmem:[%s4] sm:$0xf]
        %v2326 = vld [vmem:[%s5] sm:$0xf]
        %v2327 = vld [vmem:[%s5 + $0x4] sm:$0xf]
        %v2328 = vld [vmem:[#allocation2] sm:$0x1]
        %s2329 = vtos %v2328
        %v2330 = vpack.c.bf16 %v2181, %v2181
        %v2331 = vpack.c.bf16 %v2182, %v2182
        %v2332 = vpack.c.bf16 %v2183, %v2183
        %v2333 = vpack.c.bf16 %v2184, %v2184
        %v2334 = vpack.c.bf16 %v2185, %v2185
        %v2335 = vpack.c.bf16 %v2186, %v2186
        %v2336 = vpack.c.bf16 %v2187, %v2187
        %v2337 = vpack.c.bf16 %v2188, %v2188
        %v2338 = vpack.c.bf16 %v2317, %v2317
        %v2339 = vpack.c.bf16 %v2318, %v2318
        %v2340 = vpack.c.bf16 %v2319, %v2319
        %v2341 = vpack.c.bf16 %v2320, %v2320
        %v2342 = vpack.c.bf16 %v2321, %v2321
        %v2343 = vpack.c.bf16 %v2322, %v2322
        %v2344 = vpack.c.bf16 %v2323, %v2323
        %v2345 = vpack.c.bf16 %v2324, %v2324
        %v2347 = vsel %vm1666, %v2330, 0
        %vm2349 = vcmask 1043456
        %v2351 = vsel %vm2349, %v2325, 0
        %2353 = vmatprep.subr.bf16.mxu0 0
        %2354 = vmatpush1.bf16.msra.mxu0 0
        %2355 = vmatprep.subr.bf16.mxu0 0
        %2356 = vmatpush1.bf16.msra.mxu0 0
        %2357 = vmatprep.subr.bf16.mxu0 0
        %2358 = vmatpush1.bf16.msra.mxu0 0
        %2359 = vmatprep.subr.bf16.mxu0 0
        %2360 = vmatpush1.bf16.msra.mxu0 0
        %2361 = vmatprep.subr.bf16.mxu0 0
        %2362 = vmatpush1.bf16.msra.mxu0 0
        %2363 = vmatprep.subr.bf16.mxu0 0
        %2364 = vmatpush1.bf16.msra.mxu0 0
        %2365 = vmatprep.subr.bf16.mxu0 0
        %2366 = vmatpush1.bf16.msra.mxu0 0
        %2367 = vmatprep.subr.bf16.mxu0 0
        %2368 = vmatpush1.bf16.msra.mxu0 %v2351
        %2369 = vmatprep.subr.bf16.mxu0 0
        %2370 = vmatpush2.bf16.msra.mxu0 0
        %2371 = vmatprep.subr.bf16.mxu0 0
        %2372 = vmatpush2.bf16.msra.mxu0 0
        %2373 = vmatprep.subr.bf16.mxu0 0
        %2374 = vmatpush2.bf16.msra.mxu0 0
        %2375 = vmatprep.subr.bf16.mxu0 0
        %2376 = vmatpush2.bf16.msra.mxu0 0
        %2377 = vmatprep.subr.bf16.mxu0 0
        %2378 = vmatpush2.bf16.msra.mxu0 0
        %2379 = vmatprep.subr.bf16.mxu0 0
        %2380 = vmatpush2.bf16.msra.mxu0 0
        %2381 = vmatprep.subr.bf16.mxu0 0
        %2382 = vmatpush2.bf16.msra.mxu0 0
        %2383 = vmatprep.subr.bf16.mxu0 0
        %2384 = vmatpush2.bf16.msra.mxu0 0
        %2385 = vmatprep.mubr.bf16.mxu0 0
        %2386 = vmatmul.mubr.bf16.gmra.mxu0 %v2347
        %v2387 = vpop.f32.mrf.mxu0
        %v2388 = vadd.f32 0.0, %v2387
        %v2389 = vpop.f32.mrf.mxu0
        %v2390 = vpop.f32.mrf.mxu0
        %v2391 = vpop.f32.mrf.mxu0
        %2392 = vdwg.mxu0
        %v2394 = vsel %vm1666, %v2331, 0
        %2396 = vmatprep.subr.bf16.mxu0 0
        %2397 = vmatpush1.bf16.msra.mxu0 0
        %2398 = vmatprep.subr.bf16.mxu0 0
        %2399 = vmatpush1.bf16.msra.mxu0 0
        %2400 = vmatprep.subr.bf16.mxu0 0
        %2401 = vmatpush1.bf16.msra.mxu0 0
        %2402 = vmatprep.subr.bf16.mxu0 0
        %2403 = vmatpush1.bf16.msra.mxu0 0
        %2404 = vmatprep.subr.bf16.mxu0 0
        %2405 = vmatpush1.bf16.msra.mxu0 0
        %2406 = vmatprep.subr.bf16.mxu0 0
        %2407 = vmatpush1.bf16.msra.mxu0 0
        %2408 = vmatprep.subr.bf16.mxu0 0
        %2409 = vmatpush1.bf16.msra.mxu0 0
        %2410 = vmatprep.subr.bf16.mxu0 0
        %2411 = vmatpush1.bf16.msra.mxu0 %v2351
        %2412 = vmatprep.subr.bf16.mxu0 0
        %2413 = vmatpush2.bf16.msra.mxu0 0
        %2414 = vmatprep.subr.bf16.mxu0 0
        %2415 = vmatpush2.bf16.msra.mxu0 0
        %2416 = vmatprep.subr.bf16.mxu0 0
        %2417 = vmatpush2.bf16.msra.mxu0 0
        %2418 = vmatprep.subr.bf16.mxu0 0
        %2419 = vmatpush2.bf16.msra.mxu0 0
        %2420 = vmatprep.subr.bf16.mxu0 0
        %2421 = vmatpush2.bf16.msra.mxu0 0
        %2422 = vmatprep.subr.bf16.mxu0 0
        %2423 = vmatpush2.bf16.msra.mxu0 0
        %2424 = vmatprep.subr.bf16.mxu0 0
        %2425 = vmatpush2.bf16.msra.mxu0 0
        %2426 = vmatprep.subr.bf16.mxu0 0
        %2427 = vmatpush2.bf16.msra.mxu0 0
        %2428 = vmatprep.mubr.bf16.mxu0 0
        %2429 = vmatmul.mubr.bf16.gmra.mxu0 %v2394
        %v2430 = vpop.f32.mrf.mxu0
        %v2431 = vadd.f32 0.0, %v2430
        %v2432 = vpop.f32.mrf.mxu0
        %v2433 = vpop.f32.mrf.mxu0
        %v2434 = vpop.f32.mrf.mxu0
        %2435 = vdwg.mxu0
        %v2437 = vsel %vm1666, %v2332, 0
        %2439 = vmatprep.subr.bf16.mxu0 0
        %2440 = vmatpush1.bf16.msra.mxu0 0
        %2441 = vmatprep.subr.bf16.mxu0 0
        %2442 = vmatpush1.bf16.msra.mxu0 0
        %2443 = vmatprep.subr.bf16.mxu0 0
        %2444 = vmatpush1.bf16.msra.mxu0 0
        %2445 = vmatprep.subr.bf16.mxu0 0
        %2446 = vmatpush1.bf16.msra.mxu0 0
        %2447 = vmatprep.subr.bf16.mxu0 0
        %2448 = vmatpush1.bf16.msra.mxu0 0
        %2449 = vmatprep.subr.bf16.mxu0 0
        %2450 = vmatpush1.bf16.msra.mxu0 0
        %2451 = vmatprep.subr.bf16.mxu0 0
        %2452 = vmatpush1.bf16.msra.mxu0 0
        %2453 = vmatprep.subr.bf16.mxu0 0
        %2454 = vmatpush1.bf16.msra.mxu0 %v2351
        %2455 = vmatprep.subr.bf16.mxu0 0
        %2456 = vmatpush2.bf16.msra.mxu0 0
        %2457 = vmatprep.subr.bf16.mxu0 0
        %2458 = vmatpush2.bf16.msra.mxu0 0
        %2459 = vmatprep.subr.bf16.mxu0 0
        %2460 = vmatpush2.bf16.msra.mxu0 0
        %2461 = vmatprep.subr.bf16.mxu0 0
        %2462 = vmatpush2.bf16.msra.mxu0 0
        %2463 = vmatprep.subr.bf16.mxu0 0
        %2464 = vmatpush2.bf16.msra.mxu0 0
        %2465 = vmatprep.subr.bf16.mxu0 0
        %2466 = vmatpush2.bf16.msra.mxu0 0
        %2467 = vmatprep.subr.bf16.mxu0 0
        %2468 = vmatpush2.bf16.msra.mxu0 0
        %2469 = vmatprep.subr.bf16.mxu0 0
        %2470 = vmatpush2.bf16.msra.mxu0 0
        %2471 = vmatprep.mubr.bf16.mxu0 0
        %2472 = vmatmul.mubr.bf16.gmra.mxu0 %v2437
        %v2473 = vpop.f32.mrf.mxu0
        %v2474 = vadd.f32 0.0, %v2473
        %v2475 = vpop.f32.mrf.mxu0
        %v2476 = vpop.f32.mrf.mxu0
        %v2477 = vpop.f32.mrf.mxu0
        %2478 = vdwg.mxu0
        %v2480 = vsel %vm1666, %v2333, 0
        %2482 = vmatprep.subr.bf16.mxu0 0
        %2483 = vmatpush1.bf16.msra.mxu0 0
        %2484 = vmatprep.subr.bf16.mxu0 0
        %2485 = vmatpush1.bf16.msra.mxu0 0
        %2486 = vmatprep.subr.bf16.mxu0 0
        %2487 = vmatpush1.bf16.msra.mxu0 0
        %2488 = vmatprep.subr.bf16.mxu0 0
        %2489 = vmatpush1.bf16.msra.mxu0 0
        %2490 = vmatprep.subr.bf16.mxu0 0
        %2491 = vmatpush1.bf16.msra.mxu0 0
        %2492 = vmatprep.subr.bf16.mxu0 0
        %2493 = vmatpush1.bf16.msra.mxu0 0
        %2494 = vmatprep.subr.bf16.mxu0 0
        %2495 = vmatpush1.bf16.msra.mxu0 0
        %2496 = vmatprep.subr.bf16.mxu0 0
        %2497 = vmatpush1.bf16.msra.mxu0 %v2351
        %2498 = vmatprep.subr.bf16.mxu0 0
        %2499 = vmatpush2.bf16.msra.mxu0 0
        %2500 = vmatprep.subr.bf16.mxu0 0
        %2501 = vmatpush2.bf16.msra.mxu0 0
        %2502 = vmatprep.subr.bf16.mxu0 0
        %2503 = vmatpush2.bf16.msra.mxu0 0
        %2504 = vmatprep.subr.bf16.mxu0 0
        %2505 = vmatpush2.bf16.msra.mxu0 0
        %2506 = vmatprep.subr.bf16.mxu0 0
        %2507 = vmatpush2.bf16.msra.mxu0 0
        %2508 = vmatprep.subr.bf16.mxu0 0
        %2509 = vmatpush2.bf16.msra.mxu0 0
        %2510 = vmatprep.subr.bf16.mxu0 0
        %2511 = vmatpush2.bf16.msra.mxu0 0
        %2512 = vmatprep.subr.bf16.mxu0 0
        %2513 = vmatpush2.bf16.msra.mxu0 0
        %2514 = vmatprep.mubr.bf16.mxu0 0
        %2515 = vmatmul.mubr.bf16.gmra.mxu0 %v2480
        %v2516 = vpop.f32.mrf.mxu0
        %v2517 = vadd.f32 0.0, %v2516
        %v2518 = vpop.f32.mrf.mxu0
        %v2519 = vpop.f32.mrf.mxu0
        %v2520 = vpop.f32.mrf.mxu0
        %2521 = vdwg.mxu0
        %v2523 = vsel %vm1666, %v2334, 0
        %2525 = vmatprep.subr.bf16.mxu0 0
        %2526 = vmatpush1.bf16.msra.mxu0 0
        %2527 = vmatprep.subr.bf16.mxu0 0
        %2528 = vmatpush1.bf16.msra.mxu0 0
        %2529 = vmatprep.subr.bf16.mxu0 0
        %2530 = vmatpush1.bf16.msra.mxu0 0
        %2531 = vmatprep.subr.bf16.mxu0 0
        %2532 = vmatpush1.bf16.msra.mxu0 0
        %2533 = vmatprep.subr.bf16.mxu0 0
        %2534 = vmatpush1.bf16.msra.mxu0 0
        %2535 = vmatprep.subr.bf16.mxu0 0
        %2536 = vmatpush1.bf16.msra.mxu0 0
        %2537 = vmatprep.subr.bf16.mxu0 0
        %2538 = vmatpush1.bf16.msra.mxu0 0
        %2539 = vmatprep.subr.bf16.mxu0 0
        %2540 = vmatpush1.bf16.msra.mxu0 %v2351
        %2541 = vmatprep.subr.bf16.mxu0 0
        %2542 = vmatpush2.bf16.msra.mxu0 0
        %2543 = vmatprep.subr.bf16.mxu0 0
        %2544 = vmatpush2.bf16.msra.mxu0 0
        %2545 = vmatprep.subr.bf16.mxu0 0
        %2546 = vmatpush2.bf16.msra.mxu0 0
        %2547 = vmatprep.subr.bf16.mxu0 0
        %2548 = vmatpush2.bf16.msra.mxu0 0
        %2549 = vmatprep.subr.bf16.mxu0 0
        %2550 = vmatpush2.bf16.msra.mxu0 0
        %2551 = vmatprep.subr.bf16.mxu0 0
        %2552 = vmatpush2.bf16.msra.mxu0 0
        %2553 = vmatprep.subr.bf16.mxu0 0
        %2554 = vmatpush2.bf16.msra.mxu0 0
        %2555 = vmatprep.subr.bf16.mxu0 0
        %2556 = vmatpush2.bf16.msra.mxu0 0
        %2557 = vmatprep.mubr.bf16.mxu0 0
        %2558 = vmatmul.mubr.bf16.gmra.mxu0 %v2523
        %v2559 = vpop.f32.mrf.mxu0
        %v2560 = vadd.f32 0.0, %v2559
        %v2561 = vpop.f32.mrf.mxu0
        %v2562 = vpop.f32.mrf.mxu0
        %v2563 = vpop.f32.mrf.mxu0
        %2564 = vdwg.mxu0
        %v2566 = vsel %vm1666, %v2335, 0
        %2568 = vmatprep.subr.bf16.mxu0 0
        %2569 = vmatpush1.bf16.msra.mxu0 0
        %2570 = vmatprep.subr.bf16.mxu0 0
        %2571 = vmatpush1.bf16.msra.mxu0 0
        %2572 = vmatprep.subr.bf16.mxu0 0
        %2573 = vmatpush1.bf16.msra.mxu0 0
        %2574 = vmatprep.subr.bf16.mxu0 0
        %2575 = vmatpush1.bf16.msra.mxu0 0
        %2576 = vmatprep.subr.bf16.mxu0 0
        %2577 = vmatpush1.bf16.msra.mxu0 0
        %2578 = vmatprep.subr.bf16.mxu0 0
        %2579 = vmatpush1.bf16.msra.mxu0 0
        %2580 = vmatprep.subr.bf16.mxu0 0
        %2581 = vmatpush1.bf16.msra.mxu0 0
        %2582 = vmatprep.subr.bf16.mxu0 0
        %2583 = vmatpush1.bf16.msra.mxu0 %v2351
        %2584 = vmatprep.subr.bf16.mxu0 0
        %2585 = vmatpush2.bf16.msra.mxu0 0
        %2586 = vmatprep.subr.bf16.mxu0 0
        %2587 = vmatpush2.bf16.msra.mxu0 0
        %2588 = vmatprep.subr.bf16.mxu0 0
        %2589 = vmatpush2.bf16.msra.mxu0 0
        %2590 = vmatprep.subr.bf16.mxu0 0
        %2591 = vmatpush2.bf16.msra.mxu0 0
        %2592 = vmatprep.subr.bf16.mxu0 0
        %2593 = vmatpush2.bf16.msra.mxu0 0
        %2594 = vmatprep.subr.bf16.mxu0 0
        %2595 = vmatpush2.bf16.msra.mxu0 0
        %2596 = vmatprep.subr.bf16.mxu0 0
        %2597 = vmatpush2.bf16.msra.mxu0 0
        %2598 = vmatprep.subr.bf16.mxu0 0
        %2599 = vmatpush2.bf16.msra.mxu0 0
        %2600 = vmatprep.mubr.bf16.mxu0 0
        %2601 = vmatmul.mubr.bf16.gmra.mxu0 %v2566
        %v2602 = vpop.f32.mrf.mxu0
        %v2603 = vadd.f32 0.0, %v2602
        %v2604 = vpop.f32.mrf.mxu0
        %v2605 = vpop.f32.mrf.mxu0
        %v2606 = vpop.f32.mrf.mxu0
        %2607 = vdwg.mxu0
        %v2609 = vsel %vm1666, %v2336, 0
        %2611 = vmatprep.subr.bf16.mxu0 0
        %2612 = vmatpush1.bf16.msra.mxu0 0
        %2613 = vmatprep.subr.bf16.mxu0 0
        %2614 = vmatpush1.bf16.msra.mxu0 0
        %2615 = vmatprep.subr.bf16.mxu0 0
        %2616 = vmatpush1.bf16.msra.mxu0 0
        %2617 = vmatprep.subr.bf16.mxu0 0
        %2618 = vmatpush1.bf16.msra.mxu0 0
        %2619 = vmatprep.subr.bf16.mxu0 0
        %2620 = vmatpush1.bf16.msra.mxu0 0
        %2621 = vmatprep.subr.bf16.mxu0 0
        %2622 = vmatpush1.bf16.msra.mxu0 0
        %2623 = vmatprep.subr.bf16.mxu0 0
        %2624 = vmatpush1.bf16.msra.mxu0 0
        %2625 = vmatprep.subr.bf16.mxu0 0
        %2626 = vmatpush1.bf16.msra.mxu0 %v2351
        %2627 = vmatprep.subr.bf16.mxu0 0
        %2628 = vmatpush2.bf16.msra.mxu0 0
        %2629 = vmatprep.subr.bf16.mxu0 0
        %2630 = vmatpush2.bf16.msra.mxu0 0
        %2631 = vmatprep.subr.bf16.mxu0 0
        %2632 = vmatpush2.bf16.msra.mxu0 0
        %2633 = vmatprep.subr.bf16.mxu0 0
        %2634 = vmatpush2.bf16.msra.mxu0 0
        %2635 = vmatprep.subr.bf16.mxu0 0
        %2636 = vmatpush2.bf16.msra.mxu0 0
        %2637 = vmatprep.subr.bf16.mxu0 0
        %2638 = vmatpush2.bf16.msra.mxu0 0
        %2639 = vmatprep.subr.bf16.mxu0 0
        %2640 = vmatpush2.bf16.msra.mxu0 0
        %2641 = vmatprep.subr.bf16.mxu0 0
        %2642 = vmatpush2.bf16.msra.mxu0 0
        %2643 = vmatprep.mubr.bf16.mxu0 0
        %2644 = vmatmul.mubr.bf16.gmra.mxu0 %v2609
        %v2645 = vpop.f32.mrf.mxu0
        %v2646 = vadd.f32 0.0, %v2645
        %v2647 = vpop.f32.mrf.mxu0
        %v2648 = vpop.f32.mrf.mxu0
        %v2649 = vpop.f32.mrf.mxu0
        %2650 = vdwg.mxu0
        %v2652 = vsel %vm1666, %v2337, 0
        %2654 = vmatprep.subr.bf16.mxu0 0
        %2655 = vmatpush1.bf16.msra.mxu0 0
        %2656 = vmatprep.subr.bf16.mxu0 0
        %2657 = vmatpush1.bf16.msra.mxu0 0
        %2658 = vmatprep.subr.bf16.mxu0 0
        %2659 = vmatpush1.bf16.msra.mxu0 0
        %2660 = vmatprep.subr.bf16.mxu0 0
        %2661 = vmatpush1.bf16.msra.mxu0 0
        %2662 = vmatprep.subr.bf16.mxu0 0
        %2663 = vmatpush1.bf16.msra.mxu0 0
        %2664 = vmatprep.subr.bf16.mxu0 0
        %2665 = vmatpush1.bf16.msra.mxu0 0
        %2666 = vmatprep.subr.bf16.mxu0 0
        %2667 = vmatpush1.bf16.msra.mxu0 0
        %2668 = vmatprep.subr.bf16.mxu0 0
        %2669 = vmatpush1.bf16.msra.mxu0 %v2351
        %2670 = vmatprep.subr.bf16.mxu0 0
        %2671 = vmatpush2.bf16.msra.mxu0 0
        %2672 = vmatprep.subr.bf16.mxu0 0
        %2673 = vmatpush2.bf16.msra.mxu0 0
        %2674 = vmatprep.subr.bf16.mxu0 0
        %2675 = vmatpush2.bf16.msra.mxu0 0
        %2676 = vmatprep.subr.bf16.mxu0 0
        %2677 = vmatpush2.bf16.msra.mxu0 0
        %2678 = vmatprep.subr.bf16.mxu0 0
        %2679 = vmatpush2.bf16.msra.mxu0 0
        %2680 = vmatprep.subr.bf16.mxu0 0
        %2681 = vmatpush2.bf16.msra.mxu0 0
        %2682 = vmatprep.subr.bf16.mxu0 0
        %2683 = vmatpush2.bf16.msra.mxu0 0
        %2684 = vmatprep.subr.bf16.mxu0 0
        %2685 = vmatpush2.bf16.msra.mxu0 0
        %2686 = vmatprep.mubr.bf16.mxu0 0
        %2687 = vmatmul.mubr.bf16.gmra.mxu0 %v2652
        %v2688 = vpop.f32.mrf.mxu0
        %v2689 = vadd.f32 0.0, %v2688
        %v2690 = vpop.f32.mrf.mxu0
        %v2691 = vpop.f32.mrf.mxu0
        %v2692 = vpop.f32.mrf.mxu0
        %2693 = vdwg.mxu0
        %v2695 = vsel %vm1666, %v2338, 0
        %2697 = vmatprep.subr.bf16.mxu0 0
        %2698 = vmatpush1.bf16.msra.mxu0 0
        %2699 = vmatprep.subr.bf16.mxu0 0
        %2700 = vmatpush1.bf16.msra.mxu0 0
        %2701 = vmatprep.subr.bf16.mxu0 0
        %2702 = vmatpush1.bf16.msra.mxu0 0
        %2703 = vmatprep.subr.bf16.mxu0 0
        %2704 = vmatpush1.bf16.msra.mxu0 0
        %2705 = vmatprep.subr.bf16.mxu0 0
        %2706 = vmatpush1.bf16.msra.mxu0 0
        %2707 = vmatprep.subr.bf16.mxu0 0
        %2708 = vmatpush1.bf16.msra.mxu0 0
        %2709 = vmatprep.subr.bf16.mxu0 0
        %2710 = vmatpush1.bf16.msra.mxu0 0
        %2711 = vmatprep.subr.bf16.mxu0 0
        %2712 = vmatpush1.bf16.msra.mxu0 %v2351
        %2713 = vmatprep.subr.bf16.mxu0 0
        %2714 = vmatpush2.bf16.msra.mxu0 0
        %2715 = vmatprep.subr.bf16.mxu0 0
        %2716 = vmatpush2.bf16.msra.mxu0 0
        %2717 = vmatprep.subr.bf16.mxu0 0
        %2718 = vmatpush2.bf16.msra.mxu0 0
        %2719 = vmatprep.subr.bf16.mxu0 0
        %2720 = vmatpush2.bf16.msra.mxu0 0
        %2721 = vmatprep.subr.bf16.mxu0 0
        %2722 = vmatpush2.bf16.msra.mxu0 0
        %2723 = vmatprep.subr.bf16.mxu0 0
        %2724 = vmatpush2.bf16.msra.mxu0 0
        %2725 = vmatprep.subr.bf16.mxu0 0
        %2726 = vmatpush2.bf16.msra.mxu0 0
        %2727 = vmatprep.subr.bf16.mxu0 0
        %2728 = vmatpush2.bf16.msra.mxu0 0
        %2729 = vmatprep.mubr.bf16.mxu0 0
        %2730 = vmatmul.mubr.bf16.gmra.mxu0 %v2695
        %v2731 = vpop.f32.mrf.mxu0
        %v2732 = vadd.f32 0.0, %v2731
        %v2733 = vpop.f32.mrf.mxu0
        %v2734 = vpop.f32.mrf.mxu0
        %v2735 = vpop.f32.mrf.mxu0
        %2736 = vdwg.mxu0
        %v2738 = vsel %vm1666, %v2339, 0
        %2740 = vmatprep.subr.bf16.mxu0 0
        %2741 = vmatpush1.bf16.msra.mxu0 0
        %2742 = vmatprep.subr.bf16.mxu0 0
        %2743 = vmatpush1.bf16.msra.mxu0 0
        %2744 = vmatprep.subr.bf16.mxu0 0
        %2745 = vmatpush1.bf16.msra.mxu0 0
        %2746 = vmatprep.subr.bf16.mxu0 0
        %2747 = vmatpush1.bf16.msra.mxu0 0
        %2748 = vmatprep.subr.bf16.mxu0 0
        %2749 = vmatpush1.bf16.msra.mxu0 0
        %2750 = vmatprep.subr.bf16.mxu0 0
        %2751 = vmatpush1.bf16.msra.mxu0 0
        %2752 = vmatprep.subr.bf16.mxu0 0
        %2753 = vmatpush1.bf16.msra.mxu0 0
        %2754 = vmatprep.subr.bf16.mxu0 0
        %2755 = vmatpush1.bf16.msra.mxu0 %v2351
        %2756 = vmatprep.subr.bf16.mxu0 0
        %2757 = vmatpush2.bf16.msra.mxu0 0
        %2758 = vmatprep.subr.bf16.mxu0 0
        %2759 = vmatpush2.bf16.msra.mxu0 0
        %2760 = vmatprep.subr.bf16.mxu0 0
        %2761 = vmatpush2.bf16.msra.mxu0 0
        %2762 = vmatprep.subr.bf16.mxu0 0
        %2763 = vmatpush2.bf16.msra.mxu0 0
        %2764 = vmatprep.subr.bf16.mxu0 0
        %2765 = vmatpush2.bf16.msra.mxu0 0
        %2766 = vmatprep.subr.bf16.mxu0 0
        %2767 = vmatpush2.bf16.msra.mxu0 0
        %2768 = vmatprep.subr.bf16.mxu0 0
        %2769 = vmatpush2.bf16.msra.mxu0 0
        %2770 = vmatprep.subr.bf16.mxu0 0
        %2771 = vmatpush2.bf16.msra.mxu0 0
        %2772 = vmatprep.mubr.bf16.mxu0 0
        %2773 = vmatmul.mubr.bf16.gmra.mxu0 %v2738
        %v2774 = vpop.f32.mrf.mxu0
        %v2775 = vadd.f32 0.0, %v2774
        %v2776 = vpop.f32.mrf.mxu0
        %v2777 = vpop.f32.mrf.mxu0
        %v2778 = vpop.f32.mrf.mxu0
        %2779 = vdwg.mxu0
        %v2781 = vsel %vm1666, %v2340, 0
        %2783 = vmatprep.subr.bf16.mxu0 0
        %2784 = vmatpush1.bf16.msra.mxu0 0
        %2785 = vmatprep.subr.bf16.mxu0 0
        %2786 = vmatpush1.bf16.msra.mxu0 0
        %2787 = vmatprep.subr.bf16.mxu0 0
        %2788 = vmatpush1.bf16.msra.mxu0 0
        %2789 = vmatprep.subr.bf16.mxu0 0
        %2790 = vmatpush1.bf16.msra.mxu0 0
        %2791 = vmatprep.subr.bf16.mxu0 0
        %2792 = vmatpush1.bf16.msra.mxu0 0
        %2793 = vmatprep.subr.bf16.mxu0 0
        %2794 = vmatpush1.bf16.msra.mxu0 0
        %2795 = vmatprep.subr.bf16.mxu0 0
        %2796 = vmatpush1.bf16.msra.mxu0 0
        %2797 = vmatprep.subr.bf16.mxu0 0
        %2798 = vmatpush1.bf16.msra.mxu0 %v2351
        %2799 = vmatprep.subr.bf16.mxu0 0
        %2800 = vmatpush2.bf16.msra.mxu0 0
        %2801 = vmatprep.subr.bf16.mxu0 0
        %2802 = vmatpush2.bf16.msra.mxu0 0
        %2803 = vmatprep.subr.bf16.mxu0 0
        %2804 = vmatpush2.bf16.msra.mxu0 0
        %2805 = vmatprep.subr.bf16.mxu0 0
        %2806 = vmatpush2.bf16.msra.mxu0 0
        %2807 = vmatprep.subr.bf16.mxu0 0
        %2808 = vmatpush2.bf16.msra.mxu0 0
        %2809 = vmatprep.subr.bf16.mxu0 0
        %2810 = vmatpush2.bf16.msra.mxu0 0
        %2811 = vmatprep.subr.bf16.mxu0 0
        %2812 = vmatpush2.bf16.msra.mxu0 0
        %2813 = vmatprep.subr.bf16.mxu0 0
        %2814 = vmatpush2.bf16.msra.mxu0 0
        %2815 = vmatprep.mubr.bf16.mxu0 0
        %2816 = vmatmul.mubr.bf16.gmra.mxu0 %v2781
        %v2817 = vpop.f32.mrf.mxu0
        %v2818 = vadd.f32 0.0, %v2817
        %v2819 = vpop.f32.mrf.mxu0
        %v2820 = vpop.f32.mrf.mxu0
        %v2821 = vpop.f32.mrf.mxu0
        %2822 = vdwg.mxu0
        %v2824 = vsel %vm1666, %v2341, 0
        %2826 = vmatprep.subr.bf16.mxu0 0
        %2827 = vmatpush1.bf16.msra.mxu0 0
        %2828 = vmatprep.subr.bf16.mxu0 0
        %2829 = vmatpush1.bf16.msra.mxu0 0
        %2830 = vmatprep.subr.bf16.mxu0 0
        %2831 = vmatpush1.bf16.msra.mxu0 0
        %2832 = vmatprep.subr.bf16.mxu0 0
        %2833 = vmatpush1.bf16.msra.mxu0 0
        %2834 = vmatprep.subr.bf16.mxu0 0
        %2835 = vmatpush1.bf16.msra.mxu0 0
        %2836 = vmatprep.subr.bf16.mxu0 0
        %2837 = vmatpush1.bf16.msra.mxu0 0
        %2838 = vmatprep.subr.bf16.mxu0 0
        %2839 = vmatpush1.bf16.msra.mxu0 0
        %2840 = vmatprep.subr.bf16.mxu0 0
        %2841 = vmatpush1.bf16.msra.mxu0 %v2351
        %2842 = vmatprep.subr.bf16.mxu0 0
        %2843 = vmatpush2.bf16.msra.mxu0 0
        %2844 = vmatprep.subr.bf16.mxu0 0
        %2845 = vmatpush2.bf16.msra.mxu0 0
        %2846 = vmatprep.subr.bf16.mxu0 0
        %2847 = vmatpush2.bf16.msra.mxu0 0
        %2848 = vmatprep.subr.bf16.mxu0 0
        %2849 = vmatpush2.bf16.msra.mxu0 0
        %2850 = vmatprep.subr.bf16.mxu0 0
        %2851 = vmatpush2.bf16.msra.mxu0 0
        %2852 = vmatprep.subr.bf16.mxu0 0
        %2853 = vmatpush2.bf16.msra.mxu0 0
        %2854 = vmatprep.subr.bf16.mxu0 0
        %2855 = vmatpush2.bf16.msra.mxu0 0
        %2856 = vmatprep.subr.bf16.mxu0 0
        %2857 = vmatpush2.bf16.msra.mxu0 0
        %2858 = vmatprep.mubr.bf16.mxu0 0
        %2859 = vmatmul.mubr.bf16.gmra.mxu0 %v2824
        %v2860 = vpop.f32.mrf.mxu0
        %v2861 = vadd.f32 0.0, %v2860
        %v2862 = vpop.f32.mrf.mxu0
        %v2863 = vpop.f32.mrf.mxu0
        %v2864 = vpop.f32.mrf.mxu0
        %2865 = vdwg.mxu0
        %v2867 = vsel %vm1666, %v2342, 0
        %2869 = vmatprep.subr.bf16.mxu0 0
        %2870 = vmatpush1.bf16.msra.mxu0 0
        %2871 = vmatprep.subr.bf16.mxu0 0
        %2872 = vmatpush1.bf16.msra.mxu0 0
        %2873 = vmatprep.subr.bf16.mxu0 0
        %2874 = vmatpush1.bf16.msra.mxu0 0
        %2875 = vmatprep.subr.bf16.mxu0 0
        %2876 = vmatpush1.bf16.msra.mxu0 0
        %2877 = vmatprep.subr.bf16.mxu0 0
        %2878 = vmatpush1.bf16.msra.mxu0 0
        %2879 = vmatprep.subr.bf16.mxu0 0
        %2880 = vmatpush1.bf16.msra.mxu0 0
        %2881 = vmatprep.subr.bf16.mxu0 0
        %2882 = vmatpush1.bf16.msra.mxu0 0
        %2883 = vmatprep.subr.bf16.mxu0 0
        %2884 = vmatpush1.bf16.msra.mxu0 %v2351
        %2885 = vmatprep.subr.bf16.mxu0 0
        %2886 = vmatpush2.bf16.msra.mxu0 0
        %2887 = vmatprep.subr.bf16.mxu0 0
        %2888 = vmatpush2.bf16.msra.mxu0 0
        %2889 = vmatprep.subr.bf16.mxu0 0
        %2890 = vmatpush2.bf16.msra.mxu0 0
        %2891 = vmatprep.subr.bf16.mxu0 0
        %2892 = vmatpush2.bf16.msra.mxu0 0
        %2893 = vmatprep.subr.bf16.mxu0 0
        %2894 = vmatpush2.bf16.msra.mxu0 0
        %2895 = vmatprep.subr.bf16.mxu0 0
        %2896 = vmatpush2.bf16.msra.mxu0 0
        %2897 = vmatprep.subr.bf16.mxu0 0
        %2898 = vmatpush2.bf16.msra.mxu0 0
        %2899 = vmatprep.subr.bf16.mxu0 0
        %2900 = vmatpush2.bf16.msra.mxu0 0
        %2901 = vmatprep.mubr.bf16.mxu0 0
        %2902 = vmatmul.mubr.bf16.gmra.mxu0 %v2867
        %v2903 = vpop.f32.mrf.mxu0
        %v2904 = vadd.f32 0.0, %v2903
        %v2905 = vpop.f32.mrf.mxu0
        %v2906 = vpop.f32.mrf.mxu0
        %v2907 = vpop.f32.mrf.mxu0
        %2908 = vdwg.mxu0
        %v2910 = vsel %vm1666, %v2343, 0
        %2912 = vmatprep.subr.bf16.mxu0 0
        %2913 = vmatpush1.bf16.msra.mxu0 0
        %2914 = vmatprep.subr.bf16.mxu0 0
        %2915 = vmatpush1.bf16.msra.mxu0 0
        %2916 = vmatprep.subr.bf16.mxu0 0
        %2917 = vmatpush1.bf16.msra.mxu0 0
        %2918 = vmatprep.subr.bf16.mxu0 0
        %2919 = vmatpush1.bf16.msra.mxu0 0
        %2920 = vmatprep.subr.bf16.mxu0 0
        %2921 = vmatpush1.bf16.msra.mxu0 0
        %2922 = vmatprep.subr.bf16.mxu0 0
        %2923 = vmatpush1.bf16.msra.mxu0 0
        %2924 = vmatprep.subr.bf16.mxu0 0
        %2925 = vmatpush1.bf16.msra.mxu0 0
        %2926 = vmatprep.subr.bf16.mxu0 0
        %2927 = vmatpush1.bf16.msra.mxu0 %v2351
        %2928 = vmatprep.subr.bf16.mxu0 0
        %2929 = vmatpush2.bf16.msra.mxu0 0
        %2930 = vmatprep.subr.bf16.mxu0 0
        %2931 = vmatpush2.bf16.msra.mxu0 0
        %2932 = vmatprep.subr.bf16.mxu0 0
        %2933 = vmatpush2.bf16.msra.mxu0 0
        %2934 = vmatprep.subr.bf16.mxu0 0
        %2935 = vmatpush2.bf16.msra.mxu0 0
        %2936 = vmatprep.subr.bf16.mxu0 0
        %2937 = vmatpush2.bf16.msra.mxu0 0
        %2938 = vmatprep.subr.bf16.mxu0 0
        %2939 = vmatpush2.bf16.msra.mxu0 0
        %2940 = vmatprep.subr.bf16.mxu0 0
        %2941 = vmatpush2.bf16.msra.mxu0 0
        %2942 = vmatprep.subr.bf16.mxu0 0
        %2943 = vmatpush2.bf16.msra.mxu0 0
        %2944 = vmatprep.mubr.bf16.mxu0 0
        %2945 = vmatmul.mubr.bf16.gmra.mxu0 %v2910
        %v2946 = vpop.f32.mrf.mxu0
        %v2947 = vadd.f32 0.0, %v2946
        %v2948 = vpop.f32.mrf.mxu0
        %v2949 = vpop.f32.mrf.mxu0
        %v2950 = vpop.f32.mrf.mxu0
        %2951 = vdwg.mxu0
        %v2953 = vsel %vm1666, %v2344, 0
        %2955 = vmatprep.subr.bf16.mxu0 0
        %2956 = vmatpush1.bf16.msra.mxu0 0
        %2957 = vmatprep.subr.bf16.mxu0 0
        %2958 = vmatpush1.bf16.msra.mxu0 0
        %2959 = vmatprep.subr.bf16.mxu0 0
        %2960 = vmatpush1.bf16.msra.mxu0 0
        %2961 = vmatprep.subr.bf16.mxu0 0
        %2962 = vmatpush1.bf16.msra.mxu0 0
        %2963 = vmatprep.subr.bf16.mxu0 0
        %2964 = vmatpush1.bf16.msra.mxu0 0
        %2965 = vmatprep.subr.bf16.mxu0 0
        %2966 = vmatpush1.bf16.msra.mxu0 0
        %2967 = vmatprep.subr.bf16.mxu0 0
        %2968 = vmatpush1.bf16.msra.mxu0 0
        %2969 = vmatprep.subr.bf16.mxu0 0
        %2970 = vmatpush1.bf16.msra.mxu0 %v2351
        %2971 = vmatprep.subr.bf16.mxu0 0
        %2972 = vmatpush2.bf16.msra.mxu0 0
        %2973 = vmatprep.subr.bf16.mxu0 0
        %2974 = vmatpush2.bf16.msra.mxu0 0
        %2975 = vmatprep.subr.bf16.mxu0 0
        %2976 = vmatpush2.bf16.msra.mxu0 0
        %2977 = vmatprep.subr.bf16.mxu0 0
        %2978 = vmatpush2.bf16.msra.mxu0 0
        %2979 = vmatprep.subr.bf16.mxu0 0
        %2980 = vmatpush2.bf16.msra.mxu0 0
        %2981 = vmatprep.subr.bf16.mxu0 0
        %2982 = vmatpush2.bf16.msra.mxu0 0
        %2983 = vmatprep.subr.bf16.mxu0 0
        %2984 = vmatpush2.bf16.msra.mxu0 0
        %2985 = vmatprep.subr.bf16.mxu0 0
        %2986 = vmatpush2.bf16.msra.mxu0 0
        %2987 = vmatprep.mubr.bf16.mxu0 0
        %2988 = vmatmul.mubr.bf16.gmra.mxu0 %v2953
        %v2989 = vpop.f32.mrf.mxu0
        %v2990 = vadd.f32 0.0, %v2989
        %v2991 = vpop.f32.mrf.mxu0
        %v2992 = vpop.f32.mrf.mxu0
        %v2993 = vpop.f32.mrf.mxu0
        %2994 = vdwg.mxu0
        %v2996 = vsel %vm1666, %v2345, 0
        %2998 = vmatprep.subr.bf16.mxu0 0
        %2999 = vmatpush1.bf16.msra.mxu0 0
        %3000 = vmatprep.subr.bf16.mxu0 0
        %3001 = vmatpush1.bf16.msra.mxu0 0
        %3002 = vmatprep.subr.bf16.mxu0 0
        %3003 = vmatpush1.bf16.msra.mxu0 0
        %3004 = vmatprep.subr.bf16.mxu0 0
        %3005 = vmatpush1.bf16.msra.mxu0 0
        %3006 = vmatprep.subr.bf16.mxu0 0
        %3007 = vmatpush1.bf16.msra.mxu0 0
        %3008 = vmatprep.subr.bf16.mxu0 0
        %3009 = vmatpush1.bf16.msra.mxu0 0
        %3010 = vmatprep.subr.bf16.mxu0 0
        %3011 = vmatpush1.bf16.msra.mxu0 0
        %3012 = vmatprep.subr.bf16.mxu0 0
        %3013 = vmatpush1.bf16.msra.mxu0 %v2351
        %3014 = vmatprep.subr.bf16.mxu0 0
        %3015 = vmatpush2.bf16.msra.mxu0 0
        %3016 = vmatprep.subr.bf16.mxu0 0
        %3017 = vmatpush2.bf16.msra.mxu0 0
        %3018 = vmatprep.subr.bf16.mxu0 0
        %3019 = vmatpush2.bf16.msra.mxu0 0
        %3020 = vmatprep.subr.bf16.mxu0 0
        %3021 = vmatpush2.bf16.msra.mxu0 0
        %3022 = vmatprep.subr.bf16.mxu0 0
        %3023 = vmatpush2.bf16.msra.mxu0 0
        %3024 = vmatprep.subr.bf16.mxu0 0
        %3025 = vmatpush2.bf16.msra.mxu0 0
        %3026 = vmatprep.subr.bf16.mxu0 0
        %3027 = vmatpush2.bf16.msra.mxu0 0
        %3028 = vmatprep.subr.bf16.mxu0 0
        %3029 = vmatpush2.bf16.msra.mxu0 0
        %3030 = vmatprep.mubr.bf16.mxu0 0
        %3031 = vmatmul.mubr.bf16.gmra.mxu0 %v2996
        %v3032 = vpop.f32.mrf.mxu0
        %v3033 = vadd.f32 0.0, %v3032
        %v3034 = vpop.f32.mrf.mxu0
        %v3035 = vpop.f32.mrf.mxu0
        %v3036 = vpop.f32.mrf.mxu0
        %3037 = vdwg.mxu0
        %v3038 = vpack.c.bf16 %v2388, %v2388
        %v3039 = vpack.c.bf16 %v2431, %v2431
        %v3040 = vpack.c.bf16 %v2474, %v2474
        %v3041 = vpack.c.bf16 %v2517, %v2517
        %v3042 = vpack.c.bf16 %v2560, %v2560
        %v3043 = vpack.c.bf16 %v2603, %v2603
        %v3044 = vpack.c.bf16 %v2646, %v2646
        %v3045 = vpack.c.bf16 %v2689, %v2689
        %v3046 = vpack.c.bf16 %v2732, %v2732
        %v3047 = vpack.c.bf16 %v2775, %v2775
        %v3048 = vpack.c.bf16 %v2818, %v2818
        %v3049 = vpack.c.bf16 %v2861, %v2861
        %v3050 = vpack.c.bf16 %v2904, %v2904
        %v3051 = vpack.c.bf16 %v2947, %v2947
        %v3052 = vpack.c.bf16 %v2990, %v2990
        %v3053 = vpack.c.bf16 %v3033, %v3033
        %v3056 = vunpack.c.l.b16 %v2326
        %v3057 = vunpack.c.l.b16 %v2327
        %v3058 = vpack.c.b16 %v3057, %v3056
        %v3060 = vsel %vm1666, %v3058, 0
        %v3063 = vsel %vm2349, %v3038, 0
        %3065 = vmatprep.subr.bf16.mxu0 0
        %3066 = vmatpush1.bf16.msra.mxu0 0
        %3067 = vmatprep.subr.bf16.mxu0 0
        %3068 = vmatpush1.bf16.msra.mxu0 0
        %3069 = vmatprep.subr.bf16.mxu0 0
        %3070 = vmatpush1.bf16.msra.mxu0 0
        %3071 = vmatprep.subr.bf16.mxu0 0
        %3072 = vmatpush1.bf16.msra.mxu0 0
        %3073 = vmatprep.subr.bf16.mxu0 0
        %3074 = vmatpush1.bf16.msra.mxu0 0
        %3075 = vmatprep.subr.bf16.mxu0 0
        %3076 = vmatpush1.bf16.msra.mxu0 0
        %3077 = vmatprep.subr.bf16.mxu0 0
        %3078 = vmatpush1.bf16.msra.mxu0 0
        %3079 = vmatprep.subr.bf16.mxu0 0
        %3080 = vmatpush1.bf16.msra.mxu0 %v3063
        %3081 = vmatprep.subr.bf16.mxu0 0
        %3082 = vmatpush2.bf16.msra.mxu0 0
        %3083 = vmatprep.subr.bf16.mxu0 0
        %3084 = vmatpush2.bf16.msra.mxu0 0
        %3085 = vmatprep.subr.bf16.mxu0 0
        %3086 = vmatpush2.bf16.msra.mxu0 0
        %3087 = vmatprep.subr.bf16.mxu0 0
        %3088 = vmatpush2.bf16.msra.mxu0 0
        %3089 = vmatprep.subr.bf16.mxu0 0
        %3090 = vmatpush2.bf16.msra.mxu0 0
        %3091 = vmatprep.subr.bf16.mxu0 0
        %3092 = vmatpush2.bf16.msra.mxu0 0
        %3093 = vmatprep.subr.bf16.mxu0 0
        %3094 = vmatpush2.bf16.msra.mxu0 0
        %3095 = vmatprep.subr.bf16.mxu0 0
        %3096 = vmatpush2.bf16.msra.mxu0 0
        %3097 = vmatprep.mubr.bf16.mxu0 0
        %3098 = vmatmul.mubr.bf16.gmra.mxu0 %v3060
        %v3099 = vpop.f32.mrf.mxu0
        %v3100 = vadd.f32 0.0, %v3099
        %v3101 = vpop.f32.mrf.mxu0
        %v3102 = vpop.f32.mrf.mxu0
        %v3103 = vadd.f32 0.0, %v3102
        %v3104 = vpop.f32.mrf.mxu0
        %3105 = vdwg.mxu0
        %v3107 = vsel %vm2349, %v3039, 0
        %3109 = vmatprep.subr.bf16.mxu0 0
        %3110 = vmatpush1.bf16.msra.mxu0 0
        %3111 = vmatprep.subr.bf16.mxu0 0
        %3112 = vmatpush1.bf16.msra.mxu0 0
        %3113 = vmatprep.subr.bf16.mxu0 0
        %3114 = vmatpush1.bf16.msra.mxu0 0
        %3115 = vmatprep.subr.bf16.mxu0 0
        %3116 = vmatpush1.bf16.msra.mxu0 0
        %3117 = vmatprep.subr.bf16.mxu0 0
        %3118 = vmatpush1.bf16.msra.mxu0 0
        %3119 = vmatprep.subr.bf16.mxu0 0
        %3120 = vmatpush1.bf16.msra.mxu0 0
        %3121 = vmatprep.subr.bf16.mxu0 0
        %3122 = vmatpush1.bf16.msra.mxu0 0
        %3123 = vmatprep.subr.bf16.mxu0 0
        %3124 = vmatpush1.bf16.msra.mxu0 %v3107
        %3125 = vmatprep.subr.bf16.mxu0 0
        %3126 = vmatpush2.bf16.msra.mxu0 0
        %3127 = vmatprep.subr.bf16.mxu0 0
        %3128 = vmatpush2.bf16.msra.mxu0 0
        %3129 = vmatprep.subr.bf16.mxu0 0
        %3130 = vmatpush2.bf16.msra.mxu0 0
        %3131 = vmatprep.subr.bf16.mxu0 0
        %3132 = vmatpush2.bf16.msra.mxu0 0
        %3133 = vmatprep.subr.bf16.mxu0 0
        %3134 = vmatpush2.bf16.msra.mxu0 0
        %3135 = vmatprep.subr.bf16.mxu0 0
        %3136 = vmatpush2.bf16.msra.mxu0 0
        %3137 = vmatprep.subr.bf16.mxu0 0
        %3138 = vmatpush2.bf16.msra.mxu0 0
        %3139 = vmatprep.subr.bf16.mxu0 0
        %3140 = vmatpush2.bf16.msra.mxu0 0
        %3141 = vmatprep.mubr.bf16.mxu0 0
        %3142 = vmatmul.mubr.bf16.gmra.mxu0 %v3060
        %v3143 = vpop.f32.mrf.mxu0
        %v3144 = vadd.f32 0.0, %v3143
        %v3145 = vpop.f32.mrf.mxu0
        %v3146 = vpop.f32.mrf.mxu0
        %v3147 = vadd.f32 0.0, %v3146
        %v3148 = vpop.f32.mrf.mxu0
        %3149 = vdwg.mxu0
        %v3151 = vsel %vm2349, %v3040, 0
        %3153 = vmatprep.subr.bf16.mxu0 0
        %3154 = vmatpush1.bf16.msra.mxu0 0
        %3155 = vmatprep.subr.bf16.mxu0 0
        %3156 = vmatpush1.bf16.msra.mxu0 0
        %3157 = vmatprep.subr.bf16.mxu0 0
        %3158 = vmatpush1.bf16.msra.mxu0 0
        %3159 = vmatprep.subr.bf16.mxu0 0
        %3160 = vmatpush1.bf16.msra.mxu0 0
        %3161 = vmatprep.subr.bf16.mxu0 0
        %3162 = vmatpush1.bf16.msra.mxu0 0
        %3163 = vmatprep.subr.bf16.mxu0 0
        %3164 = vmatpush1.bf16.msra.mxu0 0
        %3165 = vmatprep.subr.bf16.mxu0 0
        %3166 = vmatpush1.bf16.msra.mxu0 0
        %3167 = vmatprep.subr.bf16.mxu0 0
        %3168 = vmatpush1.bf16.msra.mxu0 %v3151
        %3169 = vmatprep.subr.bf16.mxu0 0
        %3170 = vmatpush2.bf16.msra.mxu0 0
        %3171 = vmatprep.subr.bf16.mxu0 0
        %3172 = vmatpush2.bf16.msra.mxu0 0
        %3173 = vmatprep.subr.bf16.mxu0 0
        %3174 = vmatpush2.bf16.msra.mxu0 0
        %3175 = vmatprep.subr.bf16.mxu0 0
        %3176 = vmatpush2.bf16.msra.mxu0 0
        %3177 = vmatprep.subr.bf16.mxu0 0
        %3178 = vmatpush2.bf16.msra.mxu0 0
        %3179 = vmatprep.subr.bf16.mxu0 0
        %3180 = vmatpush2.bf16.msra.mxu0 0
        %3181 = vmatprep.subr.bf16.mxu0 0
        %3182 = vmatpush2.bf16.msra.mxu0 0
        %3183 = vmatprep.subr.bf16.mxu0 0
        %3184 = vmatpush2.bf16.msra.mxu0 0
        %3185 = vmatprep.mubr.bf16.mxu0 0
        %3186 = vmatmul.mubr.bf16.gmra.mxu0 %v3060
        %v3187 = vpop.f32.mrf.mxu0
        %v3188 = vadd.f32 0.0, %v3187
        %v3189 = vpop.f32.mrf.mxu0
        %v3190 = vpop.f32.mrf.mxu0
        %v3191 = vadd.f32 0.0, %v3190
        %v3192 = vpop.f32.mrf.mxu0
        %3193 = vdwg.mxu0
        %v3195 = vsel %vm2349, %v3041, 0
        %3197 = vmatprep.subr.bf16.mxu0 0
        %3198 = vmatpush1.bf16.msra.mxu0 0
        %3199 = vmatprep.subr.bf16.mxu0 0
        %3200 = vmatpush1.bf16.msra.mxu0 0
        %3201 = vmatprep.subr.bf16.mxu0 0
        %3202 = vmatpush1.bf16.msra.mxu0 0
        %3203 = vmatprep.subr.bf16.mxu0 0
        %3204 = vmatpush1.bf16.msra.mxu0 0
        %3205 = vmatprep.subr.bf16.mxu0 0
        %3206 = vmatpush1.bf16.msra.mxu0 0
        %3207 = vmatprep.subr.bf16.mxu0 0
        %3208 = vmatpush1.bf16.msra.mxu0 0
        %3209 = vmatprep.subr.bf16.mxu0 0
        %3210 = vmatpush1.bf16.msra.mxu0 0
        %3211 = vmatprep.subr.bf16.mxu0 0
        %3212 = vmatpush1.bf16.msra.mxu0 %v3195
        %3213 = vmatprep.subr.bf16.mxu0 0
        %3214 = vmatpush2.bf16.msra.mxu0 0
        %3215 = vmatprep.subr.bf16.mxu0 0
        %3216 = vmatpush2.bf16.msra.mxu0 0
        %3217 = vmatprep.subr.bf16.mxu0 0
        %3218 = vmatpush2.bf16.msra.mxu0 0
        %3219 = vmatprep.subr.bf16.mxu0 0
        %3220 = vmatpush2.bf16.msra.mxu0 0
        %3221 = vmatprep.subr.bf16.mxu0 0
        %3222 = vmatpush2.bf16.msra.mxu0 0
        %3223 = vmatprep.subr.bf16.mxu0 0
        %3224 = vmatpush2.bf16.msra.mxu0 0
        %3225 = vmatprep.subr.bf16.mxu0 0
        %3226 = vmatpush2.bf16.msra.mxu0 0
        %3227 = vmatprep.subr.bf16.mxu0 0
        %3228 = vmatpush2.bf16.msra.mxu0 0
        %3229 = vmatprep.mubr.bf16.mxu0 0
        %3230 = vmatmul.mubr.bf16.gmra.mxu0 %v3060
        %v3231 = vpop.f32.mrf.mxu0
        %v3232 = vadd.f32 0.0, %v3231
        %v3233 = vpop.f32.mrf.mxu0
        %v3234 = vpop.f32.mrf.mxu0
        %v3235 = vadd.f32 0.0, %v3234
        %v3236 = vpop.f32.mrf.mxu0
        %3237 = vdwg.mxu0
        %v3239 = vsel %vm2349, %v3042, 0
        %3241 = vmatprep.subr.bf16.mxu0 0
        %3242 = vmatpush1.bf16.msra.mxu0 0
        %3243 = vmatprep.subr.bf16.mxu0 0
        %3244 = vmatpush1.bf16.msra.mxu0 0
        %3245 = vmatprep.subr.bf16.mxu0 0
        %3246 = vmatpush1.bf16.msra.mxu0 0
        %3247 = vmatprep.subr.bf16.mxu0 0
        %3248 = vmatpush1.bf16.msra.mxu0 0
        %3249 = vmatprep.subr.bf16.mxu0 0
        %3250 = vmatpush1.bf16.msra.mxu0 0
        %3251 = vmatprep.subr.bf16.mxu0 0
        %3252 = vmatpush1.bf16.msra.mxu0 0
        %3253 = vmatprep.subr.bf16.mxu0 0
        %3254 = vmatpush1.bf16.msra.mxu0 0
        %3255 = vmatprep.subr.bf16.mxu0 0
        %3256 = vmatpush1.bf16.msra.mxu0 %v3239
        %3257 = vmatprep.subr.bf16.mxu0 0
        %3258 = vmatpush2.bf16.msra.mxu0 0
        %3259 = vmatprep.subr.bf16.mxu0 0
        %3260 = vmatpush2.bf16.msra.mxu0 0
        %3261 = vmatprep.subr.bf16.mxu0 0
        %3262 = vmatpush2.bf16.msra.mxu0 0
        %3263 = vmatprep.subr.bf16.mxu0 0
        %3264 = vmatpush2.bf16.msra.mxu0 0
        %3265 = vmatprep.subr.bf16.mxu0 0
        %3266 = vmatpush2.bf16.msra.mxu0 0
        %3267 = vmatprep.subr.bf16.mxu0 0
        %3268 = vmatpush2.bf16.msra.mxu0 0
        %3269 = vmatprep.subr.bf16.mxu0 0
        %3270 = vmatpush2.bf16.msra.mxu0 0
        %3271 = vmatprep.subr.bf16.mxu0 0
        %3272 = vmatpush2.bf16.msra.mxu0 0
        %3273 = vmatprep.mubr.bf16.mxu0 0
        %3274 = vmatmul.mubr.bf16.gmra.mxu0 %v3060
        %v3275 = vpop.f32.mrf.mxu0
        %v3276 = vadd.f32 0.0, %v3275
        %v3277 = vpop.f32.mrf.mxu0
        %v3278 = vpop.f32.mrf.mxu0
        %v3279 = vadd.f32 0.0, %v3278
        %v3280 = vpop.f32.mrf.mxu0
        %3281 = vdwg.mxu0
        %v3283 = vsel %vm2349, %v3043, 0
        %3285 = vmatprep.subr.bf16.mxu0 0
        %3286 = vmatpush1.bf16.msra.mxu0 0
        %3287 = vmatprep.subr.bf16.mxu0 0
        %3288 = vmatpush1.bf16.msra.mxu0 0
        %3289 = vmatprep.subr.bf16.mxu0 0
        %3290 = vmatpush1.bf16.msra.mxu0 0
        %3291 = vmatprep.subr.bf16.mxu0 0
        %3292 = vmatpush1.bf16.msra.mxu0 0
        %3293 = vmatprep.subr.bf16.mxu0 0
        %3294 = vmatpush1.bf16.msra.mxu0 0
        %3295 = vmatprep.subr.bf16.mxu0 0
        %3296 = vmatpush1.bf16.msra.mxu0 0
        %3297 = vmatprep.subr.bf16.mxu0 0
        %3298 = vmatpush1.bf16.msra.mxu0 0
        %3299 = vmatprep.subr.bf16.mxu0 0
        %3300 = vmatpush1.bf16.msra.mxu0 %v3283
        %3301 = vmatprep.subr.bf16.mxu0 0
        %3302 = vmatpush2.bf16.msra.mxu0 0
        %3303 = vmatprep.subr.bf16.mxu0 0
        %3304 = vmatpush2.bf16.msra.mxu0 0
        %3305 = vmatprep.subr.bf16.mxu0 0
        %3306 = vmatpush2.bf16.msra.mxu0 0
        %3307 = vmatprep.subr.bf16.mxu0 0
        %3308 = vmatpush2.bf16.msra.mxu0 0
        %3309 = vmatprep.subr.bf16.mxu0 0
        %3310 = vmatpush2.bf16.msra.mxu0 0
        %3311 = vmatprep.subr.bf16.mxu0 0
        %3312 = vmatpush2.bf16.msra.mxu0 0
        %3313 = vmatprep.subr.bf16.mxu0 0
        %3314 = vmatpush2.bf16.msra.mxu0 0
        %3315 = vmatprep.subr.bf16.mxu0 0
        %3316 = vmatpush2.bf16.msra.mxu0 0
        %3317 = vmatprep.mubr.bf16.mxu0 0
        %3318 = vmatmul.mubr.bf16.gmra.mxu0 %v3060
        %v3319 = vpop.f32.mrf.mxu0
        %v3320 = vadd.f32 0.0, %v3319
        %v3321 = vpop.f32.mrf.mxu0
        %v3322 = vpop.f32.mrf.mxu0
        %v3323 = vadd.f32 0.0, %v3322
        %v3324 = vpop.f32.mrf.mxu0
        %3325 = vdwg.mxu0
        %v3327 = vsel %vm2349, %v3044, 0
        %3329 = vmatprep.subr.bf16.mxu0 0
        %3330 = vmatpush1.bf16.msra.mxu0 0
        %3331 = vmatprep.subr.bf16.mxu0 0
        %3332 = vmatpush1.bf16.msra.mxu0 0
        %3333 = vmatprep.subr.bf16.mxu0 0
        %3334 = vmatpush1.bf16.msra.mxu0 0
        %3335 = vmatprep.subr.bf16.mxu0 0
        %3336 = vmatpush1.bf16.msra.mxu0 0
        %3337 = vmatprep.subr.bf16.mxu0 0
        %3338 = vmatpush1.bf16.msra.mxu0 0
        %3339 = vmatprep.subr.bf16.mxu0 0
        %3340 = vmatpush1.bf16.msra.mxu0 0
        %3341 = vmatprep.subr.bf16.mxu0 0
        %3342 = vmatpush1.bf16.msra.mxu0 0
        %3343 = vmatprep.subr.bf16.mxu0 0
        %3344 = vmatpush1.bf16.msra.mxu0 %v3327
        %3345 = vmatprep.subr.bf16.mxu0 0
        %3346 = vmatpush2.bf16.msra.mxu0 0
        %3347 = vmatprep.subr.bf16.mxu0 0
        %3348 = vmatpush2.bf16.msra.mxu0 0
        %3349 = vmatprep.subr.bf16.mxu0 0
        %3350 = vmatpush2.bf16.msra.mxu0 0
        %3351 = vmatprep.subr.bf16.mxu0 0
        %3352 = vmatpush2.bf16.msra.mxu0 0
        %3353 = vmatprep.subr.bf16.mxu0 0
        %3354 = vmatpush2.bf16.msra.mxu0 0
        %3355 = vmatprep.subr.bf16.mxu0 0
        %3356 = vmatpush2.bf16.msra.mxu0 0
        %3357 = vmatprep.subr.bf16.mxu0 0
        %3358 = vmatpush2.bf16.msra.mxu0 0
        %3359 = vmatprep.subr.bf16.mxu0 0
        %3360 = vmatpush2.bf16.msra.mxu0 0
        %3361 = vmatprep.mubr.bf16.mxu0 0
        %3362 = vmatmul.mubr.bf16.gmra.mxu0 %v3060
        %v3363 = vpop.f32.mrf.mxu0
        %v3364 = vadd.f32 0.0, %v3363
        %v3365 = vpop.f32.mrf.mxu0
        %v3366 = vpop.f32.mrf.mxu0
        %v3367 = vadd.f32 0.0, %v3366
        %v3368 = vpop.f32.mrf.mxu0
        %3369 = vdwg.mxu0
        %v3371 = vsel %vm2349, %v3045, 0
        %3373 = vmatprep.subr.bf16.mxu0 0
        %3374 = vmatpush1.bf16.msra.mxu0 0
        %3375 = vmatprep.subr.bf16.mxu0 0
        %3376 = vmatpush1.bf16.msra.mxu0 0
        %3377 = vmatprep.subr.bf16.mxu0 0
        %3378 = vmatpush1.bf16.msra.mxu0 0
        %3379 = vmatprep.subr.bf16.mxu0 0
        %3380 = vmatpush1.bf16.msra.mxu0 0
        %3381 = vmatprep.subr.bf16.mxu0 0
        %3382 = vmatpush1.bf16.msra.mxu0 0
        %3383 = vmatprep.subr.bf16.mxu0 0
        %3384 = vmatpush1.bf16.msra.mxu0 0
        %3385 = vmatprep.subr.bf16.mxu0 0
        %3386 = vmatpush1.bf16.msra.mxu0 0
        %3387 = vmatprep.subr.bf16.mxu0 0
        %3388 = vmatpush1.bf16.msra.mxu0 %v3371
        %3389 = vmatprep.subr.bf16.mxu0 0
        %3390 = vmatpush2.bf16.msra.mxu0 0
        %3391 = vmatprep.subr.bf16.mxu0 0
        %3392 = vmatpush2.bf16.msra.mxu0 0
        %3393 = vmatprep.subr.bf16.mxu0 0
        %3394 = vmatpush2.bf16.msra.mxu0 0
        %3395 = vmatprep.subr.bf16.mxu0 0
        %3396 = vmatpush2.bf16.msra.mxu0 0
        %3397 = vmatprep.subr.bf16.mxu0 0
        %3398 = vmatpush2.bf16.msra.mxu0 0
        %3399 = vmatprep.subr.bf16.mxu0 0
        %3400 = vmatpush2.bf16.msra.mxu0 0
        %3401 = vmatprep.subr.bf16.mxu0 0
        %3402 = vmatpush2.bf16.msra.mxu0 0
        %3403 = vmatprep.subr.bf16.mxu0 0
        %3404 = vmatpush2.bf16.msra.mxu0 0
        %3405 = vmatprep.mubr.bf16.mxu0 0
        %3406 = vmatmul.mubr.bf16.gmra.mxu0 %v3060
        %v3407 = vpop.f32.mrf.mxu0
        %v3408 = vadd.f32 0.0, %v3407
        %v3409 = vpop.f32.mrf.mxu0
        %v3410 = vpop.f32.mrf.mxu0
        %v3411 = vadd.f32 0.0, %v3410
        %v3412 = vpop.f32.mrf.mxu0
        %3413 = vdwg.mxu0
        %v3415 = vsel %vm2349, %v3046, 0
        %3417 = vmatprep.subr.bf16.mxu0 0
        %3418 = vmatpush1.bf16.msra.mxu0 0
        %3419 = vmatprep.subr.bf16.mxu0 0
        %3420 = vmatpush1.bf16.msra.mxu0 0
        %3421 = vmatprep.subr.bf16.mxu0 0
        %3422 = vmatpush1.bf16.msra.mxu0 0
        %3423 = vmatprep.subr.bf16.mxu0 0
        %3424 = vmatpush1.bf16.msra.mxu0 0
        %3425 = vmatprep.subr.bf16.mxu0 0
        %3426 = vmatpush1.bf16.msra.mxu0 0
        %3427 = vmatprep.subr.bf16.mxu0 0
        %3428 = vmatpush1.bf16.msra.mxu0 0
        %3429 = vmatprep.subr.bf16.mxu0 0
        %3430 = vmatpush1.bf16.msra.mxu0 0
        %3431 = vmatprep.subr.bf16.mxu0 0
        %3432 = vmatpush1.bf16.msra.mxu0 %v3415
        %3433 = vmatprep.subr.bf16.mxu0 0
        %3434 = vmatpush2.bf16.msra.mxu0 0
        %3435 = vmatprep.subr.bf16.mxu0 0
        %3436 = vmatpush2.bf16.msra.mxu0 0
        %3437 = vmatprep.subr.bf16.mxu0 0
        %3438 = vmatpush2.bf16.msra.mxu0 0
        %3439 = vmatprep.subr.bf16.mxu0 0
        %3440 = vmatpush2.bf16.msra.mxu0 0
        %3441 = vmatprep.subr.bf16.mxu0 0
        %3442 = vmatpush2.bf16.msra.mxu0 0
        %3443 = vmatprep.subr.bf16.mxu0 0
        %3444 = vmatpush2.bf16.msra.mxu0 0
        %3445 = vmatprep.subr.bf16.mxu0 0
        %3446 = vmatpush2.bf16.msra.mxu0 0
        %3447 = vmatprep.subr.bf16.mxu0 0
        %3448 = vmatpush2.bf16.msra.mxu0 0
        %3449 = vmatprep.mubr.bf16.mxu0 0
        %3450 = vmatmul.mubr.bf16.gmra.mxu0 %v3060
        %v3451 = vpop.f32.mrf.mxu0
        %v3452 = vadd.f32 0.0, %v3451
        %v3453 = vpop.f32.mrf.mxu0
        %v3454 = vpop.f32.mrf.mxu0
        %v3455 = vadd.f32 0.0, %v3454
        %v3456 = vpop.f32.mrf.mxu0
        %3457 = vdwg.mxu0
        %v3459 = vsel %vm2349, %v3047, 0
        %3461 = vmatprep.subr.bf16.mxu0 0
        %3462 = vmatpush1.bf16.msra.mxu0 0
        %3463 = vmatprep.subr.bf16.mxu0 0
        %3464 = vmatpush1.bf16.msra.mxu0 0
        %3465 = vmatprep.subr.bf16.mxu0 0
        %3466 = vmatpush1.bf16.msra.mxu0 0
        %3467 = vmatprep.subr.bf16.mxu0 0
        %3468 = vmatpush1.bf16.msra.mxu0 0
        %3469 = vmatprep.subr.bf16.mxu0 0
        %3470 = vmatpush1.bf16.msra.mxu0 0
        %3471 = vmatprep.subr.bf16.mxu0 0
        %3472 = vmatpush1.bf16.msra.mxu0 0
        %3473 = vmatprep.subr.bf16.mxu0 0
        %3474 = vmatpush1.bf16.msra.mxu0 0
        %3475 = vmatprep.subr.bf16.mxu0 0
        %3476 = vmatpush1.bf16.msra.mxu0 %v3459
        %3477 = vmatprep.subr.bf16.mxu0 0
        %3478 = vmatpush2.bf16.msra.mxu0 0
        %3479 = vmatprep.subr.bf16.mxu0 0
        %3480 = vmatpush2.bf16.msra.mxu0 0
        %3481 = vmatprep.subr.bf16.mxu0 0
        %3482 = vmatpush2.bf16.msra.mxu0 0
        %3483 = vmatprep.subr.bf16.mxu0 0
        %3484 = vmatpush2.bf16.msra.mxu0 0
        %3485 = vmatprep.subr.bf16.mxu0 0
        %3486 = vmatpush2.bf16.msra.mxu0 0
        %3487 = vmatprep.subr.bf16.mxu0 0
        %3488 = vmatpush2.bf16.msra.mxu0 0
        %3489 = vmatprep.subr.bf16.mxu0 0
        %3490 = vmatpush2.bf16.msra.mxu0 0
        %3491 = vmatprep.subr.bf16.mxu0 0
        %3492 = vmatpush2.bf16.msra.mxu0 0
        %3493 = vmatprep.mubr.bf16.mxu0 0
        %3494 = vmatmul.mubr.bf16.gmra.mxu0 %v3060
        %v3495 = vpop.f32.mrf.mxu0
        %v3496 = vadd.f32 0.0, %v3495
        %v3497 = vpop.f32.mrf.mxu0
        %v3498 = vpop.f32.mrf.mxu0
        %v3499 = vadd.f32 0.0, %v3498
        %v3500 = vpop.f32.mrf.mxu0
        %3501 = vdwg.mxu0
        %v3503 = vsel %vm2349, %v3048, 0
        %3505 = vmatprep.subr.bf16.mxu0 0
        %3506 = vmatpush1.bf16.msra.mxu0 0
        %3507 = vmatprep.subr.bf16.mxu0 0
        %3508 = vmatpush1.bf16.msra.mxu0 0
        %3509 = vmatprep.subr.bf16.mxu0 0
        %3510 = vmatpush1.bf16.msra.mxu0 0
        %3511 = vmatprep.subr.bf16.mxu0 0
        %3512 = vmatpush1.bf16.msra.mxu0 0
        %3513 = vmatprep.subr.bf16.mxu0 0
        %3514 = vmatpush1.bf16.msra.mxu0 0
        %3515 = vmatprep.subr.bf16.mxu0 0
        %3516 = vmatpush1.bf16.msra.mxu0 0
        %3517 = vmatprep.subr.bf16.mxu0 0
        %3518 = vmatpush1.bf16.msra.mxu0 0
        %3519 = vmatprep.subr.bf16.mxu0 0
        %3520 = vmatpush1.bf16.msra.mxu0 %v3503
        %3521 = vmatprep.subr.bf16.mxu0 0
        %3522 = vmatpush2.bf16.msra.mxu0 0
        %3523 = vmatprep.subr.bf16.mxu0 0
        %3524 = vmatpush2.bf16.msra.mxu0 0
        %3525 = vmatprep.subr.bf16.mxu0 0
        %3526 = vmatpush2.bf16.msra.mxu0 0
        %3527 = vmatprep.subr.bf16.mxu0 0
        %3528 = vmatpush2.bf16.msra.mxu0 0
        %3529 = vmatprep.subr.bf16.mxu0 0
        %3530 = vmatpush2.bf16.msra.mxu0 0
        %3531 = vmatprep.subr.bf16.mxu0 0
        %3532 = vmatpush2.bf16.msra.mxu0 0
        %3533 = vmatprep.subr.bf16.mxu0 0
        %3534 = vmatpush2.bf16.msra.mxu0 0
        %3535 = vmatprep.subr.bf16.mxu0 0
        %3536 = vmatpush2.bf16.msra.mxu0 0
        %3537 = vmatprep.mubr.bf16.mxu0 0
        %3538 = vmatmul.mubr.bf16.gmra.mxu0 %v3060
        %v3539 = vpop.f32.mrf.mxu0
        %v3540 = vadd.f32 0.0, %v3539
        %v3541 = vpop.f32.mrf.mxu0
        %v3542 = vpop.f32.mrf.mxu0
        %v3543 = vadd.f32 0.0, %v3542
        %v3544 = vpop.f32.mrf.mxu0
        %3545 = vdwg.mxu0
        %v3547 = vsel %vm2349, %v3049, 0
        %3549 = vmatprep.subr.bf16.mxu0 0
        %3550 = vmatpush1.bf16.msra.mxu0 0
        %3551 = vmatprep.subr.bf16.mxu0 0
        %3552 = vmatpush1.bf16.msra.mxu0 0
        %3553 = vmatprep.subr.bf16.mxu0 0
        %3554 = vmatpush1.bf16.msra.mxu0 0
        %3555 = vmatprep.subr.bf16.mxu0 0
        %3556 = vmatpush1.bf16.msra.mxu0 0
        %3557 = vmatprep.subr.bf16.mxu0 0
        %3558 = vmatpush1.bf16.msra.mxu0 0
        %3559 = vmatprep.subr.bf16.mxu0 0
        %3560 = vmatpush1.bf16.msra.mxu0 0
        %3561 = vmatprep.subr.bf16.mxu0 0
        %3562 = vmatpush1.bf16.msra.mxu0 0
        %3563 = vmatprep.subr.bf16.mxu0 0
        %3564 = vmatpush1.bf16.msra.mxu0 %v3547
        %3565 = vmatprep.subr.bf16.mxu0 0
        %3566 = vmatpush2.bf16.msra.mxu0 0
        %3567 = vmatprep.subr.bf16.mxu0 0
        %3568 = vmatpush2.bf16.msra.mxu0 0
        %3569 = vmatprep.subr.bf16.mxu0 0
        %3570 = vmatpush2.bf16.msra.mxu0 0
        %3571 = vmatprep.subr.bf16.mxu0 0
        %3572 = vmatpush2.bf16.msra.mxu0 0
        %3573 = vmatprep.subr.bf16.mxu0 0
        %3574 = vmatpush2.bf16.msra.mxu0 0
        %3575 = vmatprep.subr.bf16.mxu0 0
        %3576 = vmatpush2.bf16.msra.mxu0 0
        %3577 = vmatprep.subr.bf16.mxu0 0
        %3578 = vmatpush2.bf16.msra.mxu0 0
        %3579 = vmatprep.subr.bf16.mxu0 0
        %3580 = vmatpush2.bf16.msra.mxu0 0
        %3581 = vmatprep.mubr.bf16.mxu0 0
        %3582 = vmatmul.mubr.bf16.gmra.mxu0 %v3060
        %v3583 = vpop.f32.mrf.mxu0
        %v3584 = vadd.f32 0.0, %v3583
        %v3585 = vpop.f32.mrf.mxu0
        %v3586 = vpop.f32.mrf.mxu0
        %v3587 = vadd.f32 0.0, %v3586
        %v3588 = vpop.f32.mrf.mxu0
        %3589 = vdwg.mxu0
        %v3591 = vsel %vm2349, %v3050, 0
        %3593 = vmatprep.subr.bf16.mxu0 0
        %3594 = vmatpush1.bf16.msra.mxu0 0
        %3595 = vmatprep.subr.bf16.mxu0 0
        %3596 = vmatpush1.bf16.msra.mxu0 0
        %3597 = vmatprep.subr.bf16.mxu0 0
        %3598 = vmatpush1.bf16.msra.mxu0 0
        %3599 = vmatprep.subr.bf16.mxu0 0
        %3600 = vmatpush1.bf16.msra.mxu0 0
        %3601 = vmatprep.subr.bf16.mxu0 0
        %3602 = vmatpush1.bf16.msra.mxu0 0
        %3603 = vmatprep.subr.bf16.mxu0 0
        %3604 = vmatpush1.bf16.msra.mxu0 0
        %3605 = vmatprep.subr.bf16.mxu0 0
        %3606 = vmatpush1.bf16.msra.mxu0 0
        %3607 = vmatprep.subr.bf16.mxu0 0
        %3608 = vmatpush1.bf16.msra.mxu0 %v3591
        %3609 = vmatprep.subr.bf16.mxu0 0
        %3610 = vmatpush2.bf16.msra.mxu0 0
        %3611 = vmatprep.subr.bf16.mxu0 0
        %3612 = vmatpush2.bf16.msra.mxu0 0
        %3613 = vmatprep.subr.bf16.mxu0 0
        %3614 = vmatpush2.bf16.msra.mxu0 0
        %3615 = vmatprep.subr.bf16.mxu0 0
        %3616 = vmatpush2.bf16.msra.mxu0 0
        %3617 = vmatprep.subr.bf16.mxu0 0
        %3618 = vmatpush2.bf16.msra.mxu0 0
        %3619 = vmatprep.subr.bf16.mxu0 0
        %3620 = vmatpush2.bf16.msra.mxu0 0
        %3621 = vmatprep.subr.bf16.mxu0 0
        %3622 = vmatpush2.bf16.msra.mxu0 0
        %3623 = vmatprep.subr.bf16.mxu0 0
        %3624 = vmatpush2.bf16.msra.mxu0 0
        %3625 = vmatprep.mubr.bf16.mxu0 0
        %3626 = vmatmul.mubr.bf16.gmra.mxu0 %v3060
        %v3627 = vpop.f32.mrf.mxu0
        %v3628 = vadd.f32 0.0, %v3627
        %v3629 = vpop.f32.mrf.mxu0
        %v3630 = vpop.f32.mrf.mxu0
        %v3631 = vadd.f32 0.0, %v3630
        %v3632 = vpop.f32.mrf.mxu0
        %3633 = vdwg.mxu0
        %v3635 = vsel %vm2349, %v3051, 0
        %3637 = vmatprep.subr.bf16.mxu0 0
        %3638 = vmatpush1.bf16.msra.mxu0 0
        %3639 = vmatprep.subr.bf16.mxu0 0
        %3640 = vmatpush1.bf16.msra.mxu0 0
        %3641 = vmatprep.subr.bf16.mxu0 0
        %3642 = vmatpush1.bf16.msra.mxu0 0
        %3643 = vmatprep.subr.bf16.mxu0 0
        %3644 = vmatpush1.bf16.msra.mxu0 0
        %3645 = vmatprep.subr.bf16.mxu0 0
        %3646 = vmatpush1.bf16.msra.mxu0 0
        %3647 = vmatprep.subr.bf16.mxu0 0
        %3648 = vmatpush1.bf16.msra.mxu0 0
        %3649 = vmatprep.subr.bf16.mxu0 0
        %3650 = vmatpush1.bf16.msra.mxu0 0
        %3651 = vmatprep.subr.bf16.mxu0 0
        %3652 = vmatpush1.bf16.msra.mxu0 %v3635
        %3653 = vmatprep.subr.bf16.mxu0 0
        %3654 = vmatpush2.bf16.msra.mxu0 0
        %3655 = vmatprep.subr.bf16.mxu0 0
        %3656 = vmatpush2.bf16.msra.mxu0 0
        %3657 = vmatprep.subr.bf16.mxu0 0
        %3658 = vmatpush2.bf16.msra.mxu0 0
        %3659 = vmatprep.subr.bf16.mxu0 0
        %3660 = vmatpush2.bf16.msra.mxu0 0
        %3661 = vmatprep.subr.bf16.mxu0 0
        %3662 = vmatpush2.bf16.msra.mxu0 0
        %3663 = vmatprep.subr.bf16.mxu0 0
        %3664 = vmatpush2.bf16.msra.mxu0 0
        %3665 = vmatprep.subr.bf16.mxu0 0
        %3666 = vmatpush2.bf16.msra.mxu0 0
        %3667 = vmatprep.subr.bf16.mxu0 0
        %3668 = vmatpush2.bf16.msra.mxu0 0
        %3669 = vmatprep.mubr.bf16.mxu0 0
        %3670 = vmatmul.mubr.bf16.gmra.mxu0 %v3060
        %v3671 = vpop.f32.mrf.mxu0
        %v3672 = vadd.f32 0.0, %v3671
        %v3673 = vpop.f32.mrf.mxu0
        %v3674 = vpop.f32.mrf.mxu0
        %v3675 = vadd.f32 0.0, %v3674
        %v3676 = vpop.f32.mrf.mxu0
        %3677 = vdwg.mxu0
        %v3679 = vsel %vm2349, %v3052, 0
        %3681 = vmatprep.subr.bf16.mxu0 0
        %3682 = vmatpush1.bf16.msra.mxu0 0
        %3683 = vmatprep.subr.bf16.mxu0 0
        %3684 = vmatpush1.bf16.msra.mxu0 0
        %3685 = vmatprep.subr.bf16.mxu0 0
        %3686 = vmatpush1.bf16.msra.mxu0 0
        %3687 = vmatprep.subr.bf16.mxu0 0
        %3688 = vmatpush1.bf16.msra.mxu0 0
        %3689 = vmatprep.subr.bf16.mxu0 0
        %3690 = vmatpush1.bf16.msra.mxu0 0
        %3691 = vmatprep.subr.bf16.mxu0 0
        %3692 = vmatpush1.bf16.msra.mxu0 0
        %3693 = vmatprep.subr.bf16.mxu0 0
        %3694 = vmatpush1.bf16.msra.mxu0 0
        %3695 = vmatprep.subr.bf16.mxu0 0
        %3696 = vmatpush1.bf16.msra.mxu0 %v3679
        %3697 = vmatprep.subr.bf16.mxu0 0
        %3698 = vmatpush2.bf16.msra.mxu0 0
        %3699 = vmatprep.subr.bf16.mxu0 0
        %3700 = vmatpush2.bf16.msra.mxu0 0
        %3701 = vmatprep.subr.bf16.mxu0 0
        %3702 = vmatpush2.bf16.msra.mxu0 0
        %3703 = vmatprep.subr.bf16.mxu0 0
        %3704 = vmatpush2.bf16.msra.mxu0 0
        %3705 = vmatprep.subr.bf16.mxu0 0
        %3706 = vmatpush2.bf16.msra.mxu0 0
        %3707 = vmatprep.subr.bf16.mxu0 0
        %3708 = vmatpush2.bf16.msra.mxu0 0
        %3709 = vmatprep.subr.bf16.mxu0 0
        %3710 = vmatpush2.bf16.msra.mxu0 0
        %3711 = vmatprep.subr.bf16.mxu0 0
        %3712 = vmatpush2.bf16.msra.mxu0 0
        %3713 = vmatprep.mubr.bf16.mxu0 0
        %3714 = vmatmul.mubr.bf16.gmra.mxu0 %v3060
        %v3715 = vpop.f32.mrf.mxu0
        %v3716 = vadd.f32 0.0, %v3715
        %v3717 = vpop.f32.mrf.mxu0
        %v3718 = vpop.f32.mrf.mxu0
        %v3719 = vadd.f32 0.0, %v3718
        %v3720 = vpop.f32.mrf.mxu0
        %3721 = vdwg.mxu0
        %v3723 = vsel %vm2349, %v3053, 0
        %3725 = vmatprep.subr.bf16.mxu0 0
        %3726 = vmatpush1.bf16.msra.mxu0 0
        %3727 = vmatprep.subr.bf16.mxu0 0
        %3728 = vmatpush1.bf16.msra.mxu0 0
        %3729 = vmatprep.subr.bf16.mxu0 0
        %3730 = vmatpush1.bf16.msra.mxu0 0
        %3731 = vmatprep.subr.bf16.mxu0 0
        %3732 = vmatpush1.bf16.msra.mxu0 0
        %3733 = vmatprep.subr.bf16.mxu0 0
        %3734 = vmatpush1.bf16.msra.mxu0 0
        %3735 = vmatprep.subr.bf16.mxu0 0
        %3736 = vmatpush1.bf16.msra.mxu0 0
        %3737 = vmatprep.subr.bf16.mxu0 0
        %3738 = vmatpush1.bf16.msra.mxu0 0
        %3739 = vmatprep.subr.bf16.mxu0 0
        %3740 = vmatpush1.bf16.msra.mxu0 %v3723
        %3741 = vmatprep.subr.bf16.mxu0 0
        %3742 = vmatpush2.bf16.msra.mxu0 0
        %3743 = vmatprep.subr.bf16.mxu0 0
        %3744 = vmatpush2.bf16.msra.mxu0 0
        %3745 = vmatprep.subr.bf16.mxu0 0
        %3746 = vmatpush2.bf16.msra.mxu0 0
        %3747 = vmatprep.subr.bf16.mxu0 0
        %3748 = vmatpush2.bf16.msra.mxu0 0
        %3749 = vmatprep.subr.bf16.mxu0 0
        %3750 = vmatpush2.bf16.msra.mxu0 0
        %3751 = vmatprep.subr.bf16.mxu0 0
        %3752 = vmatpush2.bf16.msra.mxu0 0
        %3753 = vmatprep.subr.bf16.mxu0 0
        %3754 = vmatpush2.bf16.msra.mxu0 0
        %3755 = vmatprep.subr.bf16.mxu0 0
        %3756 = vmatpush2.bf16.msra.mxu0 0
        %3757 = vmatprep.mubr.bf16.mxu0 0
        %3758 = vmatmul.mubr.bf16.gmra.mxu0 %v3060
        %v3759 = vpop.f32.mrf.mxu0
        %v3760 = vadd.f32 0.0, %v3759
        %v3761 = vpop.f32.mrf.mxu0
        %v3762 = vpop.f32.mrf.mxu0
        %v3763 = vadd.f32 0.0, %v3762
        %v3764 = vpop.f32.mrf.mxu0
        %3765 = vdwg.mxu0
        %v3766 = vstv %s2329
        %v3767 = vmul.f32 %v3766, %v3100
        %v3768 = vmul.f32 %v3766, %v3103
        %v3769 = vmul.f32 %v3766, %v3144
        %v3770 = vmul.f32 %v3766, %v3147
        %v3771 = vmul.f32 %v3766, %v3188
        %v3772 = vmul.f32 %v3766, %v3191
        %v3773 = vmul.f32 %v3766, %v3232
        %v3774 = vmul.f32 %v3766, %v3235
        %v3775 = vmul.f32 %v3766, %v3276
        %v3776 = vmul.f32 %v3766, %v3279
        %v3777 = vmul.f32 %v3766, %v3320
        %v3778 = vmul.f32 %v3766, %v3323
        %v3779 = vmul.f32 %v3766, %v3364
        %v3780 = vmul.f32 %v3766, %v3367
        %v3781 = vmul.f32 %v3766, %v3408
        %v3782 = vmul.f32 %v3766, %v3411
        %v3783 = vmul.f32 %v3766, %v3452
        %v3784 = vmul.f32 %v3766, %v3455
        %v3785 = vmul.f32 %v3766, %v3496
        %v3786 = vmul.f32 %v3766, %v3499
        %v3787 = vmul.f32 %v3766, %v3540
        %v3788 = vmul.f32 %v3766, %v3543
        %v3789 = vmul.f32 %v3766, %v3584
        %v3790 = vmul.f32 %v3766, %v3587
        %v3791 = vmul.f32 %v3766, %v3628
        %v3792 = vmul.f32 %v3766, %v3631
        %v3793 = vmul.f32 %v3766, %v3672
        %v3794 = vmul.f32 %v3766, %v3675
        %v3795 = vmul.f32 %v3766, %v3716
        %v3796 = vmul.f32 %v3766, %v3719
        %v3797 = vmul.f32 %v3766, %v3760
        %v3798 = vmul.f32 %v3766, %v3763
        %v3799 = vadd.f32 %v3767, %v280
        %v3800 = vadd.f32 %v3768, %v281
        %v3801 = vadd.f32 %v3769, %v282
        %v3802 = vadd.f32 %v3770, %v283
        %v3803 = vadd.f32 %v3771, %v284
        %v3804 = vadd.f32 %v3772, %v285
        %v3805 = vadd.f32 %v3773, %v286
        %v3806 = vadd.f32 %v3774, %v287
        %v3807 = vadd.f32 %v3775, %v288
        %v3808 = vadd.f32 %v3776, %v289
        %v3809 = vadd.f32 %v3777, %v290
        %v3810 = vadd.f32 %v3778, %v291
        %v3811 = vadd.f32 %v3779, %v292
        %v3812 = vadd.f32 %v3780, %v293
        %v3813 = vadd.f32 %v3781, %v294
        %v3814 = vadd.f32 %v3782, %v295
        %v3815 = vadd.f32 %v3783, %v296
        %v3816 = vadd.f32 %v3784, %v297
        %v3817 = vadd.f32 %v3785, %v298
        %v3818 = vadd.f32 %v3786, %v299
        %v3819 = vadd.f32 %v3787, %v300
        %v3820 = vadd.f32 %v3788, %v301
        %v3821 = vadd.f32 %v3789, %v302
        %v3822 = vadd.f32 %v3790, %v303
        %v3823 = vadd.f32 %v3791, %v304
        %v3824 = vadd.f32 %v3792, %v305
        %v3825 = vadd.f32 %v3793, %v306
        %v3826 = vadd.f32 %v3794, %v307
        %v3827 = vadd.f32 %v3795, %v308
        %v3828 = vadd.f32 %v3796, %v309
        %v3829 = vadd.f32 %v3797, %v310
        %v3830 = vadd.f32 %v3798, %v311
        %3831 = vst.msk [vmem:[%s273] sm:$0xff] %vm340, %v3799
        %3832 = vst.msk [vmem:[%s273 + $0x8] sm:$0xff] %vm340, %v3800
        %3833 = vst.msk [vmem:[%s273 + $0x10] sm:$0xff] %vm340, %v3801
        %3834 = vst.msk [vmem:[%s273 + $0x18] sm:$0xff] %vm340, %v3802
        %3835 = vst.msk [vmem:[%s273 + $0x20] sm:$0xff] %vm340, %v3803
        %3836 = vst.msk [vmem:[%s273 + $0x28] sm:$0xff] %vm340, %v3804
        %3837 = vst.msk [vmem:[%s273 + $0x30] sm:$0xff] %vm340, %v3805
        %3838 = vst.msk [vmem:[%s273 + $0x38] sm:$0xff] %vm340, %v3806
        %3839 = vst.msk [vmem:[%s273 + $0x40] sm:$0xff] %vm340, %v3807
        %3840 = vst.msk [vmem:[%s273 + $0x48] sm:$0xff] %vm340, %v3808
        %3841 = vst.msk [vmem:[%s273 + $0x50] sm:$0xff] %vm340, %v3809
        %3842 = vst.msk [vmem:[%s273 + $0x58] sm:$0xff] %vm340, %v3810
        %3843 = vst.msk [vmem:[%s273 + $0x60] sm:$0xff] %vm340, %v3811
        %3844 = vst.msk [vmem:[%s273 + $0x68] sm:$0xff] %vm340, %v3812
        %3845 = vst.msk [vmem:[%s273 + $0x70] sm:$0xff] %vm340, %v3813
        %3846 = vst.msk [vmem:[%s273 + $0x78] sm:$0xff] %vm340, %v3814
        %3847 = vst.msk [vmem:[%s273 + $0x80] sm:$0xff] %vm340, %v3815
        %3848 = vst.msk [vmem:[%s273 + $0x88] sm:$0xff] %vm340, %v3816
        %3849 = vst.msk [vmem:[%s273 + $0x90] sm:$0xff] %vm340, %v3817
        %3850 = vst.msk [vmem:[%s273 + $0x98] sm:$0xff] %vm340, %v3818
        %3851 = vst.msk [vmem:[%s273 + $0xa0] sm:$0xff] %vm340, %v3819
        %3852 = vst.msk [vmem:[%s273 + $0xa8] sm:$0xff] %vm340, %v3820
        %3853 = vst.msk [vmem:[%s273 + $0xb0] sm:$0xff] %vm340, %v3821
        %3854 = vst.msk [vmem:[%s273 + $0xb8] sm:$0xff] %vm340, %v3822
        %3855 = vst.msk [vmem:[%s273 + $0xc0] sm:$0xff] %vm340, %v3823
        %3856 = vst.msk [vmem:[%s273 + $0xc8] sm:$0xff] %vm340, %v3824
        %3857 = vst.msk [vmem:[%s273 + $0xd0] sm:$0xff] %vm340, %v3825
        %3858 = vst.msk [vmem:[%s273 + $0xd8] sm:$0xff] %vm340, %v3826
        %3859 = vst.msk [vmem:[%s273 + $0xe0] sm:$0xff] %vm340, %v3827
        %3860 = vst.msk [vmem:[%s273 + $0xe8] sm:$0xff] %vm340, %v3828
        %3861 = vst.msk [vmem:[%s273 + $0xf0] sm:$0xff] %vm340, %v3829
        %3862 = vst.msk [vmem:[%s273 + $0xf8] sm:$0xff] %vm340, %v3830
        %s3863 = sand.u32 %s183, 1
        %s3864 = scalar_lea.sflag [#allocation4], %s3863
        %s3865 = sand.u32 %s183, 1
        %s3866 = smul.addr %s3865, 256
        %s3867 = scalar_lea.vmem [#allocation3], %s3866
        // Predicated region
        $region49: #{tpu_custom_call.1} parent=47 // pred_check
          %p3868 = pneg %p193
        $region50: #{tpu_custom_call.1} parent=47 // pred_check_branch
          %3870 = sbr.rel (%p3868) target = $region52
        $region51: #{tpu_custom_call.1} parent=47 // pred_region
          %s3872 = ssub.s32 4096, 4096
          %3873 = vsyncadd %s3864, %s3872
          %s3874 = smul.addr %s23, 32
          %s3875 = smul.addr %s3874, 128
          %s3876 = scalar_lea.hbm %s7, %s3875
          %s3877 = sshll.u32 %s3867, 4
          %s3878 = int_to_ptr.vmem [resolvable:$true] %s3877
          %3883 = dma.vmem_to_hbm [thread:$0]  %s3878, 4096, %s3876, %s3864, 128, 128, 8
        $region52: #{tpu_custom_call.1} parent=47 // pred_fallthru
          _
      $region48: #{tpu_custom_call.1} parent=5 // pred_fallthru
        _
      %p3884 = scmp.le.s32.totalorder 2, %s18
      // Predicated region
      $region53: #{tpu_custom_call.1} parent=5 // pred_check
        %p3885 = pneg %p3884
      $region54: #{tpu_custom_call.1} parent=5 // pred_check_branch
        %3887 = sbr.rel (%p3885) target = $region56
      $region55: #{tpu_custom_call.1} parent=5 // pred_region
        %s3888 = ssub.s32 %s18, 2
        // Predicated region
        $region57: #{tpu_custom_call.1} parent=55 // pred_check
          %p3889 = pneg %p199
        $region58: #{tpu_custom_call.1} parent=55 // pred_check_branch
          %3891 = sbr.rel (%p3889) target = $region60
        $region59: #{tpu_custom_call.1} parent=55 // pred_region
          %s3892 = sand.u32 %s184, 1
          %s3893 = scalar_lea.sflag [#allocation4], %s3892
          %s3894 = sand.u32 %s184, 1
          %s3895 = smul.addr %s3894, 256
          %s3896 = scalar_lea.vmem [#allocation3], %s3895
          %3897 = dma.done %s3893, 4096
        $region60: #{tpu_custom_call.1} parent=55 // pred_fallthru
          _
      $region56: #{tpu_custom_call.1} parent=5 // pred_fallthru
        _
    $region6: #{tpu_custom_call.1} parent=1 // loop_footer
      %s22 = sadd.s32 1, %s18
    $region7: #{tpu_custom_call.1} parent=1 // loop_footer_branch
      %17 = sbr.rel target = $region3
    $region8: #{tpu_custom_call.1} parent=1 // loop_exit
      _
    %3898 = vsyncpa [#allocation4], 1
    %s3899 = scalar_lea.sflag [#allocation4], 1
    %3900 = vsyncpa %s3899, 1

// kernel: tpu_custom_call.1
$region0: #{tpu_custom_call.1}
  #allocation0 [shape = 'u32[]', space=smem, size = 0x4, offset = 0x4, fixed_abs, tag = 'smem constant byte address 0x4 - core index']
  #allocation1 [shape = 'u32[144,128]{1,0:T(1,128)}', space=vmem, size = 0x12000, scoped, tag = 'internal scratch']
  %s0 = inlined_call_operand.vmem [shape: f32[2,17,16,16], index: 0, kind: input, shape index: {}]
  %s1 = inlined_call_operand.vmem [shape: bf16[16,8], index: 1, kind: input, shape index: {}]
  %s2 = inlined_call_operand.vmem [shape: bf16[8,16], index: 2, kind: input, shape index: {}]
  %s3 = inlined_call_operand.vmem [shape: f32[2,17,8,8], index: 3, kind: output, shape index: {}]
  %s4 = sld [smem:[#allocation0]]
  $region45: #{tpu_custom_call.1} parent=0
    _
  %s6 = ssub.s32 1, %s4
  %s7 = scalar_select 0, %s6, %s4
  loop: start=0, step=1, limit=4
  $region2: #{tpu_custom_call.1} parent=0 // loop_pre_header
    _
  $region3: #{tpu_custom_call.1} parent=0 // loop_header
    %s9 = sphi 0, %s13
    %p10 = scmp.ge.s32.totalorder %s9, 4
    %s19 = sphi 0, %s21
    %s22 = sphi 0, %s19
    %s23 = sphi 0, %s22
    %s39 = sphi 0, %s23
    %s43 = sphi 0, %s43
    %s45 = sphi 0, %s43
    %s46 = sphi 0, %s45
    %s60 = sphi 0, %s46
    %s64 = sphi 0, %s64
    %s66 = sphi 0, %s64
    %s67 = sphi 0, %s66
    %s81 = sphi 0, %s67
    %s87 = sphi 0, %s89
    %s90 = sphi 0, %s87
    %s91 = sphi 0, %s90
    %s107 = sphi 0, %s91
  $region4: #{tpu_custom_call.1} parent=0 // loop_header_branch
    %12 = sbr.rel (%p10) target = $region8
  $region5: #{tpu_custom_call.1} parent=0 // loop_body
    %s14 = ssub.s32 %s9, 1
    %s15 = ssub.s32 %s9, 2
    %s16 = sadd.s32 %s9, 1
    %s17 = ssub.s32 %s9, %s16
    %p18 = scmp.eq.s32.totalorder %s17, 0
    %s20 = sadd.s32 %s19, 1
    %s21 = scalar_select %p18, %s19, %s20
    %p24 = pneg %p18
    %p25 = scmp.eq.s32.totalorder %s9, 1
    %p26 = por %p24, %p25
    %p27 = scmp.ne.s32.totalorder %s19, %s22
    %p28 = scmp.eq.s32.totalorder %s9, 0
    %p29 = por %p27, %p28
    %p30 = scmp.ne.s32.totalorder %s19, %s22
    %p31 = scmp.eq.s32.totalorder %s14, 1
    %p32 = por %p30, %p31
    %p33 = scmp.ne.s32.totalorder %s22, %s23
    %p34 = scmp.eq.s32.totalorder %s14, 0
    %p35 = por %p33, %p34
    %p36 = scmp.ne.s32.totalorder %s22, %s23
    %p37 = scmp.eq.s32.totalorder %s15, 1
    %p38 = por %p36, %p37
    %p40 = scmp.ne.s32.totalorder %s23, %s39
    %p41 = scmp.eq.s32.totalorder %s15, 0
    %p42 = por %p40, %p41
    %s44 = sadd.s32 %s43, 1
    %p47 = scmp.eq.s32.totalorder %s9, 1
    %p48 = scmp.ne.s32.totalorder %s43, %s45
    %p49 = scmp.eq.s32.totalorder %s9, 0
    %p50 = por %p48, %p49
    %p51 = scmp.ne.s32.totalorder %s43, %s45
    %p52 = scmp.eq.s32.totalorder %s14, 1
    %p53 = por %p51, %p52
    %p54 = scmp.ne.s32.totalorder %s45, %s46
    %p55 = scmp.eq.s32.totalorder %s14, 0
    %p56 = por %p54, %p55
    %p57 = scmp.ne.s32.totalorder %s45, %s46
    %p58 = scmp.eq.s32.totalorder %s15, 1
    %p59 = por %p57, %p58
    %p61 = scmp.ne.s32.totalorder %s46, %s60
    %p62 = scmp.eq.s32.totalorder %s15, 0
    %p63 = por %p61, %p62
    %s65 = sadd.s32 %s64, 1
    %p68 = scmp.eq.s32.totalorder %s9, 1
    %p69 = scmp.ne.s32.totalorder %s64, %s66
    %p70 = scmp.eq.s32.totalorder %s9, 0
    %p71 = por %p69, %p70
    %p72 = scmp.ne.s32.totalorder %s64, %s66
    %p73 = scmp.eq.s32.totalorder %s14, 1
    %p74 = por %p72, %p73
    %p75 = scmp.ne.s32.totalorder %s66, %s67
    %p76 = scmp.eq.s32.totalorder %s14, 0
    %p77 = por %p75, %p76
    %p78 = scmp.ne.s32.totalorder %s66, %s67
    %p79 = scmp.eq.s32.totalorder %s15, 1
    %p80 = por %p78, %p79
    %p82 = scmp.ne.s32.totalorder %s67, %s81
    %p83 = scmp.eq.s32.totalorder %s15, 0
    %p84 = por %p82, %p83
    %s85 = ssub.s32 %s9, %s16
    %p86 = scmp.eq.s32.totalorder %s85, 0
    %s88 = sadd.s32 %s87, 1
    %s89 = scalar_select %p86, %s87, %s88
    %p92 = pneg %p86
    %p93 = scmp.eq.s32.totalorder %s9, 1
    %p94 = por %p92, %p93
    %p95 = scmp.ne.s32.totalorder %s87, %s90
    %p96 = scmp.eq.s32.totalorder %s9, 0
    %p97 = por %p95, %p96
    %p98 = scmp.ne.s32.totalorder %s87, %s90
    %p99 = scmp.eq.s32.totalorder %s14, 1
    %p100 = por %p98, %p99
    %p101 = scmp.ne.s32.totalorder %s90, %s91
    %p102 = scmp.eq.s32.totalorder %s14, 0
    %p103 = por %p101, %p102
    %p104 = scmp.ne.s32.totalorder %s90, %s91
    %p105 = scmp.eq.s32.totalorder %s15, 1
    %p106 = por %p104, %p105
    %p108 = scmp.ne.s32.totalorder %s91, %s107
    %p109 = scmp.eq.s32.totalorder %s15, 0
    %p110 = por %p108, %p109
    %p111 = scmp.le.s32.totalorder 1, %s9
    %p112 = scmp.lt.s32.totalorder %s9, 3
    %p113 = pnand %p111, %p112
    %p114 = pneg %p113
    // Predicated region
    $region9: #{tpu_custom_call.1} parent=5 // pred_check
      _
    $region10: #{tpu_custom_call.1} parent=5 // pred_check_branch
      %116 = sbr.rel (%p113) target = $region12
    $region11: #{tpu_custom_call.1} parent=5 // pred_region
      %s117 = ssub.s32 %s9, 1
      // Predicated region
      $region13: #{tpu_custom_call.1} parent=11 // pred_check
        %p118 = pneg %p56
      $region14: #{tpu_custom_call.1} parent=11 // pred_check_branch
        %120 = sbr.rel (%p118) target = $region16
      $region15: #{tpu_custom_call.1} parent=11 // pred_region
        _
      $region16: #{tpu_custom_call.1} parent=11 // pred_fallthru
        _
      // Predicated region
      $region17: #{tpu_custom_call.1} parent=11 // pred_check
        %p121 = pneg %p77
      $region18: #{tpu_custom_call.1} parent=11 // pred_check_branch
        %123 = sbr.rel (%p121) target = $region20
      $region19: #{tpu_custom_call.1} parent=11 // pred_region
        _
      $region20: #{tpu_custom_call.1} parent=11 // pred_fallthru
        _
    $region12: #{tpu_custom_call.1} parent=5 // pred_fallthru
      _
    %p124 = scmp.lt.s32.totalorder %s9, 2
    // Predicated region
    $region21: #{tpu_custom_call.1} parent=5 // pred_check
      %p125 = pneg %p124
    $region22: #{tpu_custom_call.1} parent=5 // pred_check_branch
      %127 = sbr.rel (%p125) target = $region24
    $region23: #{tpu_custom_call.1} parent=5 // pred_region
      // Predicated region
      $region25: #{tpu_custom_call.1} parent=23 // pred_check
        %p128 = pneg %p29
      $region26: #{tpu_custom_call.1} parent=23 // pred_check_branch
        %130 = sbr.rel (%p128) target = $region28
      $region27: #{tpu_custom_call.1} parent=23 // pred_region
        %p131 = scmp.lt.s32.totalorder %s9, 1
        %s132 = scalar_select %p131, %s9, 1
        %s133 = smul.addr %s132, 34
        %s134 = smul.addr %s133, 8
        %s135 = scalar_lea.vmem %s0, %s134
      $region28: #{tpu_custom_call.1} parent=23 // pred_fallthru
        _
    $region24: #{tpu_custom_call.1} parent=5 // pred_fallthru
      _
    %p136 = scmp.le.s32.totalorder 1, %s9
    %p137 = scmp.lt.s32.totalorder %s9, 3
    %p138 = pnand %p136, %p137
    %p139 = pneg %p138
    // Predicated region
    $region29: #{tpu_custom_call.1} parent=5 // pred_check
      _
    $region30: #{tpu_custom_call.1} parent=5 // pred_check_branch
      %141 = sbr.rel (%p138) target = $region32
    $region31: #{tpu_custom_call.1} parent=5 // pred_region
      %s142 = ssub.s32 %s9, 1
      %p143 = scmp.lt.s32.totalorder %s14, 1
      %s144 = scalar_select %p143, %s14, 1
      %s145 = smul.addr %s144, 34
      %s146 = smul.addr %s145, 8
      %s147 = scalar_lea.vmem %s0, %s146
      %p148 = pneg %p35
      %p149 = pneg %p32
      %p150 = pneg %p56
      %p151 = pneg %p53
      %p152 = pneg %p77
      %p153 = pneg %p74
      %p154 = pneg %p103
      %p155 = pneg %p100
      %p156 = scmp.lt.s32.totalorder %s14, 1
      %s157 = scalar_select %p156, %s14, 1
      %s158 = smul.addr %s157, 17
      %s159 = smul.addr %s158, 8
      %s160 = scalar_lea.vmem %s3, %s159
      %p161 = scmp.lt.s32.totalorder %s14, 1
      %s162 = scalar_select %p161, %s14, 1
      %s163 = smul.addr %s162, 34
      %s164 = smul.addr %s163, 8
      %s165 = scalar_lea.vmem %s0, %s164
      %p166 = scmp.lt.s32.totalorder %s14, 1
      %s167 = scalar_select %p166, %s14, 1
      %s168 = smul.addr %s167, 17
      %s169 = smul.addr %s168, 8
      %s170 = scalar_lea.vmem %s3, %s169
      %v172 = vld [vmem:[%s165] sm:$0xff]
      %v173 = vld [vmem:[%s165 + $0x8] sm:$0xff]
      %v174 = vld [vmem:[%s165 + $0x10] sm:$0xff]
      %v175 = vld [vmem:[%s165 + $0x18] sm:$0xff]
      %v176 = vld [vmem:[%s165 + $0x20] sm:$0xff]
      %v177 = vld [vmem:[%s165 + $0x28] sm:$0xff]
      %v178 = vld [vmem:[%s165 + $0x30] sm:$0xff]
      %v179 = vld [vmem:[%s165 + $0x38] sm:$0xff]
      %v180 = vld [vmem:[%s165 + $0x40] sm:$0xff]
      %v181 = vld [vmem:[%s165 + $0x48] sm:$0xff]
      %v182 = vld [vmem:[%s165 + $0x50] sm:$0xff]
      %v183 = vld [vmem:[%s165 + $0x58] sm:$0xff]
      %v184 = vld [vmem:[%s165 + $0x60] sm:$0xff]
      %v185 = vld [vmem:[%s165 + $0x68] sm:$0xff]
      %v186 = vld [vmem:[%s165 + $0x70] sm:$0xff]
      %v187 = vld [vmem:[%s165 + $0x78] sm:$0xff]
      %v188 = vld [vmem:[%s165 + $0x80] sm:$0xff]
      %v189 = vld [vmem:[%s165 + $0x88] sm:$0xff]
      %v190 = vld [vmem:[%s165 + $0x90] sm:$0xff]
      %v191 = vld [vmem:[%s165 + $0x98] sm:$0xff]
      %v192 = vld [vmem:[%s165 + $0xa0] sm:$0xff]
      %v193 = vld [vmem:[%s165 + $0xa8] sm:$0xff]
      %v194 = vld [vmem:[%s165 + $0xb0] sm:$0xff]
      %v195 = vld [vmem:[%s165 + $0xb8] sm:$0xff]
      %v196 = vld [vmem:[%s165 + $0xc0] sm:$0xff]
      %v197 = vld [vmem:[%s165 + $0xc8] sm:$0xff]
      %v198 = vld [vmem:[%s165 + $0xd0] sm:$0xff]
      %v199 = vld [vmem:[%s165 + $0xd8] sm:$0xff]
      %v200 = vld [vmem:[%s165 + $0xe0] sm:$0xff]
      %v201 = vld [vmem:[%s165 + $0xe8] sm:$0xff]
      %v202 = vld [vmem:[%s165 + $0xf0] sm:$0xff]
      %v203 = vld [vmem:[%s165 + $0xf8] sm:$0xff]
      %v204 = vld [vmem:[%s165 + $0x100] sm:$0xff]
      %v205 = vld [vmem:[%s165 + $0x108] sm:$0xff]
      %v206 = vld [vmem:[%s1] sm:$0xf]
      %v207 = vld [vmem:[%s1 + $0x4] sm:$0xf]
      %v208 = vld [vmem:[%s2] sm:$0xf]
      %v209 = vpack.c.bf16 %v173, %v172
      %v210 = vpack.c.bf16 %v175, %v174
      %v211 = vpack.c.bf16 %v177, %v176
      %v212 = vpack.c.bf16 %v179, %v178
      %v213 = vpack.c.bf16 %v181, %v180
      %v214 = vpack.c.bf16 %v183, %v182
      %v215 = vpack.c.bf16 %v185, %v184
      %v216 = vpack.c.bf16 %v187, %v186
      %v217 = vpack.c.bf16 %v189, %v188
      %v218 = vpack.c.bf16 %v191, %v190
      %v219 = vpack.c.bf16 %v193, %v192
      %v220 = vpack.c.bf16 %v195, %v194
      %v221 = vpack.c.bf16 %v197, %v196
      %v222 = vpack.c.bf16 %v199, %v198
      %v223 = vpack.c.bf16 %v201, %v200
      %v224 = vpack.c.bf16 %v203, %v202
      %v225 = vpack.c.bf16 %v205, %v204
      %v228 = vunpack.c.l.b16 %v206
      %v229 = vunpack.c.l.b16 %v207
      %v230 = vpack.c.b16 %v229, %v228
      %vm232 = vcmask 130048
      %v234 = vsel %vm232, %v209, 0
      %v237 = vsel %vm232, %v210, 0
      %v240 = vsel %vm232, %v211, 0
      %v243 = vsel %vm232, %v212, 0
      %v246 = vsel %vm232, %v213, 0
      %v249 = vsel %vm232, %v214, 0
      %v252 = vsel %vm232, %v215, 0
      %v255 = vsel %vm232, %v216, 0
      %v258 = vsel %vm232, %v217, 0
      %v261 = vsel %vm232, %v218, 0
      %v264 = vsel %vm232, %v219, 0
      %v267 = vsel %vm232, %v220, 0
      %v270 = vsel %vm232, %v221, 0
      %v273 = vsel %vm232, %v222, 0
      %v276 = vsel %vm232, %v223, 0
      %v279 = vsel %vm232, %v224, 0
      %v282 = vsel %vm232, %v225, 0
      %284 = vmatprep.subr.bf16.mxu0 0
      %285 = vmatpush1.bf16.msra.mxu0 0
      %286 = vmatprep.subr.bf16.mxu0 0
      %287 = vmatpush1.bf16.msra.mxu0 0
      %288 = vmatprep.subr.bf16.mxu0 0
      %289 = vmatpush1.bf16.msra.mxu0 0
      %290 = vmatprep.subr.bf16.mxu0 0
      %291 = vmatpush1.bf16.msra.mxu0 0
      %292 = vmatprep.subr.bf16.mxu0 0
      %293 = vmatpush1.bf16.msra.mxu0 0
      %294 = vmatprep.subr.bf16.mxu0 0
      %295 = vmatpush1.bf16.msra.mxu0 0
      %296 = vmatprep.subr.bf16.mxu0 0
      %297 = vmatpush1.bf16.msra.mxu0 0
      %298 = vmatprep.subr.bf16.mxu0 0
      %299 = vmatpush1.bf16.msra.mxu0 %v230
      %300 = vmatprep.subr.bf16.mxu0 0
      %301 = vmatpush2.bf16.msra.mxu0 0
      %302 = vmatprep.subr.bf16.mxu0 0
      %303 = vmatpush2.bf16.msra.mxu0 0
      %304 = vmatprep.subr.bf16.mxu0 0
      %305 = vmatpush2.bf16.msra.mxu0 0
      %306 = vmatprep.subr.bf16.mxu0 0
      %307 = vmatpush2.bf16.msra.mxu0 0
      %308 = vmatprep.subr.bf16.mxu0 0
      %309 = vmatpush2.bf16.msra.mxu0 0
      %310 = vmatprep.subr.bf16.mxu0 0
      %311 = vmatpush2.bf16.msra.mxu0 0
      %312 = vmatprep.subr.bf16.mxu0 0
      %313 = vmatpush2.bf16.msra.mxu0 0
      %314 = vmatprep.subr.bf16.mxu0 0
      %315 = vmatpush2.bf16.msra.mxu0 0
      %316 = vmatprep.mubr.bf16.mxu0 0
      %317 = vmatmul.mubr.bf16.gmra.mxu0 %v234
      %v318 = vpop.f32.mrf.mxu0
      %v319 = vadd.f32 0.0, %v318
      %v320 = vpop.f32.mrf.mxu0
      %v321 = vpop.f32.mrf.mxu0
      %v322 = vadd.f32 0.0, %v321
      %v323 = vpop.f32.mrf.mxu0
      %324 = vmatprep.mubr.bf16.mxu0 0
      %325 = vmatmul.mubr.bf16.gmra.mxu0 %v237
      %v326 = vpop.f32.mrf.mxu0
      %v327 = vadd.f32 0.0, %v326
      %v328 = vpop.f32.mrf.mxu0
      %v329 = vpop.f32.mrf.mxu0
      %v330 = vadd.f32 0.0, %v329
      %v331 = vpop.f32.mrf.mxu0
      %332 = vmatprep.mubr.bf16.mxu0 0
      %333 = vmatmul.mubr.bf16.gmra.mxu0 %v240
      %v334 = vpop.f32.mrf.mxu0
      %v335 = vadd.f32 0.0, %v334
      %v336 = vpop.f32.mrf.mxu0
      %v337 = vpop.f32.mrf.mxu0
      %v338 = vadd.f32 0.0, %v337
      %v339 = vpop.f32.mrf.mxu0
      %340 = vmatprep.mubr.bf16.mxu0 0
      %341 = vmatmul.mubr.bf16.gmra.mxu0 %v243
      %v342 = vpop.f32.mrf.mxu0
      %v343 = vadd.f32 0.0, %v342
      %v344 = vpop.f32.mrf.mxu0
      %v345 = vpop.f32.mrf.mxu0
      %v346 = vadd.f32 0.0, %v345
      %v347 = vpop.f32.mrf.mxu0
      %348 = vmatprep.mubr.bf16.mxu0 0
      %349 = vmatmul.mubr.bf16.gmra.mxu0 %v246
      %v350 = vpop.f32.mrf.mxu0
      %v351 = vadd.f32 0.0, %v350
      %v352 = vpop.f32.mrf.mxu0
      %v353 = vpop.f32.mrf.mxu0
      %v354 = vadd.f32 0.0, %v353
      %v355 = vpop.f32.mrf.mxu0
      %356 = vmatprep.mubr.bf16.mxu0 0
      %357 = vmatmul.mubr.bf16.gmra.mxu0 %v249
      %v358 = vpop.f32.mrf.mxu0
      %v359 = vadd.f32 0.0, %v358
      %v360 = vpop.f32.mrf.mxu0
      %v361 = vpop.f32.mrf.mxu0
      %v362 = vadd.f32 0.0, %v361
      %v363 = vpop.f32.mrf.mxu0
      %364 = vmatprep.mubr.bf16.mxu0 0
      %365 = vmatmul.mubr.bf16.gmra.mxu0 %v252
      %v366 = vpop.f32.mrf.mxu0
      %v367 = vadd.f32 0.0, %v366
      %v368 = vpop.f32.mrf.mxu0
      %v369 = vpop.f32.mrf.mxu0
      %v370 = vadd.f32 0.0, %v369
      %v371 = vpop.f32.mrf.mxu0
      %372 = vmatprep.mubr.bf16.mxu0 0
      %373 = vmatmul.mubr.bf16.gmra.mxu0 %v255
      %v374 = vpop.f32.mrf.mxu0
      %v375 = vadd.f32 0.0, %v374
      %v376 = vpop.f32.mrf.mxu0
      %v377 = vpop.f32.mrf.mxu0
      %v378 = vadd.f32 0.0, %v377
      %v379 = vpop.f32.mrf.mxu0
      %380 = vmatprep.mubr.bf16.mxu0 0
      %381 = vmatmul.mubr.bf16.gmra.mxu0 %v258
      %v382 = vpop.f32.mrf.mxu0
      %v383 = vadd.f32 0.0, %v382
      %v384 = vpop.f32.mrf.mxu0
      %v385 = vpop.f32.mrf.mxu0
      %v386 = vadd.f32 0.0, %v385
      %v387 = vpop.f32.mrf.mxu0
      %388 = vmatprep.mubr.bf16.mxu0 0
      %389 = vmatmul.mubr.bf16.gmra.mxu0 %v261
      %v390 = vpop.f32.mrf.mxu0
      %v391 = vadd.f32 0.0, %v390
      %v392 = vpop.f32.mrf.mxu0
      %v393 = vpop.f32.mrf.mxu0
      %v394 = vadd.f32 0.0, %v393
      %v395 = vpop.f32.mrf.mxu0
      %396 = vmatprep.mubr.bf16.mxu0 0
      %397 = vmatmul.mubr.bf16.gmra.mxu0 %v264
      %v398 = vpop.f32.mrf.mxu0
      %v399 = vadd.f32 0.0, %v398
      %v400 = vpop.f32.mrf.mxu0
      %v401 = vpop.f32.mrf.mxu0
      %v402 = vadd.f32 0.0, %v401
      %v403 = vpop.f32.mrf.mxu0
      %404 = vmatprep.mubr.bf16.mxu0 0
      %405 = vmatmul.mubr.bf16.gmra.mxu0 %v267
      %v406 = vpop.f32.mrf.mxu0
      %v407 = vadd.f32 0.0, %v406
      %v408 = vpop.f32.mrf.mxu0
      %v409 = vpop.f32.mrf.mxu0
      %v410 = vadd.f32 0.0, %v409
      %v411 = vpop.f32.mrf.mxu0
      %412 = vmatprep.mubr.bf16.mxu0 0
      %413 = vmatmul.mubr.bf16.gmra.mxu0 %v270
      %v414 = vpop.f32.mrf.mxu0
      %v415 = vadd.f32 0.0, %v414
      %v416 = vpop.f32.mrf.mxu0
      %v417 = vpop.f32.mrf.mxu0
      %v418 = vadd.f32 0.0, %v417
      %v419 = vpop.f32.mrf.mxu0
      %420 = vmatprep.mubr.bf16.mxu0 0
      %421 = vmatmul.mubr.bf16.gmra.mxu0 %v273
      %v422 = vpop.f32.mrf.mxu0
      %v423 = vadd.f32 0.0, %v422
      %v424 = vpop.f32.mrf.mxu0
      %v425 = vpop.f32.mrf.mxu0
      %v426 = vadd.f32 0.0, %v425
      %v427 = vpop.f32.mrf.mxu0
      %428 = vmatprep.mubr.bf16.mxu0 0
      %429 = vmatmul.mubr.bf16.gmra.mxu0 %v276
      %v430 = vpop.f32.mrf.mxu0
      %v431 = vadd.f32 0.0, %v430
      %v432 = vpop.f32.mrf.mxu0
      %v433 = vpop.f32.mrf.mxu0
      %v434 = vadd.f32 0.0, %v433
      %v435 = vpop.f32.mrf.mxu0
      %436 = vmatprep.mubr.bf16.mxu0 0
      %437 = vmatmul.mubr.bf16.gmra.mxu0 %v279
      %v438 = vpop.f32.mrf.mxu0
      %v439 = vadd.f32 0.0, %v438
      %v440 = vpop.f32.mrf.mxu0
      %v441 = vpop.f32.mrf.mxu0
      %v442 = vadd.f32 0.0, %v441
      %v443 = vpop.f32.mrf.mxu0
      %444 = vmatprep.mubr.bf16.mxu0 0
      %445 = vmatmul.mubr.bf16.gmra.mxu0 %v282
      %v446 = vpop.f32.mrf.mxu0
      %v447 = vadd.f32 0.0, %v446
      %v448 = vpop.f32.mrf.mxu0
      %v449 = vpop.f32.mrf.mxu0
      %v450 = vadd.f32 0.0, %v449
      %v451 = vpop.f32.mrf.mxu0
      %452 = vdwg.mxu0
      %v453 = vpack.c.bf16 %v322, %v319
      %v454 = vpack.c.bf16 %v330, %v327
      %v455 = vpack.c.bf16 %v338, %v335
      %v456 = vpack.c.bf16 %v346, %v343
      %v457 = vpack.c.bf16 %v354, %v351
      %v458 = vpack.c.bf16 %v362, %v359
      %v459 = vpack.c.bf16 %v370, %v367
      %v460 = vpack.c.bf16 %v378, %v375
      %v461 = vpack.c.bf16 %v386, %v383
      %v462 = vpack.c.bf16 %v394, %v391
      %v463 = vpack.c.bf16 %v402, %v399
      %v464 = vpack.c.bf16 %v410, %v407
      %v465 = vpack.c.bf16 %v418, %v415
      %v466 = vpack.c.bf16 %v426, %v423
      %v467 = vpack.c.bf16 %v434, %v431
      %v468 = vpack.c.bf16 %v442, %v439
      %v469 = vpack.c.bf16 %v450, %v447
      %v471 = vsel %vm232, %v208, 0
      %473 = vmatprep.subr.bf16.mxu0 0
      %474 = vmatpush1.bf16.msra.mxu0 0
      %475 = vmatprep.subr.bf16.mxu0 0
      %476 = vmatpush1.bf16.msra.mxu0 0
      %477 = vmatprep.subr.bf16.mxu0 0
      %478 = vmatpush1.bf16.msra.mxu0 0
      %479 = vmatprep.subr.bf16.mxu0 0
      %480 = vmatpush1.bf16.msra.mxu0 0
      %481 = vmatprep.subr.bf16.mxu0 0
      %482 = vmatpush1.bf16.msra.mxu0 0
      %483 = vmatprep.subr.bf16.mxu0 0
      %484 = vmatpush1.bf16.msra.mxu0 0
      %485 = vmatprep.subr.bf16.mxu0 0
      %486 = vmatpush1.bf16.msra.mxu0 0
      %487 = vmatprep.subr.bf16.mxu0 0
      %488 = vmatpush1.bf16.msra.mxu0 %v453
      %489 = vmatprep.subr.bf16.mxu0 0
      %490 = vmatpush2.bf16.msra.mxu0 0
      %491 = vmatprep.subr.bf16.mxu0 0
      %492 = vmatpush2.bf16.msra.mxu0 0
      %493 = vmatprep.subr.bf16.mxu0 0
      %494 = vmatpush2.bf16.msra.mxu0 0
      %495 = vmatprep.subr.bf16.mxu0 0
      %496 = vmatpush2.bf16.msra.mxu0 0
      %497 = vmatprep.subr.bf16.mxu0 0
      %498 = vmatpush2.bf16.msra.mxu0 0
      %499 = vmatprep.subr.bf16.mxu0 0
      %500 = vmatpush2.bf16.msra.mxu0 0
      %501 = vmatprep.subr.bf16.mxu0 0
      %502 = vmatpush2.bf16.msra.mxu0 0
      %503 = vmatprep.subr.bf16.mxu0 0
      %504 = vmatpush2.bf16.msra.mxu0 0
      %505 = vmatprep.mubr.bf16.mxu0 0
      %506 = vmatmul.mubr.bf16.gmra.mxu0 %v471
      %v507 = vpop.f32.mrf.mxu0
      %v508 = vadd.f32 0.0, %v507
      %v509 = vpop.f32.mrf.mxu0
      %v510 = vpop.f32.mrf.mxu0
      %v511 = vpop.f32.mrf.mxu0
      %512 = vdwg.mxu0
      %513 = vmatprep.subr.bf16.mxu0 0
      %514 = vmatpush1.bf16.msra.mxu0 0
      %515 = vmatprep.subr.bf16.mxu0 0
      %516 = vmatpush1.bf16.msra.mxu0 0
      %517 = vmatprep.subr.bf16.mxu0 0
      %518 = vmatpush1.bf16.msra.mxu0 0
      %519 = vmatprep.subr.bf16.mxu0 0
      %520 = vmatpush1.bf16.msra.mxu0 0
      %521 = vmatprep.subr.bf16.mxu0 0
      %522 = vmatpush1.bf16.msra.mxu0 0
      %523 = vmatprep.subr.bf16.mxu0 0
      %524 = vmatpush1.bf16.msra.mxu0 0
      %525 = vmatprep.subr.bf16.mxu0 0
      %526 = vmatpush1.bf16.msra.mxu0 0
      %527 = vmatprep.subr.bf16.mxu0 0
      %528 = vmatpush1.bf16.msra.mxu0 %v454
      %529 = vmatprep.subr.bf16.mxu0 0
      %530 = vmatpush2.bf16.msra.mxu0 0
      %531 = vmatprep.subr.bf16.mxu0 0
      %532 = vmatpush2.bf16.msra.mxu0 0
      %533 = vmatprep.subr.bf16.mxu0 0
      %534 = vmatpush2.bf16.msra.mxu0 0
      %535 = vmatprep.subr.bf16.mxu0 0
      %536 = vmatpush2.bf16.msra.mxu0 0
      %537 = vmatprep.subr.bf16.mxu0 0
      %538 = vmatpush2.bf16.msra.mxu0 0
      %539 = vmatprep.subr.bf16.mxu0 0
      %540 = vmatpush2.bf16.msra.mxu0 0
      %541 = vmatprep.subr.bf16.mxu0 0
      %542 = vmatpush2.bf16.msra.mxu0 0
      %543 = vmatprep.subr.bf16.mxu0 0
      %544 = vmatpush2.bf16.msra.mxu0 0
      %545 = vmatprep.mubr.bf16.mxu0 0
      %546 = vmatmul.mubr.bf16.gmra.mxu0 %v471
      %v547 = vpop.f32.mrf.mxu0
      %v548 = vadd.f32 0.0, %v547
      %v549 = vpop.f32.mrf.mxu0
      %v550 = vpop.f32.mrf.mxu0
      %v551 = vpop.f32.mrf.mxu0
      %552 = vdwg.mxu0
      %553 = vmatprep.subr.bf16.mxu0 0
      %554 = vmatpush1.bf16.msra.mxu0 0
      %555 = vmatprep.subr.bf16.mxu0 0
      %556 = vmatpush1.bf16.msra.mxu0 0
      %557 = vmatprep.subr.bf16.mxu0 0
      %558 = vmatpush1.bf16.msra.mxu0 0
      %559 = vmatprep.subr.bf16.mxu0 0
      %560 = vmatpush1.bf16.msra.mxu0 0
      %561 = vmatprep.subr.bf16.mxu0 0
      %562 = vmatpush1.bf16.msra.mxu0 0
      %563 = vmatprep.subr.bf16.mxu0 0
      %564 = vmatpush1.bf16.msra.mxu0 0
      %565 = vmatprep.subr.bf16.mxu0 0
      %566 = vmatpush1.bf16.msra.mxu0 0
      %567 = vmatprep.subr.bf16.mxu0 0
      %568 = vmatpush1.bf16.msra.mxu0 %v455
      %569 = vmatprep.subr.bf16.mxu0 0
      %570 = vmatpush2.bf16.msra.mxu0 0
      %571 = vmatprep.subr.bf16.mxu0 0
      %572 = vmatpush2.bf16.msra.mxu0 0
      %573 = vmatprep.subr.bf16.mxu0 0
      %574 = vmatpush2.bf16.msra.mxu0 0
      %575 = vmatprep.subr.bf16.mxu0 0
      %576 = vmatpush2.bf16.msra.mxu0 0
      %577 = vmatprep.subr.bf16.mxu0 0
      %578 = vmatpush2.bf16.msra.mxu0 0
      %579 = vmatprep.subr.bf16.mxu0 0
      %580 = vmatpush2.bf16.msra.mxu0 0
      %581 = vmatprep.subr.bf16.mxu0 0
      %582 = vmatpush2.bf16.msra.mxu0 0
      %583 = vmatprep.subr.bf16.mxu0 0
      %584 = vmatpush2.bf16.msra.mxu0 0
      %585 = vmatprep.mubr.bf16.mxu0 0
      %586 = vmatmul.mubr.bf16.gmra.mxu0 %v471
      %v587 = vpop.f32.mrf.mxu0
      %v588 = vadd.f32 0.0, %v587
      %v589 = vpop.f32.mrf.mxu0
      %v590 = vpop.f32.mrf.mxu0
      %v591 = vpop.f32.mrf.mxu0
      %592 = vdwg.mxu0
      %593 = vmatprep.subr.bf16.mxu0 0
      %594 = vmatpush1.bf16.msra.mxu0 0
      %595 = vmatprep.subr.bf16.mxu0 0
      %596 = vmatpush1.bf16.msra.mxu0 0
      %597 = vmatprep.subr.bf16.mxu0 0
      %598 = vmatpush1.bf16.msra.mxu0 0
      %599 = vmatprep.subr.bf16.mxu0 0
      %600 = vmatpush1.bf16.msra.mxu0 0
      %601 = vmatprep.subr.bf16.mxu0 0
      %602 = vmatpush1.bf16.msra.mxu0 0
      %603 = vmatprep.subr.bf16.mxu0 0
      %604 = vmatpush1.bf16.msra.mxu0 0
      %605 = vmatprep.subr.bf16.mxu0 0
      %606 = vmatpush1.bf16.msra.mxu0 0
      %607 = vmatprep.subr.bf16.mxu0 0
      %608 = vmatpush1.bf16.msra.mxu0 %v456
      %609 = vmatprep.subr.bf16.mxu0 0
      %610 = vmatpush2.bf16.msra.mxu0 0
      %611 = vmatprep.subr.bf16.mxu0 0
      %612 = vmatpush2.bf16.msra.mxu0 0
      %613 = vmatprep.subr.bf16.mxu0 0
      %614 = vmatpush2.bf16.msra.mxu0 0
      %615 = vmatprep.subr.bf16.mxu0 0
      %616 = vmatpush2.bf16.msra.mxu0 0
      %617 = vmatprep.subr.bf16.mxu0 0
      %618 = vmatpush2.bf16.msra.mxu0 0
      %619 = vmatprep.subr.bf16.mxu0 0
      %620 = vmatpush2.bf16.msra.mxu0 0
      %621 = vmatprep.subr.bf16.mxu0 0
      %622 = vmatpush2.bf16.msra.mxu0 0
      %623 = vmatprep.subr.bf16.mxu0 0
      %624 = vmatpush2.bf16.msra.mxu0 0
      %625 = vmatprep.mubr.bf16.mxu0 0
      %626 = vmatmul.mubr.bf16.gmra.mxu0 %v471
      %v627 = vpop.f32.mrf.mxu0
      %v628 = vadd.f32 0.0, %v627
      %v629 = vpop.f32.mrf.mxu0
      %v630 = vpop.f32.mrf.mxu0
      %v631 = vpop.f32.mrf.mxu0
      %632 = vdwg.mxu0
      %633 = vmatprep.subr.bf16.mxu0 0
      %634 = vmatpush1.bf16.msra.mxu0 0
      %635 = vmatprep.subr.bf16.mxu0 0
      %636 = vmatpush1.bf16.msra.mxu0 0
      %637 = vmatprep.subr.bf16.mxu0 0
      %638 = vmatpush1.bf16.msra.mxu0 0
      %639 = vmatprep.subr.bf16.mxu0 0
      %640 = vmatpush1.bf16.msra.mxu0 0
      %641 = vmatprep.subr.bf16.mxu0 0
      %642 = vmatpush1.bf16.msra.mxu0 0
      %643 = vmatprep.subr.bf16.mxu0 0
      %644 = vmatpush1.bf16.msra.mxu0 0
      %645 = vmatprep.subr.bf16.mxu0 0
      %646 = vmatpush1.bf16.msra.mxu0 0
      %647 = vmatprep.subr.bf16.mxu0 0
      %648 = vmatpush1.bf16.msra.mxu0 %v457
      %649 = vmatprep.subr.bf16.mxu0 0
      %650 = vmatpush2.bf16.msra.mxu0 0
      %651 = vmatprep.subr.bf16.mxu0 0
      %652 = vmatpush2.bf16.msra.mxu0 0
      %653 = vmatprep.subr.bf16.mxu0 0
      %654 = vmatpush2.bf16.msra.mxu0 0
      %655 = vmatprep.subr.bf16.mxu0 0
      %656 = vmatpush2.bf16.msra.mxu0 0
      %657 = vmatprep.subr.bf16.mxu0 0
      %658 = vmatpush2.bf16.msra.mxu0 0
      %659 = vmatprep.subr.bf16.mxu0 0
      %660 = vmatpush2.bf16.msra.mxu0 0
      %661 = vmatprep.subr.bf16.mxu0 0
      %662 = vmatpush2.bf16.msra.mxu0 0
      %663 = vmatprep.subr.bf16.mxu0 0
      %664 = vmatpush2.bf16.msra.mxu0 0
      %665 = vmatprep.mubr.bf16.mxu0 0
      %666 = vmatmul.mubr.bf16.gmra.mxu0 %v471
      %v667 = vpop.f32.mrf.mxu0
      %v668 = vadd.f32 0.0, %v667
      %v669 = vpop.f32.mrf.mxu0
      %v670 = vpop.f32.mrf.mxu0
      %v671 = vpop.f32.mrf.mxu0
      %672 = vdwg.mxu0
      %673 = vmatprep.subr.bf16.mxu0 0
      %674 = vmatpush1.bf16.msra.mxu0 0
      %675 = vmatprep.subr.bf16.mxu0 0
      %676 = vmatpush1.bf16.msra.mxu0 0
      %677 = vmatprep.subr.bf16.mxu0 0
      %678 = vmatpush1.bf16.msra.mxu0 0
      %679 = vmatprep.subr.bf16.mxu0 0
      %680 = vmatpush1.bf16.msra.mxu0 0
      %681 = vmatprep.subr.bf16.mxu0 0
      %682 = vmatpush1.bf16.msra.mxu0 0
      %683 = vmatprep.subr.bf16.mxu0 0
      %684 = vmatpush1.bf16.msra.mxu0 0
      %685 = vmatprep.subr.bf16.mxu0 0
      %686 = vmatpush1.bf16.msra.mxu0 0
      %687 = vmatprep.subr.bf16.mxu0 0
      %688 = vmatpush1.bf16.msra.mxu0 %v458
      %689 = vmatprep.subr.bf16.mxu0 0
      %690 = vmatpush2.bf16.msra.mxu0 0
      %691 = vmatprep.subr.bf16.mxu0 0
      %692 = vmatpush2.bf16.msra.mxu0 0
      %693 = vmatprep.subr.bf16.mxu0 0
      %694 = vmatpush2.bf16.msra.mxu0 0
      %695 = vmatprep.subr.bf16.mxu0 0
      %696 = vmatpush2.bf16.msra.mxu0 0
      %697 = vmatprep.subr.bf16.mxu0 0
      %698 = vmatpush2.bf16.msra.mxu0 0
      %699 = vmatprep.subr.bf16.mxu0 0
      %700 = vmatpush2.bf16.msra.mxu0 0
      %701 = vmatprep.subr.bf16.mxu0 0
      %702 = vmatpush2.bf16.msra.mxu0 0
      %703 = vmatprep.subr.bf16.mxu0 0
      %704 = vmatpush2.bf16.msra.mxu0 0
      %705 = vmatprep.mubr.bf16.mxu0 0
      %706 = vmatmul.mubr.bf16.gmra.mxu0 %v471
      %v707 = vpop.f32.mrf.mxu0
      %v708 = vadd.f32 0.0, %v707
      %v709 = vpop.f32.mrf.mxu0
      %v710 = vpop.f32.mrf.mxu0
      %v711 = vpop.f32.mrf.mxu0
      %712 = vdwg.mxu0
      %713 = vmatprep.subr.bf16.mxu0 0
      %714 = vmatpush1.bf16.msra.mxu0 0
      %715 = vmatprep.subr.bf16.mxu0 0
      %716 = vmatpush1.bf16.msra.mxu0 0
      %717 = vmatprep.subr.bf16.mxu0 0
      %718 = vmatpush1.bf16.msra.mxu0 0
      %719 = vmatprep.subr.bf16.mxu0 0
      %720 = vmatpush1.bf16.msra.mxu0 0
      %721 = vmatprep.subr.bf16.mxu0 0
      %722 = vmatpush1.bf16.msra.mxu0 0
      %723 = vmatprep.subr.bf16.mxu0 0
      %724 = vmatpush1.bf16.msra.mxu0 0
      %725 = vmatprep.subr.bf16.mxu0 0
      %726 = vmatpush1.bf16.msra.mxu0 0
      %727 = vmatprep.subr.bf16.mxu0 0
      %728 = vmatpush1.bf16.msra.mxu0 %v459
      %729 = vmatprep.subr.bf16.mxu0 0
      %730 = vmatpush2.bf16.msra.mxu0 0
      %731 = vmatprep.subr.bf16.mxu0 0
      %732 = vmatpush2.bf16.msra.mxu0 0
      %733 = vmatprep.subr.bf16.mxu0 0
      %734 = vmatpush2.bf16.msra.mxu0 0
      %735 = vmatprep.subr.bf16.mxu0 0
      %736 = vmatpush2.bf16.msra.mxu0 0
      %737 = vmatprep.subr.bf16.mxu0 0
      %738 = vmatpush2.bf16.msra.mxu0 0
      %739 = vmatprep.subr.bf16.mxu0 0
      %740 = vmatpush2.bf16.msra.mxu0 0
      %741 = vmatprep.subr.bf16.mxu0 0
      %742 = vmatpush2.bf16.msra.mxu0 0
      %743 = vmatprep.subr.bf16.mxu0 0
      %744 = vmatpush2.bf16.msra.mxu0 0
      %745 = vmatprep.mubr.bf16.mxu0 0
      %746 = vmatmul.mubr.bf16.gmra.mxu0 %v471
      %v747 = vpop.f32.mrf.mxu0
      %v748 = vadd.f32 0.0, %v747
      %v749 = vpop.f32.mrf.mxu0
      %v750 = vpop.f32.mrf.mxu0
      %v751 = vpop.f32.mrf.mxu0
      %752 = vdwg.mxu0
      %753 = vmatprep.subr.bf16.mxu0 0
      %754 = vmatpush1.bf16.msra.mxu0 0
      %755 = vmatprep.subr.bf16.mxu0 0
      %756 = vmatpush1.bf16.msra.mxu0 0
      %757 = vmatprep.subr.bf16.mxu0 0
      %758 = vmatpush1.bf16.msra.mxu0 0
      %759 = vmatprep.subr.bf16.mxu0 0
      %760 = vmatpush1.bf16.msra.mxu0 0
      %761 = vmatprep.subr.bf16.mxu0 0
      %762 = vmatpush1.bf16.msra.mxu0 0
      %763 = vmatprep.subr.bf16.mxu0 0
      %764 = vmatpush1.bf16.msra.mxu0 0
      %765 = vmatprep.subr.bf16.mxu0 0
      %766 = vmatpush1.bf16.msra.mxu0 0
      %767 = vmatprep.subr.bf16.mxu0 0
      %768 = vmatpush1.bf16.msra.mxu0 %v460
      %769 = vmatprep.subr.bf16.mxu0 0
      %770 = vmatpush2.bf16.msra.mxu0 0
      %771 = vmatprep.subr.bf16.mxu0 0
      %772 = vmatpush2.bf16.msra.mxu0 0
      %773 = vmatprep.subr.bf16.mxu0 0
      %774 = vmatpush2.bf16.msra.mxu0 0
      %775 = vmatprep.subr.bf16.mxu0 0
      %776 = vmatpush2.bf16.msra.mxu0 0
      %777 = vmatprep.subr.bf16.mxu0 0
      %778 = vmatpush2.bf16.msra.mxu0 0
      %779 = vmatprep.subr.bf16.mxu0 0
      %780 = vmatpush2.bf16.msra.mxu0 0
      %781 = vmatprep.subr.bf16.mxu0 0
      %782 = vmatpush2.bf16.msra.mxu0 0
      %783 = vmatprep.subr.bf16.mxu0 0
      %784 = vmatpush2.bf16.msra.mxu0 0
      %785 = vmatprep.mubr.bf16.mxu0 0
      %786 = vmatmul.mubr.bf16.gmra.mxu0 %v471
      %v787 = vpop.f32.mrf.mxu0
      %v788 = vadd.f32 0.0, %v787
      %v789 = vpop.f32.mrf.mxu0
      %v790 = vpop.f32.mrf.mxu0
      %v791 = vpop.f32.mrf.mxu0
      %792 = vdwg.mxu0
      %793 = vmatprep.subr.bf16.mxu0 0
      %794 = vmatpush1.bf16.msra.mxu0 0
      %795 = vmatprep.subr.bf16.mxu0 0
      %796 = vmatpush1.bf16.msra.mxu0 0
      %797 = vmatprep.subr.bf16.mxu0 0
      %798 = vmatpush1.bf16.msra.mxu0 0
      %799 = vmatprep.subr.bf16.mxu0 0
      %800 = vmatpush1.bf16.msra.mxu0 0
      %801 = vmatprep.subr.bf16.mxu0 0
      %802 = vmatpush1.bf16.msra.mxu0 0
      %803 = vmatprep.subr.bf16.mxu0 0
      %804 = vmatpush1.bf16.msra.mxu0 0
      %805 = vmatprep.subr.bf16.mxu0 0
      %806 = vmatpush1.bf16.msra.mxu0 0
      %807 = vmatprep.subr.bf16.mxu0 0
      %808 = vmatpush1.bf16.msra.mxu0 %v461
      %809 = vmatprep.subr.bf16.mxu0 0
      %810 = vmatpush2.bf16.msra.mxu0 0
      %811 = vmatprep.subr.bf16.mxu0 0
      %812 = vmatpush2.bf16.msra.mxu0 0
      %813 = vmatprep.subr.bf16.mxu0 0
      %814 = vmatpush2.bf16.msra.mxu0 0
      %815 = vmatprep.subr.bf16.mxu0 0
      %816 = vmatpush2.bf16.msra.mxu0 0
      %817 = vmatprep.subr.bf16.mxu0 0
      %818 = vmatpush2.bf16.msra.mxu0 0
      %819 = vmatprep.subr.bf16.mxu0 0
      %820 = vmatpush2.bf16.msra.mxu0 0
      %821 = vmatprep.subr.bf16.mxu0 0
      %822 = vmatpush2.bf16.msra.mxu0 0
      %823 = vmatprep.subr.bf16.mxu0 0
      %824 = vmatpush2.bf16.msra.mxu0 0
      %825 = vmatprep.mubr.bf16.mxu0 0
      %826 = vmatmul.mubr.bf16.gmra.mxu0 %v471
      %v827 = vpop.f32.mrf.mxu0
      %v828 = vadd.f32 0.0, %v827
      %v829 = vpop.f32.mrf.mxu0
      %v830 = vpop.f32.mrf.mxu0
      %v831 = vpop.f32.mrf.mxu0
      %832 = vdwg.mxu0
      %833 = vmatprep.subr.bf16.mxu0 0
      %834 = vmatpush1.bf16.msra.mxu0 0
      %835 = vmatprep.subr.bf16.mxu0 0
      %836 = vmatpush1.bf16.msra.mxu0 0
      %837 = vmatprep.subr.bf16.mxu0 0
      %838 = vmatpush1.bf16.msra.mxu0 0
      %839 = vmatprep.subr.bf16.mxu0 0
      %840 = vmatpush1.bf16.msra.mxu0 0
      %841 = vmatprep.subr.bf16.mxu0 0
      %842 = vmatpush1.bf16.msra.mxu0 0
      %843 = vmatprep.subr.bf16.mxu0 0
      %844 = vmatpush1.bf16.msra.mxu0 0
      %845 = vmatprep.subr.bf16.mxu0 0
      %846 = vmatpush1.bf16.msra.mxu0 0
      %847 = vmatprep.subr.bf16.mxu0 0
      %848 = vmatpush1.bf16.msra.mxu0 %v462
      %849 = vmatprep.subr.bf16.mxu0 0
      %850 = vmatpush2.bf16.msra.mxu0 0
      %851 = vmatprep.subr.bf16.mxu0 0
      %852 = vmatpush2.bf16.msra.mxu0 0
      %853 = vmatprep.subr.bf16.mxu0 0
      %854 = vmatpush2.bf16.msra.mxu0 0
      %855 = vmatprep.subr.bf16.mxu0 0
      %856 = vmatpush2.bf16.msra.mxu0 0
      %857 = vmatprep.subr.bf16.mxu0 0
      %858 = vmatpush2.bf16.msra.mxu0 0
      %859 = vmatprep.subr.bf16.mxu0 0
      %860 = vmatpush2.bf16.msra.mxu0 0
      %861 = vmatprep.subr.bf16.mxu0 0
      %862 = vmatpush2.bf16.msra.mxu0 0
      %863 = vmatprep.subr.bf16.mxu0 0
      %864 = vmatpush2.bf16.msra.mxu0 0
      %865 = vmatprep.mubr.bf16.mxu0 0
      %866 = vmatmul.mubr.bf16.gmra.mxu0 %v471
      %v867 = vpop.f32.mrf.mxu0
      %v868 = vadd.f32 0.0, %v867
      %v869 = vpop.f32.mrf.mxu0
      %v870 = vpop.f32.mrf.mxu0
      %v871 = vpop.f32.mrf.mxu0
      %872 = vdwg.mxu0
      %873 = vmatprep.subr.bf16.mxu0 0
      %874 = vmatpush1.bf16.msra.mxu0 0
      %875 = vmatprep.subr.bf16.mxu0 0
      %876 = vmatpush1.bf16.msra.mxu0 0
      %877 = vmatprep.subr.bf16.mxu0 0
      %878 = vmatpush1.bf16.msra.mxu0 0
      %879 = vmatprep.subr.bf16.mxu0 0
      %880 = vmatpush1.bf16.msra.mxu0 0
      %881 = vmatprep.subr.bf16.mxu0 0
      %882 = vmatpush1.bf16.msra.mxu0 0
      %883 = vmatprep.subr.bf16.mxu0 0
      %884 = vmatpush1.bf16.msra.mxu0 0
      %885 = vmatprep.subr.bf16.mxu0 0
      %886 = vmatpush1.bf16.msra.mxu0 0
      %887 = vmatprep.subr.bf16.mxu0 0
      %888 = vmatpush1.bf16.msra.mxu0 %v463
      %889 = vmatprep.subr.bf16.mxu0 0
      %890 = vmatpush2.bf16.msra.mxu0 0
      %891 = vmatprep.subr.bf16.mxu0 0
      %892 = vmatpush2.bf16.msra.mxu0 0
      %893 = vmatprep.subr.bf16.mxu0 0
      %894 = vmatpush2.bf16.msra.mxu0 0
      %895 = vmatprep.subr.bf16.mxu0 0
      %896 = vmatpush2.bf16.msra.mxu0 0
      %897 = vmatprep.subr.bf16.mxu0 0
      %898 = vmatpush2.bf16.msra.mxu0 0
      %899 = vmatprep.subr.bf16.mxu0 0
      %900 = vmatpush2.bf16.msra.mxu0 0
      %901 = vmatprep.subr.bf16.mxu0 0
      %902 = vmatpush2.bf16.msra.mxu0 0
      %903 = vmatprep.subr.bf16.mxu0 0
      %904 = vmatpush2.bf16.msra.mxu0 0
      %905 = vmatprep.mubr.bf16.mxu0 0
      %906 = vmatmul.mubr.bf16.gmra.mxu0 %v471
      %v907 = vpop.f32.mrf.mxu0
      %v908 = vadd.f32 0.0, %v907
      %v909 = vpop.f32.mrf.mxu0
      %v910 = vpop.f32.mrf.mxu0
      %v911 = vpop.f32.mrf.mxu0
      %912 = vdwg.mxu0
      %913 = vmatprep.subr.bf16.mxu0 0
      %914 = vmatpush1.bf16.msra.mxu0 0
      %915 = vmatprep.subr.bf16.mxu0 0
      %916 = vmatpush1.bf16.msra.mxu0 0
      %917 = vmatprep.subr.bf16.mxu0 0
      %918 = vmatpush1.bf16.msra.mxu0 0
      %919 = vmatprep.subr.bf16.mxu0 0
      %920 = vmatpush1.bf16.msra.mxu0 0
      %921 = vmatprep.subr.bf16.mxu0 0
      %922 = vmatpush1.bf16.msra.mxu0 0
      %923 = vmatprep.subr.bf16.mxu0 0
      %924 = vmatpush1.bf16.msra.mxu0 0
      %925 = vmatprep.subr.bf16.mxu0 0
      %926 = vmatpush1.bf16.msra.mxu0 0
      %927 = vmatprep.subr.bf16.mxu0 0
      %928 = vmatpush1.bf16.msra.mxu0 %v464
      %929 = vmatprep.subr.bf16.mxu0 0
      %930 = vmatpush2.bf16.msra.mxu0 0
      %931 = vmatprep.subr.bf16.mxu0 0
      %932 = vmatpush2.bf16.msra.mxu0 0
      %933 = vmatprep.subr.bf16.mxu0 0
      %934 = vmatpush2.bf16.msra.mxu0 0
      %935 = vmatprep.subr.bf16.mxu0 0
      %936 = vmatpush2.bf16.msra.mxu0 0
      %937 = vmatprep.subr.bf16.mxu0 0
      %938 = vmatpush2.bf16.msra.mxu0 0
      %939 = vmatprep.subr.bf16.mxu0 0
      %940 = vmatpush2.bf16.msra.mxu0 0
      %941 = vmatprep.subr.bf16.mxu0 0
      %942 = vmatpush2.bf16.msra.mxu0 0
      %943 = vmatprep.subr.bf16.mxu0 0
      %944 = vmatpush2.bf16.msra.mxu0 0
      %945 = vmatprep.mubr.bf16.mxu0 0
      %946 = vmatmul.mubr.bf16.gmra.mxu0 %v471
      %v947 = vpop.f32.mrf.mxu0
      %v948 = vadd.f32 0.0, %v947
      %v949 = vpop.f32.mrf.mxu0
      %v950 = vpop.f32.mrf.mxu0
      %v951 = vpop.f32.mrf.mxu0
      %952 = vdwg.mxu0
      %953 = vmatprep.subr.bf16.mxu0 0
      %954 = vmatpush1.bf16.msra.mxu0 0
      %955 = vmatprep.subr.bf16.mxu0 0
      %956 = vmatpush1.bf16.msra.mxu0 0
      %957 = vmatprep.subr.bf16.mxu0 0
      %958 = vmatpush1.bf16.msra.mxu0 0
      %959 = vmatprep.subr.bf16.mxu0 0
      %960 = vmatpush1.bf16.msra.mxu0 0
      %961 = vmatprep.subr.bf16.mxu0 0
      %962 = vmatpush1.bf16.msra.mxu0 0
      %963 = vmatprep.subr.bf16.mxu0 0
      %964 = vmatpush1.bf16.msra.mxu0 0
      %965 = vmatprep.subr.bf16.mxu0 0
      %966 = vmatpush1.bf16.msra.mxu0 0
      %967 = vmatprep.subr.bf16.mxu0 0
      %968 = vmatpush1.bf16.msra.mxu0 %v465
      %969 = vmatprep.subr.bf16.mxu0 0
      %970 = vmatpush2.bf16.msra.mxu0 0
      %971 = vmatprep.subr.bf16.mxu0 0
      %972 = vmatpush2.bf16.msra.mxu0 0
      %973 = vmatprep.subr.bf16.mxu0 0
      %974 = vmatpush2.bf16.msra.mxu0 0
      %975 = vmatprep.subr.bf16.mxu0 0
      %976 = vmatpush2.bf16.msra.mxu0 0
      %977 = vmatprep.subr.bf16.mxu0 0
      %978 = vmatpush2.bf16.msra.mxu0 0
      %979 = vmatprep.subr.bf16.mxu0 0
      %980 = vmatpush2.bf16.msra.mxu0 0
      %981 = vmatprep.subr.bf16.mxu0 0
      %982 = vmatpush2.bf16.msra.mxu0 0
      %983 = vmatprep.subr.bf16.mxu0 0
      %984 = vmatpush2.bf16.msra.mxu0 0
      %985 = vmatprep.mubr.bf16.mxu0 0
      %986 = vmatmul.mubr.bf16.gmra.mxu0 %v471
      %v987 = vpop.f32.mrf.mxu0
      %v988 = vadd.f32 0.0, %v987
      %v989 = vpop.f32.mrf.mxu0
      %v990 = vpop.f32.mrf.mxu0
      %v991 = vpop.f32.mrf.mxu0
      %992 = vdwg.mxu0
      %993 = vmatprep.subr.bf16.mxu0 0
      %994 = vmatpush1.bf16.msra.mxu0 0
      %995 = vmatprep.subr.bf16.mxu0 0
      %996 = vmatpush1.bf16.msra.mxu0 0
      %997 = vmatprep.subr.bf16.mxu0 0
      %998 = vmatpush1.bf16.msra.mxu0 0
      %999 = vmatprep.subr.bf16.mxu0 0
      %1000 = vmatpush1.bf16.msra.mxu0 0
      %1001 = vmatprep.subr.bf16.mxu0 0
      %1002 = vmatpush1.bf16.msra.mxu0 0
      %1003 = vmatprep.subr.bf16.mxu0 0
      %1004 = vmatpush1.bf16.msra.mxu0 0
      %1005 = vmatprep.subr.bf16.mxu0 0
      %1006 = vmatpush1.bf16.msra.mxu0 0
      %1007 = vmatprep.subr.bf16.mxu0 0
      %1008 = vmatpush1.bf16.msra.mxu0 %v466
      %1009 = vmatprep.subr.bf16.mxu0 0
      %1010 = vmatpush2.bf16.msra.mxu0 0
      %1011 = vmatprep.subr.bf16.mxu0 0
      %1012 = vmatpush2.bf16.msra.mxu0 0
      %1013 = vmatprep.subr.bf16.mxu0 0
      %1014 = vmatpush2.bf16.msra.mxu0 0
      %1015 = vmatprep.subr.bf16.mxu0 0
      %1016 = vmatpush2.bf16.msra.mxu0 0
      %1017 = vmatprep.subr.bf16.mxu0 0
      %1018 = vmatpush2.bf16.msra.mxu0 0
      %1019 = vmatprep.subr.bf16.mxu0 0
      %1020 = vmatpush2.bf16.msra.mxu0 0
      %1021 = vmatprep.subr.bf16.mxu0 0
      %1022 = vmatpush2.bf16.msra.mxu0 0
      %1023 = vmatprep.subr.bf16.mxu0 0
      %1024 = vmatpush2.bf16.msra.mxu0 0
      %1025 = vmatprep.mubr.bf16.mxu0 0
      %1026 = vmatmul.mubr.bf16.gmra.mxu0 %v471
      %v1027 = vpop.f32.mrf.mxu0
      %v1028 = vadd.f32 0.0, %v1027
      %v1029 = vpop.f32.mrf.mxu0
      %v1030 = vpop.f32.mrf.mxu0
      %v1031 = vpop.f32.mrf.mxu0
      %1032 = vdwg.mxu0
      %1033 = vmatprep.subr.bf16.mxu0 0
      %1034 = vmatpush1.bf16.msra.mxu0 0
      %1035 = vmatprep.subr.bf16.mxu0 0
      %1036 = vmatpush1.bf16.msra.mxu0 0
      %1037 = vmatprep.subr.bf16.mxu0 0
      %1038 = vmatpush1.bf16.msra.mxu0 0
      %1039 = vmatprep.subr.bf16.mxu0 0
      %1040 = vmatpush1.bf16.msra.mxu0 0
      %1041 = vmatprep.subr.bf16.mxu0 0
      %1042 = vmatpush1.bf16.msra.mxu0 0
      %1043 = vmatprep.subr.bf16.mxu0 0
      %1044 = vmatpush1.bf16.msra.mxu0 0
      %1045 = vmatprep.subr.bf16.mxu0 0
      %1046 = vmatpush1.bf16.msra.mxu0 0
      %1047 = vmatprep.subr.bf16.mxu0 0
      %1048 = vmatpush1.bf16.msra.mxu0 %v467
      %1049 = vmatprep.subr.bf16.mxu0 0
      %1050 = vmatpush2.bf16.msra.mxu0 0
      %1051 = vmatprep.subr.bf16.mxu0 0
      %1052 = vmatpush2.bf16.msra.mxu0 0
      %1053 = vmatprep.subr.bf16.mxu0 0
      %1054 = vmatpush2.bf16.msra.mxu0 0
      %1055 = vmatprep.subr.bf16.mxu0 0
      %1056 = vmatpush2.bf16.msra.mxu0 0
      %1057 = vmatprep.subr.bf16.mxu0 0
      %1058 = vmatpush2.bf16.msra.mxu0 0
      %1059 = vmatprep.subr.bf16.mxu0 0
      %1060 = vmatpush2.bf16.msra.mxu0 0
      %1061 = vmatprep.subr.bf16.mxu0 0
      %1062 = vmatpush2.bf16.msra.mxu0 0
      %1063 = vmatprep.subr.bf16.mxu0 0
      %1064 = vmatpush2.bf16.msra.mxu0 0
      %1065 = vmatprep.mubr.bf16.mxu0 0
      %1066 = vmatmul.mubr.bf16.gmra.mxu0 %v471
      %v1067 = vpop.f32.mrf.mxu0
      %v1068 = vadd.f32 0.0, %v1067
      %v1069 = vpop.f32.mrf.mxu0
      %v1070 = vpop.f32.mrf.mxu0
      %v1071 = vpop.f32.mrf.mxu0
      %1072 = vdwg.mxu0
      %1073 = vmatprep.subr.bf16.mxu0 0
      %1074 = vmatpush1.bf16.msra.mxu0 0
      %1075 = vmatprep.subr.bf16.mxu0 0
      %1076 = vmatpush1.bf16.msra.mxu0 0
      %1077 = vmatprep.subr.bf16.mxu0 0
      %1078 = vmatpush1.bf16.msra.mxu0 0
      %1079 = vmatprep.subr.bf16.mxu0 0
      %1080 = vmatpush1.bf16.msra.mxu0 0
      %1081 = vmatprep.subr.bf16.mxu0 0
      %1082 = vmatpush1.bf16.msra.mxu0 0
      %1083 = vmatprep.subr.bf16.mxu0 0
      %1084 = vmatpush1.bf16.msra.mxu0 0
      %1085 = vmatprep.subr.bf16.mxu0 0
      %1086 = vmatpush1.bf16.msra.mxu0 0
      %1087 = vmatprep.subr.bf16.mxu0 0
      %1088 = vmatpush1.bf16.msra.mxu0 %v468
      %1089 = vmatprep.subr.bf16.mxu0 0
      %1090 = vmatpush2.bf16.msra.mxu0 0
      %1091 = vmatprep.subr.bf16.mxu0 0
      %1092 = vmatpush2.bf16.msra.mxu0 0
      %1093 = vmatprep.subr.bf16.mxu0 0
      %1094 = vmatpush2.bf16.msra.mxu0 0
      %1095 = vmatprep.subr.bf16.mxu0 0
      %1096 = vmatpush2.bf16.msra.mxu0 0
      %1097 = vmatprep.subr.bf16.mxu0 0
      %1098 = vmatpush2.bf16.msra.mxu0 0
      %1099 = vmatprep.subr.bf16.mxu0 0
      %1100 = vmatpush2.bf16.msra.mxu0 0
      %1101 = vmatprep.subr.bf16.mxu0 0
      %1102 = vmatpush2.bf16.msra.mxu0 0
      %1103 = vmatprep.subr.bf16.mxu0 0
      %1104 = vmatpush2.bf16.msra.mxu0 0
      %1105 = vmatprep.mubr.bf16.mxu0 0
      %1106 = vmatmul.mubr.bf16.gmra.mxu0 %v471
      %v1107 = vpop.f32.mrf.mxu0
      %v1108 = vadd.f32 0.0, %v1107
      %v1109 = vpop.f32.mrf.mxu0
      %v1110 = vpop.f32.mrf.mxu0
      %v1111 = vpop.f32.mrf.mxu0
      %1112 = vdwg.mxu0
      %1113 = vmatprep.subr.bf16.mxu0 0
      %1114 = vmatpush1.bf16.msra.mxu0 0
      %1115 = vmatprep.subr.bf16.mxu0 0
      %1116 = vmatpush1.bf16.msra.mxu0 0
      %1117 = vmatprep.subr.bf16.mxu0 0
      %1118 = vmatpush1.bf16.msra.mxu0 0
      %1119 = vmatprep.subr.bf16.mxu0 0
      %1120 = vmatpush1.bf16.msra.mxu0 0
      %1121 = vmatprep.subr.bf16.mxu0 0
      %1122 = vmatpush1.bf16.msra.mxu0 0
      %1123 = vmatprep.subr.bf16.mxu0 0
      %1124 = vmatpush1.bf16.msra.mxu0 0
      %1125 = vmatprep.subr.bf16.mxu0 0
      %1126 = vmatpush1.bf16.msra.mxu0 0
      %1127 = vmatprep.subr.bf16.mxu0 0
      %1128 = vmatpush1.bf16.msra.mxu0 %v469
      %1129 = vmatprep.subr.bf16.mxu0 0
      %1130 = vmatpush2.bf16.msra.mxu0 0
      %1131 = vmatprep.subr.bf16.mxu0 0
      %1132 = vmatpush2.bf16.msra.mxu0 0
      %1133 = vmatprep.subr.bf16.mxu0 0
      %1134 = vmatpush2.bf16.msra.mxu0 0
      %1135 = vmatprep.subr.bf16.mxu0 0
      %1136 = vmatpush2.bf16.msra.mxu0 0
      %1137 = vmatprep.subr.bf16.mxu0 0
      %1138 = vmatpush2.bf16.msra.mxu0 0
      %1139 = vmatprep.subr.bf16.mxu0 0
      %1140 = vmatpush2.bf16.msra.mxu0 0
      %1141 = vmatprep.subr.bf16.mxu0 0
      %1142 = vmatpush2.bf16.msra.mxu0 0
      %1143 = vmatprep.subr.bf16.mxu0 0
      %1144 = vmatpush2.bf16.msra.mxu0 0
      %1145 = vmatprep.mubr.bf16.mxu0 0
      %1146 = vmatmul.mubr.bf16.gmra.mxu0 %v471
      %v1147 = vpop.f32.mrf.mxu0
      %v1148 = vadd.f32 0.0, %v1147
      %v1149 = vpop.f32.mrf.mxu0
      %v1150 = vpop.f32.mrf.mxu0
      %v1151 = vpop.f32.mrf.mxu0
      %1152 = vdwg.mxu0
      %vm1153 = vcmask 64512
      %1154 = vst.msk [vmem:[%s170] sm:$0xff] %vm1153, %v508
      %1155 = vst.msk [vmem:[%s170 + $0x8] sm:$0xff] %vm1153, %v548
      %1156 = vst.msk [vmem:[%s170 + $0x10] sm:$0xff] %vm1153, %v588
      %1157 = vst.msk [vmem:[%s170 + $0x18] sm:$0xff] %vm1153, %v628
      %1158 = vst.msk [vmem:[%s170 + $0x20] sm:$0xff] %vm1153, %v668
      %1159 = vst.msk [vmem:[%s170 + $0x28] sm:$0xff] %vm1153, %v708
      %1160 = vst.msk [vmem:[%s170 + $0x30] sm:$0xff] %vm1153, %v748
      %1161 = vst.msk [vmem:[%s170 + $0x38] sm:$0xff] %vm1153, %v788
      %1162 = vst.msk [vmem:[%s170 + $0x40] sm:$0xff] %vm1153, %v828
      %1163 = vst.msk [vmem:[%s170 + $0x48] sm:$0xff] %vm1153, %v868
      %1164 = vst.msk [vmem:[%s170 + $0x50] sm:$0xff] %vm1153, %v908
      %1165 = vst.msk [vmem:[%s170 + $0x58] sm:$0xff] %vm1153, %v948
      %1166 = vst.msk [vmem:[%s170 + $0x60] sm:$0xff] %vm1153, %v988
      %1167 = vst.msk [vmem:[%s170 + $0x68] sm:$0xff] %vm1153, %v1028
      %1168 = vst.msk [vmem:[%s170 + $0x70] sm:$0xff] %vm1153, %v1068
      %1169 = vst.msk [vmem:[%s170 + $0x78] sm:$0xff] %vm1153, %v1108
      %1170 = vst.msk [vmem:[%s170 + $0x80] sm:$0xff] %vm1153, %v1148
      %p1171 = scmp.lt.s32.totalorder %s14, 1
      %s1172 = scalar_select %p1171, %s14, 1
      %s1173 = smul.addr %s1172, 17
      %s1174 = smul.addr %s1173, 8
      %s1175 = scalar_lea.vmem %s3, %s1174
      // Predicated region
      $region33: #{tpu_custom_call.1} parent=31 // pred_check
        %p1176 = pneg %p100
      $region34: #{tpu_custom_call.1} parent=31 // pred_check_branch
        %1178 = sbr.rel (%p1176) target = $region36
      $region35: #{tpu_custom_call.1} parent=31 // pred_region
        _
      $region36: #{tpu_custom_call.1} parent=31 // pred_fallthru
        _
    $region32: #{tpu_custom_call.1} parent=5 // pred_fallthru
      _
    %p1179 = scmp.le.s32.totalorder 2, %s9
    // Predicated region
    $region37: #{tpu_custom_call.1} parent=5 // pred_check
      %p1180 = pneg %p1179
    $region38: #{tpu_custom_call.1} parent=5 // pred_check_branch
      %1182 = sbr.rel (%p1180) target = $region40
    $region39: #{tpu_custom_call.1} parent=5 // pred_region
      %s1183 = ssub.s32 %s9, 2
      // Predicated region
      $region41: #{tpu_custom_call.1} parent=39 // pred_check
        %p1184 = pneg %p106
      $region42: #{tpu_custom_call.1} parent=39 // pred_check_branch
        %1186 = sbr.rel (%p1184) target = $region44
      $region43: #{tpu_custom_call.1} parent=39 // pred_region
        %p1187 = scmp.lt.s32.totalorder %s15, 1
        %s1188 = scalar_select %p1187, %s15, 1
        %s1189 = smul.addr %s1188, 17
        %s1190 = smul.addr %s1189, 8
        %s1191 = scalar_lea.vmem %s3, %s1190
      $region44: #{tpu_custom_call.1} parent=39 // pred_fallthru
        _
    $region40: #{tpu_custom_call.1} parent=5 // pred_fallthru
      _
  $region6: #{tpu_custom_call.1} parent=0 // loop_footer
    %s13 = sadd.s32 1, %s9
  $region7: #{tpu_custom_call.1} parent=0 // loop_footer_branch
    %8 = sbr.rel target = $region3
  $region8: #{tpu_custom_call.1} parent=0 // loop_exit
    _

</llo_original>
